<compile_context>
chip_gen: v7x
topology: tpu7x:2x2x1
jax: 0.10.0
libtpu: 0.0.40
codegen_flags: <defaults>
</compile_context>

<pallas_src>
import math

import jax
import jax.numpy as jnp
from jax.experimental import pallas as pl
from jax.experimental.pallas import tpu as pltpu

N_HEADS = 4  # the module hard-codes n_heads = 4 in __init__


def insertion_kernel(u_ref, cfs_ref,
                     wu_ref, wcf_ref,
                     w1_ref, b1_ref,
                     w2_ref, b2_ref, w3_ref, b3_ref,
                     out_ref):
    # u_ref  : (BT, U, D)   f32
    # cfs_ref: (BT*C, D+S)  f32   pre-concatenated [cf | selection_sig]
    # wu_ref : (D,   E)     bf16  packed [W_Q_u | W_K_u]
    # wcf_ref: (D+S, E+S)   bf16  packed [[W_K_cf | W_Q_cf, 0], [0, I_S]]
    # w1_ref : (E+S, F1)    bf16  fc1 (head-sum + norm folded; sig rows appended)
    # b1_ref : (1, F1) f32   w2_ref: (F1, F2) bf16   b2_ref: (1, F2) f32
    # w3_ref : (1, F2) f32   b3_ref: (1,) f32 scalar in SMEM
    # out_ref: (1, BT*C/128, 128) or (BT, C)
    f32 = jnp.float32
    bf16 = jnp.bfloat16

    BT, U, D = u_ref.shape
    BTC, DP = cfs_ref.shape
    C = BTC // BT
    S = DP - D
    EP = wcf_ref.shape[1]  # E + S

    # mean(u @ W) == mean(u) @ W  -> project only the per-batch mean.
    u_mean = jnp.mean(u_ref[...], axis=1)                                     # (BT, D)
    u_proj = jnp.dot(u_mean.astype(bf16), wu_ref[...],
                     preferred_element_type=f32)                              # (BT, E)
    # append ones so selection_sig passes unchanged through the pairing product
    u_ext = jnp.concatenate([u_proj, jnp.ones((BT, S), f32)], axis=-1)        # (BT, EP)

    cf_proj = jnp.dot(cfs_ref[...].astype(bf16), wcf_ref[...],
                      preferred_element_type=f32)                             # (BTC, EP)

    # per-batch pairing: [cfK_h * uQmean_h | cfQ_h * uKmean_h | sig]
    prod = (cf_proj.reshape(BT, C, EP) * u_ext[:, None, :]).reshape(BTC, EP)

    # fc1 (compatibility head-sum + norm + sig rows all folded into w1) + ReLU
    h1 = jnp.dot(prod.astype(bf16), w1_ref[...],
                 preferred_element_type=f32) + b1_ref[...]
    h1 = jnp.maximum(h1, 0.0)
    # fc2 + ReLU
    h2 = jnp.dot(h1.astype(bf16), w2_ref[...],
                 preferred_element_type=f32) + b2_ref[...]
    h2 = jnp.maximum(h2, 0.0)

    # fc3 (out_dim = 1): elementwise mul + lane reduction, f32
    out = jnp.sum(h2 * w3_ref[...], axis=-1) + b3_ref[0]                      # (BTC,)
    out_ref[...] = out.reshape(out_ref.shape)


def pack_params(params, sig_dim):
    """Fold heads, head-sum, norm_factor and the sig pass-through into lane-dense
    matrices; cast the MXU-side weights to bf16 (biases / fc3 stay f32)."""
    H, D, K = params["W_Q_u"].shape
    E = 2 * H * K
    S = sig_dim
    norm = 1.0 / math.sqrt(K)
    f32, bf16 = jnp.float32, jnp.bfloat16

    def flat(w):  # (H, D, K) -> (D, H*K), column j = h*K + k
        return jnp.transpose(w, (1, 0, 2)).reshape(D, H * K)

    # u side pairs with cf side: (uQ_mean, cfK) -> comp3, (uK_mean, cfQ) -> comp4
    wu = jnp.concatenate([flat(params["W_Q_u"]), flat(params["W_K_u"])], axis=1)     # (D, E)
    wcf = jnp.concatenate([flat(params["W_K_cf"]), flat(params["W_Q_cf"])], axis=1)  # (D, E)

    # extend the cf projection with an identity block: [cf | sig] @ wcf_ext = [cf_proj | sig]
    wcf_ext = jnp.zeros((D + S, E + S), f32)
    wcf_ext = wcf_ext.at[:D, :E].set(wcf)
    wcf_ext = wcf_ext.at[D:, E:].set(jnp.eye(S, dtype=f32))

    # fc1: fold head-sum + norm_factor into the compatibility rows; sig rows appended
    head_idx = jnp.tile(jnp.repeat(jnp.arange(H), K), 2)                  # (E,)
    head_sum = jax.nn.one_hot(head_idx, H, dtype=f32)                     # (E, H)
    w1c = norm * (head_sum @ params["w1"][:H])                            # (E, F1)
    w1p = jnp.concatenate([w1c, params["w1"][H:H + S]], axis=0)           # (E+S, F1)

    return (wu.astype(bf16), wcf_ext.astype(bf16), w1p.astype(bf16),
            params["w2"].astype(bf16))


def _choose_block_batch(B, block_batch):
    """Pick a batch tile: multiple of 8, <= requested, and (when the batch allows)
    keep at least 2 grid steps so v7x can shard the parallel axis over its 2 TCs."""
    ceil8 = lambda x: ((x + 7) // 8) * 8
    Bp8 = ceil8(max(B, 1))
    BT = max(8, (min(int(block_batch), Bp8) // 8) * 8)
    if Bp8 >= 16:
        while BT > 8 and -(-Bp8 // BT) < 2:
            BT = max(8, (ceil8(BT // 2) // 8) * 8)
    return BT


def insertion_forward(u, cf, selection_sig, params, *, block_batch=256):
    B, U, D = u.shape
    _, C, _ = cf.shape
    S = selection_sig.shape[-1]
    H, _, K = params["W_Q_u"].shape
    E = 2 * H * K
    EP = E + S
    DP = D + S
    F1 = params["w1"].shape[1]
    F2 = params["w2"].shape[1]

    BT = _choose_block_batch(B, block_batch)
    pad = (-B) % BT
    if pad:
        u = jnp.pad(u, ((0, pad), (0, 0), (0, 0)))
        cf = jnp.pad(cf, ((0, pad), (0, 0), (0, 0)))
        selection_sig = jnp.pad(selection_sig, ((0, pad), (0, 0), (0, 0)))
    Bp = B + pad
    nb = Bp // BT
    BTC = BT * C

    # pre-flatten + pre-concat: one contiguous 2-D block per step, no sig side-stream
    cfs = jnp.concatenate([cf, selection_sig], axis=-1).reshape(Bp * C, DP)

    wu, wcf_ext, w1p, w2 = pack_params(params, S)
    b1 = params["b1"].astype(jnp.float32)
    b2 = params["b2"].astype(jnp.float32)
    w3 = params["w3"].astype(jnp.float32)
    b3 = params["b3"].reshape(-1)[:1].astype(jnp.float32)  # (1,) scalar -> SMEM

    def fixed(shape):  # resident weights: same block every grid step
        nd = len(shape)
        return pl.BlockSpec(shape, lambda b, nd=nd: (0,) * nd)

    # lane-dense output when possible (unmasked stores); fall back to (Bp, C)
    lane_dense = (BTC % 128 == 0)
    if lane_dense:
        out_shape = jax.ShapeDtypeStruct((nb, BTC // 128, 128), jnp.float32)
        out_spec = pl.BlockSpec((1, BTC // 128, 128), lambda b: (b, 0, 0))
    else:
        out_shape = jax.ShapeDtypeStruct((Bp, C), jnp.float32)
        out_spec = pl.BlockSpec((BT, C), lambda b: (b, 0))

    grid_spec = pltpu.PrefetchScalarGridSpec(
        num_scalar_prefetch=0,
        grid=(nb,),
        in_specs=[
            pl.BlockSpec((BT, U, D), lambda b: (b, 0, 0)),
            pl.BlockSpec((BTC, DP), lambda b: (b, 0)),
            fixed((D, E)),          # packed u-side projections (bf16)
            fixed((DP, EP)),        # packed cf-side projections + sig identity (bf16)
            fixed((EP, F1)),        # fused fc1 (bf16)
            fixed((1, F1)),         # fc1 bias (f32)
            fixed((F1, F2)),        # fc2 weight (bf16)
            fixed((1, F2)),         # fc2 bias (f32)
            fixed((1, F2)),         # fc3 weight, transposed (f32)
            pl.BlockSpec(memory_space=pltpu.MemorySpace.SMEM),  # fc3 bias scalar
        ],
        out_specs=out_spec,
    )

    # Rough per-step VMEM footprint; only raise the scoped limit when a very
    # large block_batch needs it (v7x scoped default is 32 MiB of 64 MiB).
    step_bytes = 2 * (BT * U * D + BTC * DP + BTC) * 4        # dbl-buffered in/out
    step_bytes += 6 * BTC * max(EP, F1, F2) * 4               # intermediates + slack
    compiler_kwargs = dict(dimension_semantics=("parallel",))
    if step_bytes > 28 * 1024 * 1024:
        compiler_kwargs["vmem_limit_bytes"] = min(step_bytes + (8 << 20), 60 << 20)

    out = pl.pallas_call(
        insertion_kernel,
        out_shape=out_shape,
        grid_spec=grid_spec,
        compiler_params=pltpu.CompilerParams(**compiler_kwargs),
    )(u, cfs, wu, wcf_ext, w1p, b1, w2, b2, w3, b3)

    # Padded batch rows compute bias-driven garbage and are sliced off here.
    # PyTorch's .squeeze() on (B, C, 1) would also drop B or C if they were 1;
    # this kernel always returns (B, C).
    return out.reshape(Bp, C)[:B]


def init_params(key, input_dim, embed_dim):
    """Deterministic synthetic init matching the PyTorch parameter shapes/stdv."""
    H = N_HEADS
    K = embed_dim // H
    F1, F2 = 32, 32
    ks = jax.random.split(key, 10)

    def unif(k, shape, stdv):
        return jax.random.uniform(k, shape, jnp.float32, minval=-stdv, maxval=stdv)

    p = {}
    p["W_Q_u"] = unif(ks[0], (H, input_dim, K), 1.0 / math.sqrt(K))
    p["W_K_u"] = unif(ks[1], (H, input_dim, K), 1.0 / math.sqrt(K))
    p["W_Q_cf"] = unif(ks[2], (H, input_dim, K), 1.0 / math.sqrt(K))
    p["W_K_cf"] = unif(ks[3], (H, input_dim, K), 1.0 / math.sqrt(K))
    # agg MLP weights stored transposed as (in, out)
    p["w1"] = unif(ks[4], (H + 4, F1), 1.0 / math.sqrt(H + 4))
    p["b1"] = unif(ks[5], (1, F1), 1.0 / math.sqrt(F1))
    p["w2"] = unif(ks[6], (F1, F2), 1.0 / math.sqrt(F1))
    p["b2"] = unif(ks[7], (1, F2), 1.0 / math.sqrt(F2))
    p["w3"] = unif(ks[8], (1, F2), 1.0 / math.sqrt(F2))   # fc3 weight, transposed (out=1)
    p["b3"] = unif(ks[9], (1, 1), 1.0)
    return p


def insertion_reference(u, cf, sig, params):
    """Pure-JAX f32 reference mirroring the PyTorch forward."""
    H, _, K = params["W_Q_u"].shape
    norm = 1.0 / math.sqrt(K)
    uQ = jnp.einsum("bud,hdk->hbuk", u, params["W_Q_u"])
    uK = jnp.einsum("bud,hdk->hbuk", u, params["W_K_u"])
    uQ_sum = jnp.mean(uQ, axis=2)                                  # (H, B, K)
    uK_sum = jnp.mean(uK, axis=2)
    cfQ = jnp.einsum("bcd,hdk->hbck", cf, params["W_Q_cf"])
    cfK = jnp.einsum("bcd,hdk->hbck", cf, params["W_K_cf"])
    comp3 = norm * jnp.einsum("hbck,hbk->hbc", cfK, uQ_sum)
    comp4 = norm * jnp.einsum("hbck,hbk->hbc", cfQ, uK_sum)
    comp_cf = comp3 + comp4                                        # (H, B, C)
    x = jnp.concatenate([jnp.transpose(comp_cf, (1, 2, 0)), sig], axis=-1)  # (B, C, H+4)
    # dropout p=0 in the module -> identity
    h1 = jax.nn.relu(x @ params["w1"] + params["b1"][0])
    h2 = jax.nn.relu(h1 @ params["w2"] + params["b2"][0])
    out = h2 @ params["w3"].T + params["b3"][0]                    # (B, C, 1)
    return out[..., 0]


if __name__ == "__main__":
    B, U, C = 128, 8, 8
    input_dim = 32
    embed_dim = 32  # key_dim = val_dim = embed_dim // 4 = 8

    key = jax.random.PRNGKey(0)
    k_u, k_cf, k_sig, k_p = jax.random.split(key, 4)
    u = jax.random.normal(k_u, (B, U, input_dim), jnp.float32)
    cf = jax.random.normal(k_cf, (B, C, input_dim), jnp.float32)
    selection_sig = jax.random.normal(k_sig, (B, C, 4), jnp.float32)
    params = init_params(k_p, input_dim, embed_dim)

    out = insertion_forward(u, cf, selection_sig, params)  # BT=64 -> nb=2 (megacore-friendly)
    out = jax.block_until_ready(out)

    ref = insertion_reference(u, cf, selection_sig, params)
    assert out.shape == (B, C)
    # MXU operands are bf16 (f32 accumulate), so compare against the f32 reference
    # with a bf16-appropriate tolerance.
    assert jnp.allclose(out, ref, rtol=2e-2, atol=2e-2), "mismatch vs. JAX reference"

    print("KERNEL_OK")
</pallas_src>

<mosaic_0001>
module attributes {stable_mosaic.version = 11 : i64} {
  func.func @insertion_kernel(%arg0: i32, %arg1: memref<64x8x32xf32, #tpu.memory_space<vmem>>, %arg2: memref<512x36xf32, #tpu.memory_space<vmem>>, %arg3: memref<32x64xbf16, #tpu.memory_space<vmem>>, %arg4: memref<36x68xbf16, #tpu.memory_space<vmem>>, %arg5: memref<68x32xbf16, #tpu.memory_space<vmem>>, %arg6: memref<1x32xf32, #tpu.memory_space<vmem>>, %arg7: memref<32x32xbf16, #tpu.memory_space<vmem>>, %arg8: memref<1x32xf32, #tpu.memory_space<vmem>>, %arg9: memref<1x32xf32, #tpu.memory_space<vmem>>, %arg10: memref<1xf32, #tpu.memory_space<smem>>, %arg11: memref<1x4x128xf32, #tpu.memory_space<vmem>>) attributes {dimension_semantics = [#tpu.dimension_semantics<parallel>], iteration_bounds = array<i64: 2>, scalar_prefetch = 0 : i64, scratch_operands = 0 : i64, tpu.core_type = #tpu.core_type<tc>, window_params = [{transform_indices = @transform_0, window_bounds = array<i64: 64, 8, 32>}, {transform_indices = @transform_1, window_bounds = array<i64: 512, 36>}, {pipeline_mode = #tpu.pipeline_mode<synchronous>, transform_indices = @transform_2, window_bounds = array<i64: 32, 64>}, {pipeline_mode = #tpu.pipeline_mode<synchronous>, transform_indices = @transform_3, window_bounds = array<i64: 36, 68>}, {pipeline_mode = #tpu.pipeline_mode<synchronous>, transform_indices = @transform_4, window_bounds = array<i64: 68, 32>}, {pipeline_mode = #tpu.pipeline_mode<synchronous>, transform_indices = @transform_5, window_bounds = array<i64: 1, 32>}, {pipeline_mode = #tpu.pipeline_mode<synchronous>, transform_indices = @transform_6, window_bounds = array<i64: 32, 32>}, {pipeline_mode = #tpu.pipeline_mode<synchronous>, transform_indices = @transform_7, window_bounds = array<i64: 1, 32>}, {pipeline_mode = #tpu.pipeline_mode<synchronous>, transform_indices = @transform_8, window_bounds = array<i64: 1, 32>}, {transform_indices = @transform_9, window_bounds = array<i64: 1>}, {transform_indices = @transform_10, window_bounds = array<i64: 1, 4, 128>}]} {
    %c0 = arith.constant 0 : index
    %c0_0 = arith.constant 0 : index
    %c0_1 = arith.constant 0 : index
    %0 = vector.load %arg1[%c0, %c0_0, %c0_1] : memref<64x8x32xf32, #tpu.memory_space<vmem>>, vector<64x8x32xf32>
    %cst = arith.constant dense<0.000000e+00> : vector<64x32xf32>
    %1 = vector.multi_reduction <add>, %0, %cst [1] : vector<64x8x32xf32> to vector<64x32xf32>
    %cst_2 = arith.constant 8.000000e+00 : f32
    %2 = vector.broadcast %cst_2 : f32 to vector<64x32xf32>
    %3 = arith.divf %1, %2 : vector<64x32xf32>
    %4 = arith.truncf %3 : vector<64x32xf32> to vector<64x32xbf16>
    %c0_3 = arith.constant 0 : index
    %c0_4 = arith.constant 0 : index
    %5 = vector.load %arg3[%c0_3, %c0_4] : memref<32x64xbf16, #tpu.memory_space<vmem>>, vector<32x64xbf16>
    %cst_5 = arith.constant dense<0.000000e+00> : vector<64x64xf32>
    %6 = tpu.matmul %4, %5, %cst_5 {dimension_numbers = #tpu.dot_dimension_numbers<[1], [0], [0], [1], [0, 0, 1, 1], [], []>} : vector<64x32xbf16>, vector<32x64xbf16>, vector<64x64xf32> -> vector<64x64xf32>
    %cst_6 = arith.constant 1.000000e+00 : f32
    %7 = vector.broadcast %cst_6 : f32 to vector<64x4xf32>
    %8 = tpu.concatenate %6, %7 in 1 : vector<64x64xf32>, vector<64x4xf32> -> vector<64x68xf32>
    %c0_7 = arith.constant 0 : index
    %c0_8 = arith.constant 0 : index
    %9 = vector.load %arg2[%c0_7, %c0_8] : memref<512x36xf32, #tpu.memory_space<vmem>>, vector<512x36xf32>
    %10 = arith.truncf %9 : vector<512x36xf32> to vector<512x36xbf16>
    %c0_9 = arith.constant 0 : index
    %c0_10 = arith.constant 0 : index
    %11 = vector.load %arg4[%c0_9, %c0_10] : memref<36x68xbf16, #tpu.memory_space<vmem>>, vector<36x68xbf16>
    %cst_11 = arith.constant dense<0.000000e+00> : vector<512x68xf32>
    %12 = tpu.matmul %10, %11, %cst_11 {dimension_numbers = #tpu.dot_dimension_numbers<[1], [0], [0], [1], [0, 0, 1, 1], [], []>} : vector<512x36xbf16>, vector<36x68xbf16>, vector<512x68xf32> -> vector<512x68xf32>
    %13 = vector.shape_cast %12 : vector<512x68xf32> to vector<64x8x68xf32>
    %14 = vector.shape_cast %8 : vector<64x68xf32> to vector<64x1x68xf32>
    %15 = vector.broadcast %14 : vector<64x1x68xf32> to vector<64x8x68xf32>
    %16 = arith.mulf %13, %15 : vector<64x8x68xf32>
    %17 = vector.shape_cast %16 : vector<64x8x68xf32> to vector<512x68xf32>
    %18 = arith.truncf %17 : vector<512x68xf32> to vector<512x68xbf16>
    %c0_12 = arith.constant 0 : index
    %c0_13 = arith.constant 0 : index
    %19 = vector.load %arg5[%c0_12, %c0_13] : memref<68x32xbf16, #tpu.memory_space<vmem>>, vector<68x32xbf16>
    %cst_14 = arith.constant dense<0.000000e+00> : vector<512x32xf32>
    %20 = tpu.matmul %18, %19, %cst_14 {dimension_numbers = #tpu.dot_dimension_numbers<[1], [0], [0], [1], [0, 0, 1, 1], [], []>} : vector<512x68xbf16>, vector<68x32xbf16>, vector<512x32xf32> -> vector<512x32xf32>
    %c0_15 = arith.constant 0 : index
    %c0_16 = arith.constant 0 : index
    %21 = vector.load %arg6[%c0_15, %c0_16] : memref<1x32xf32, #tpu.memory_space<vmem>>, vector<1x32xf32>
    %22 = vector.broadcast %21 : vector<1x32xf32> to vector<512x32xf32>
    %23 = arith.addf %20, %22 : vector<512x32xf32>
    %cst_17 = arith.constant 0.000000e+00 : f32
    %24 = vector.broadcast %cst_17 : f32 to vector<512x32xf32>
    %25 = arith.maximumf %23, %24 : vector<512x32xf32>
    %26 = arith.truncf %25 : vector<512x32xf32> to vector<512x32xbf16>
    %c0_18 = arith.constant 0 : index
    %c0_19 = arith.constant 0 : index
    %27 = vector.load %arg7[%c0_18, %c0_19] : memref<32x32xbf16, #tpu.memory_space<vmem>>, vector<32x32xbf16>
    %cst_20 = arith.constant dense<0.000000e+00> : vector<512x32xf32>
    %28 = tpu.matmul %26, %27, %cst_20 {dimension_numbers = #tpu.dot_dimension_numbers<[1], [0], [0], [1], [0, 0, 1, 1], [], []>} : vector<512x32xbf16>, vector<32x32xbf16>, vector<512x32xf32> -> vector<512x32xf32>
    %c0_21 = arith.constant 0 : index
    %c0_22 = arith.constant 0 : index
    %29 = vector.load %arg8[%c0_21, %c0_22] : memref<1x32xf32, #tpu.memory_space<vmem>>, vector<1x32xf32>
    %30 = vector.broadcast %29 : vector<1x32xf32> to vector<512x32xf32>
    %31 = arith.addf %28, %30 : vector<512x32xf32>
    %cst_23 = arith.constant 0.000000e+00 : f32
    %32 = vector.broadcast %cst_23 : f32 to vector<512x32xf32>
    %33 = arith.maximumf %31, %32 : vector<512x32xf32>
    %c0_24 = arith.constant 0 : index
    %c0_25 = arith.constant 0 : index
    %34 = vector.load %arg9[%c0_24, %c0_25] : memref<1x32xf32, #tpu.memory_space<vmem>>, vector<1x32xf32>
    %35 = vector.broadcast %34 : vector<1x32xf32> to vector<512x32xf32>
    %36 = arith.mulf %33, %35 : vector<512x32xf32>
    %cst_26 = arith.constant dense<0.000000e+00> : vector<512xf32>
    %37 = vector.multi_reduction <add>, %36, %cst_26 [1] : vector<512x32xf32> to vector<512xf32>
    %c0_27 = arith.constant 0 : index
    %38 = memref.load %arg10[%c0_27] : memref<1xf32, #tpu.memory_space<smem>>
    %39 = vector.broadcast %38 : f32 to vector<512xf32>
    %40 = arith.addf %37, %39 : vector<512xf32>
    %41 = vector.shape_cast %40 : vector<512xf32> to vector<1x4x128xf32>
    %c0_28 = arith.constant 0 : index
    %c0_29 = arith.constant 0 : index
    %c0_30 = arith.constant 0 : index
    %42 = vector.load %arg11[%c0_28, %c0_29, %c0_30] : memref<1x4x128xf32, #tpu.memory_space<vmem>>, vector<1x4x128xf32>
    tpu.vector_store %arg11[%c0_28, %c0_29, %c0_30], %41 {strides = array<i32>} : memref<1x4x128xf32, #tpu.memory_space<vmem>>, vector<1x4x128xf32>,
    return
  }
  func.func @transform_0(%arg0: i32) -> (i32, i32, i32) {
    %c0_i32 = arith.constant 0 : i32
    %c0_i32_0 = arith.constant 0 : i32
    %c0_i32_1 = arith.constant 0 : i32
    return %arg0, %c0_i32, %c0_i32_0 : i32, i32, i32
  }
  func.func @transform_1(%arg0: i32) -> (i32, i32) {
    %c0_i32 = arith.constant 0 : i32
    %c0_i32_0 = arith.constant 0 : i32
    return %arg0, %c0_i32 : i32, i32
  }
  func.func @transform_2(%arg0: i32) -> (i32, i32) {
    %c0_i32 = arith.constant 0 : i32
    %c0_i32_0 = arith.constant 0 : i32
    %c0_i32_1 = arith.constant 0 : i32
    return %c0_i32, %c0_i32_0 : i32, i32
  }
  func.func @transform_3(%arg0: i32) -> (i32, i32) {
    %c0_i32 = arith.constant 0 : i32
    %c0_i32_0 = arith.constant 0 : i32
    %c0_i32_1 = arith.constant 0 : i32
    return %c0_i32, %c0_i32_0 : i32, i32
  }
  func.func @transform_4(%arg0: i32) -> (i32, i32) {
    %c0_i32 = arith.constant 0 : i32
    %c0_i32_0 = arith.constant 0 : i32
    %c0_i32_1 = arith.constant 0 : i32
    return %c0_i32, %c0_i32_0 : i32, i32
  }
  func.func @transform_5(%arg0: i32) -> (i32, i32) {
    %c0_i32 = arith.constant 0 : i32
    %c0_i32_0 = arith.constant 0 : i32
    %c0_i32_1 = arith.constant 0 : i32
    return %c0_i32, %c0_i32_0 : i32, i32
  }
  func.func @transform_6(%arg0: i32) -> (i32, i32) {
    %c0_i32 = arith.constant 0 : i32
    %c0_i32_0 = arith.constant 0 : i32
    %c0_i32_1 = arith.constant 0 : i32
    return %c0_i32, %c0_i32_0 : i32, i32
  }
  func.func @transform_7(%arg0: i32) -> (i32, i32) {
    %c0_i32 = arith.constant 0 : i32
    %c0_i32_0 = arith.constant 0 : i32
    %c0_i32_1 = arith.constant 0 : i32
    return %c0_i32, %c0_i32_0 : i32, i32
  }
  func.func @transform_8(%arg0: i32) -> (i32, i32) {
    %c0_i32 = arith.constant 0 : i32
    %c0_i32_0 = arith.constant 0 : i32
    %c0_i32_1 = arith.constant 0 : i32
    return %c0_i32, %c0_i32_0 : i32, i32
  }
  func.func @transform_9(%arg0: i32) -> i32 {
    %c0_i32 = arith.constant 0 : i32
    %c0_i32_0 = arith.constant 0 : i32
    return %c0_i32 : i32
  }
  func.func @transform_10(%arg0: i32) -> (i32, i32, i32) {
    %c0_i32 = arith.constant 0 : i32
    %c0_i32_0 = arith.constant 0 : i32
    %c0_i32_1 = arith.constant 0 : i32
    return %arg0, %c0_i32, %c0_i32_0 : i32, i32, i32
  }
}

</mosaic_0001>

<llo_original>
// kernel: tpu_custom_call.1
$region0: #{tpu_custom_call.1}
  #allocation0 [shape = 'u32[]', space=smem, size = 0x4, offset = 0x4, fixed_abs, tag = 'smem constant byte address 0x4 - core index']
  #allocation1 [shape = 'u32[144,128]{1,0:T(1,128)}', space=vmem, size = 0x12000, scoped, tag = 'internal scratch']
  #allocation2 [shape = 'f32[1]{0:T(128)S(6)}', space=smem, size = 0x200, scoped, tag = 'scoped memory for tpu_custom_call.1']
  %s0 = inlined_call_operand.vmem [shape: f32[128,8,32], index: 0, kind: input, shape index: {}]
  %s1 = inlined_call_operand.vmem [shape: f32[1024,36], index: 1, kind: input, shape index: {}]
  %s2 = inlined_call_operand.vmem [shape: bf16[32,64], index: 2, kind: input, shape index: {}]
  %s3 = inlined_call_operand.vmem [shape: bf16[36,68], index: 3, kind: input, shape index: {}]
  %s4 = inlined_call_operand.vmem [shape: bf16[68,32], index: 4, kind: input, shape index: {}]
  %s5 = inlined_call_operand.vmem [shape: f32[1,32], index: 5, kind: input, shape index: {}]
  %s6 = inlined_call_operand.vmem [shape: bf16[32,32], index: 6, kind: input, shape index: {}]
  %s7 = inlined_call_operand.vmem [shape: f32[1,32], index: 7, kind: input, shape index: {}]
  %s8 = inlined_call_operand.vmem [shape: f32[1,32], index: 8, kind: input, shape index: {}]
  %s9 = inlined_call_operand.<no memory space> [shape: f32[1], index: 9, kind: input, shape index: {}]
  %s10 = inlined_call_operand.hbm [shape: f32[2,4,128], index: 10, kind: output, shape index: {}]
  %s11 = sld [smem:[#allocation0]]
  $region73: #{tpu_custom_call.1} parent=0
    _
  %s13 = ssub.s32 1, %s11
  %s14 = scalar_select 0, %s13, %s11
  %15 = sst [smem:[#allocation2]] %s9
  $region1: #{tpu_custom_call.1} parent=0
    #allocation3 [shape = 'u8[4096]{0}', space=vmem, size = 0x1000, scoped, tag = 'output window, operand 0']
    #allocation4 [shape = 's32[2]{0}', space=sflag, size = 0x8, scoped, tag = 'scoped memory for tpu_custom_call.1']
    %16 = vsyncpa [#allocation4], 0
    %s17 = scalar_lea.sflag [#allocation4], 1
    %18 = vsyncpa %s17, 0
    loop: start=0, step=1, limit=4
    $region2: #{tpu_custom_call.1} parent=1 // loop_pre_header
      _
    $region3: #{tpu_custom_call.1} parent=1 // loop_header
      %s20 = sphi 0, %s24
      %p21 = scmp.ge.s32.totalorder %s20, 4
      %s30 = sphi 0, %s32
      %s33 = sphi 0, %s30
      %s34 = sphi 0, %s33
      %s50 = sphi 0, %s34
      %s56 = sphi 0, %s58
      %s59 = sphi 0, %s56
      %s60 = sphi 0, %s59
      %s76 = sphi 0, %s60
      %s80 = sphi 0, %s80
      %s82 = sphi 0, %s80
      %s83 = sphi 0, %s82
      %s97 = sphi 0, %s83
      %s101 = sphi 0, %s101
      %s103 = sphi 0, %s101
      %s104 = sphi 0, %s103
      %s118 = sphi 0, %s104
      %s122 = sphi 0, %s122
      %s124 = sphi 0, %s122
      %s125 = sphi 0, %s124
      %s139 = sphi 0, %s125
      %s143 = sphi 0, %s143
      %s145 = sphi 0, %s143
      %s146 = sphi 0, %s145
      %s160 = sphi 0, %s146
      %s164 = sphi 0, %s164
      %s166 = sphi 0, %s164
      %s167 = sphi 0, %s166
      %s181 = sphi 0, %s167
      %s185 = sphi 0, %s185
      %s187 = sphi 0, %s185
      %s188 = sphi 0, %s187
      %s202 = sphi 0, %s188
      %s206 = sphi 0, %s206
      %s208 = sphi 0, %s206
      %s209 = sphi 0, %s208
      %s223 = sphi 0, %s209
      %s227 = sphi 0, %s227
      %s229 = sphi 0, %s227
      %s230 = sphi 0, %s229
      %s244 = sphi 0, %s230
      %s250 = sphi 0, %s252
      %s253 = sphi 0, %s250
      %s254 = sphi 0, %s253
      %s270 = sphi 0, %s254
    $region4: #{tpu_custom_call.1} parent=1 // loop_header_branch
      %23 = sbr.rel (%p21) target = $region8
    $region5: #{tpu_custom_call.1} parent=1 // loop_body
      %s25 = ssub.s32 %s20, 1
      %s26 = ssub.s32 %s20, 2
      %s27 = sadd.s32 %s20, 1
      %s28 = ssub.s32 %s20, %s27
      %p29 = scmp.eq.s32.totalorder %s28, 0
      %s31 = sadd.s32 %s30, 1
      %s32 = scalar_select %p29, %s30, %s31
      %p35 = pneg %p29
      %p36 = scmp.eq.s32.totalorder %s20, 1
      %p37 = por %p35, %p36
      %p38 = scmp.ne.s32.totalorder %s30, %s33
      %p39 = scmp.eq.s32.totalorder %s20, 0
      %p40 = por %p38, %p39
      %p41 = scmp.ne.s32.totalorder %s30, %s33
      %p42 = scmp.eq.s32.totalorder %s25, 1
      %p43 = por %p41, %p42
      %p44 = scmp.ne.s32.totalorder %s33, %s34
      %p45 = scmp.eq.s32.totalorder %s25, 0
      %p46 = por %p44, %p45
      %p47 = scmp.ne.s32.totalorder %s33, %s34
      %p48 = scmp.eq.s32.totalorder %s26, 1
      %p49 = por %p47, %p48
      %p51 = scmp.ne.s32.totalorder %s34, %s50
      %p52 = scmp.eq.s32.totalorder %s26, 0
      %p53 = por %p51, %p52
      %s54 = ssub.s32 %s20, %s27
      %p55 = scmp.eq.s32.totalorder %s54, 0
      %s57 = sadd.s32 %s56, 1
      %s58 = scalar_select %p55, %s56, %s57
      %p61 = pneg %p55
      %p62 = scmp.eq.s32.totalorder %s20, 1
      %p63 = por %p61, %p62
      %p64 = scmp.ne.s32.totalorder %s56, %s59
      %p65 = scmp.eq.s32.totalorder %s20, 0
      %p66 = por %p64, %p65
      %p67 = scmp.ne.s32.totalorder %s56, %s59
      %p68 = scmp.eq.s32.totalorder %s25, 1
      %p69 = por %p67, %p68
      %p70 = scmp.ne.s32.totalorder %s59, %s60
      %p71 = scmp.eq.s32.totalorder %s25, 0
      %p72 = por %p70, %p71
      %p73 = scmp.ne.s32.totalorder %s59, %s60
      %p74 = scmp.eq.s32.totalorder %s26, 1
      %p75 = por %p73, %p74
      %p77 = scmp.ne.s32.totalorder %s60, %s76
      %p78 = scmp.eq.s32.totalorder %s26, 0
      %p79 = por %p77, %p78
      %s81 = sadd.s32 %s80, 1
      %p84 = scmp.eq.s32.totalorder %s20, 1
      %p85 = scmp.ne.s32.totalorder %s80, %s82
      %p86 = scmp.eq.s32.totalorder %s20, 0
      %p87 = por %p85, %p86
      %p88 = scmp.ne.s32.totalorder %s80, %s82
      %p89 = scmp.eq.s32.totalorder %s25, 1
      %p90 = por %p88, %p89
      %p91 = scmp.ne.s32.totalorder %s82, %s83
      %p92 = scmp.eq.s32.totalorder %s25, 0
      %p93 = por %p91, %p92
      %p94 = scmp.ne.s32.totalorder %s82, %s83
      %p95 = scmp.eq.s32.totalorder %s26, 1
      %p96 = por %p94, %p95
      %p98 = scmp.ne.s32.totalorder %s83, %s97
      %p99 = scmp.eq.s32.totalorder %s26, 0
      %p100 = por %p98, %p99
      %s102 = sadd.s32 %s101, 1
      %p105 = scmp.eq.s32.totalorder %s20, 1
      %p106 = scmp.ne.s32.totalorder %s101, %s103
      %p107 = scmp.eq.s32.totalorder %s20, 0
      %p108 = por %p106, %p107
      %p109 = scmp.ne.s32.totalorder %s101, %s103
      %p110 = scmp.eq.s32.totalorder %s25, 1
      %p111 = por %p109, %p110
      %p112 = scmp.ne.s32.totalorder %s103, %s104
      %p113 = scmp.eq.s32.totalorder %s25, 0
      %p114 = por %p112, %p113
      %p115 = scmp.ne.s32.totalorder %s103, %s104
      %p116 = scmp.eq.s32.totalorder %s26, 1
      %p117 = por %p115, %p116
      %p119 = scmp.ne.s32.totalorder %s104, %s118
      %p120 = scmp.eq.s32.totalorder %s26, 0
      %p121 = por %p119, %p120
      %s123 = sadd.s32 %s122, 1
      %p126 = scmp.eq.s32.totalorder %s20, 1
      %p127 = scmp.ne.s32.totalorder %s122, %s124
      %p128 = scmp.eq.s32.totalorder %s20, 0
      %p129 = por %p127, %p128
      %p130 = scmp.ne.s32.totalorder %s122, %s124
      %p131 = scmp.eq.s32.totalorder %s25, 1
      %p132 = por %p130, %p131
      %p133 = scmp.ne.s32.totalorder %s124, %s125
      %p134 = scmp.eq.s32.totalorder %s25, 0
      %p135 = por %p133, %p134
      %p136 = scmp.ne.s32.totalorder %s124, %s125
      %p137 = scmp.eq.s32.totalorder %s26, 1
      %p138 = por %p136, %p137
      %p140 = scmp.ne.s32.totalorder %s125, %s139
      %p141 = scmp.eq.s32.totalorder %s26, 0
      %p142 = por %p140, %p141
      %s144 = sadd.s32 %s143, 1
      %p147 = scmp.eq.s32.totalorder %s20, 1
      %p148 = scmp.ne.s32.totalorder %s143, %s145
      %p149 = scmp.eq.s32.totalorder %s20, 0
      %p150 = por %p148, %p149
      %p151 = scmp.ne.s32.totalorder %s143, %s145
      %p152 = scmp.eq.s32.totalorder %s25, 1
      %p153 = por %p151, %p152
      %p154 = scmp.ne.s32.totalorder %s145, %s146
      %p155 = scmp.eq.s32.totalorder %s25, 0
      %p156 = por %p154, %p155
      %p157 = scmp.ne.s32.totalorder %s145, %s146
      %p158 = scmp.eq.s32.totalorder %s26, 1
      %p159 = por %p157, %p158
      %p161 = scmp.ne.s32.totalorder %s146, %s160
      %p162 = scmp.eq.s32.totalorder %s26, 0
      %p163 = por %p161, %p162
      %s165 = sadd.s32 %s164, 1
      %p168 = scmp.eq.s32.totalorder %s20, 1
      %p169 = scmp.ne.s32.totalorder %s164, %s166
      %p170 = scmp.eq.s32.totalorder %s20, 0
      %p171 = por %p169, %p170
      %p172 = scmp.ne.s32.totalorder %s164, %s166
      %p173 = scmp.eq.s32.totalorder %s25, 1
      %p174 = por %p172, %p173
      %p175 = scmp.ne.s32.totalorder %s166, %s167
      %p176 = scmp.eq.s32.totalorder %s25, 0
      %p177 = por %p175, %p176
      %p178 = scmp.ne.s32.totalorder %s166, %s167
      %p179 = scmp.eq.s32.totalorder %s26, 1
      %p180 = por %p178, %p179
      %p182 = scmp.ne.s32.totalorder %s167, %s181
      %p183 = scmp.eq.s32.totalorder %s26, 0
      %p184 = por %p182, %p183
      %s186 = sadd.s32 %s185, 1
      %p189 = scmp.eq.s32.totalorder %s20, 1
      %p190 = scmp.ne.s32.totalorder %s185, %s187
      %p191 = scmp.eq.s32.totalorder %s20, 0
      %p192 = por %p190, %p191
      %p193 = scmp.ne.s32.totalorder %s185, %s187
      %p194 = scmp.eq.s32.totalorder %s25, 1
      %p195 = por %p193, %p194
      %p196 = scmp.ne.s32.totalorder %s187, %s188
      %p197 = scmp.eq.s32.totalorder %s25, 0
      %p198 = por %p196, %p197
      %p199 = scmp.ne.s32.totalorder %s187, %s188
      %p200 = scmp.eq.s32.totalorder %s26, 1
      %p201 = por %p199, %p200
      %p203 = scmp.ne.s32.totalorder %s188, %s202
      %p204 = scmp.eq.s32.totalorder %s26, 0
      %p205 = por %p203, %p204
      %s207 = sadd.s32 %s206, 1
      %p210 = scmp.eq.s32.totalorder %s20, 1
      %p211 = scmp.ne.s32.totalorder %s206, %s208
      %p212 = scmp.eq.s32.totalorder %s20, 0
      %p213 = por %p211, %p212
      %p214 = scmp.ne.s32.totalorder %s206, %s208
      %p215 = scmp.eq.s32.totalorder %s25, 1
      %p216 = por %p214, %p215
      %p217 = scmp.ne.s32.totalorder %s208, %s209
      %p218 = scmp.eq.s32.totalorder %s25, 0
      %p219 = por %p217, %p218
      %p220 = scmp.ne.s32.totalorder %s208, %s209
      %p221 = scmp.eq.s32.totalorder %s26, 1
      %p222 = por %p220, %p221
      %p224 = scmp.ne.s32.totalorder %s209, %s223
      %p225 = scmp.eq.s32.totalorder %s26, 0
      %p226 = por %p224, %p225
      %s228 = sadd.s32 %s227, 1
      %p231 = scmp.eq.s32.totalorder %s20, 1
      %p232 = scmp.ne.s32.totalorder %s227, %s229
      %p233 = scmp.eq.s32.totalorder %s20, 0
      %p234 = por %p232, %p233
      %p235 = scmp.ne.s32.totalorder %s227, %s229
      %p236 = scmp.eq.s32.totalorder %s25, 1
      %p237 = por %p235, %p236
      %p238 = scmp.ne.s32.totalorder %s229, %s230
      %p239 = scmp.eq.s32.totalorder %s25, 0
      %p240 = por %p238, %p239
      %p241 = scmp.ne.s32.totalorder %s229, %s230
      %p242 = scmp.eq.s32.totalorder %s26, 1
      %p243 = por %p241, %p242
      %p245 = scmp.ne.s32.totalorder %s230, %s244
      %p246 = scmp.eq.s32.totalorder %s26, 0
      %p247 = por %p245, %p246
      %s248 = ssub.s32 %s20, %s27
      %p249 = scmp.eq.s32.totalorder %s248, 0
      %s251 = sadd.s32 %s250, 1
      %s252 = scalar_select %p249, %s250, %s251
      %p255 = pneg %p249
      %p256 = scmp.eq.s32.totalorder %s20, 1
      %p257 = por %p255, %p256
      %p258 = scmp.ne.s32.totalorder %s250, %s253
      %p259 = scmp.eq.s32.totalorder %s20, 0
      %p260 = por %p258, %p259
      %p261 = scmp.ne.s32.totalorder %s250, %s253
      %p262 = scmp.eq.s32.totalorder %s25, 1
      %p263 = por %p261, %p262
      %p264 = scmp.ne.s32.totalorder %s253, %s254
      %p265 = scmp.eq.s32.totalorder %s25, 0
      %p266 = por %p264, %p265
      %p267 = scmp.ne.s32.totalorder %s253, %s254
      %p268 = scmp.eq.s32.totalorder %s26, 1
      %p269 = por %p267, %p268
      %p271 = scmp.ne.s32.totalorder %s254, %s270
      %p272 = scmp.eq.s32.totalorder %s26, 0
      %p273 = por %p271, %p272
      %p274 = scmp.le.s32.totalorder 1, %s20
      %p275 = scmp.lt.s32.totalorder %s20, 3
      %p276 = pnand %p274, %p275
      %p277 = pneg %p276
      // Predicated region
      $region9: #{tpu_custom_call.1} parent=5 // pred_check
        _
      $region10: #{tpu_custom_call.1} parent=5 // pred_check_branch
        %279 = sbr.rel (%p276) target = $region12
      $region11: #{tpu_custom_call.1} parent=5 // pred_region
        %s280 = ssub.s32 %s20, 1
        // Predicated region
        $region13: #{tpu_custom_call.1} parent=11 // pred_check
          %p281 = pneg %p93
        $region14: #{tpu_custom_call.1} parent=11 // pred_check_branch
          %283 = sbr.rel (%p281) target = $region16
        $region15: #{tpu_custom_call.1} parent=11 // pred_region
          _
        $region16: #{tpu_custom_call.1} parent=11 // pred_fallthru
          _
        // Predicated region
        $region17: #{tpu_custom_call.1} parent=11 // pred_check
          %p284 = pneg %p114
        $region18: #{tpu_custom_call.1} parent=11 // pred_check_branch
          %286 = sbr.rel (%p284) target = $region20
        $region19: #{tpu_custom_call.1} parent=11 // pred_region
          _
        $region20: #{tpu_custom_call.1} parent=11 // pred_fallthru
          _
        // Predicated region
        $region21: #{tpu_custom_call.1} parent=11 // pred_check
          %p287 = pneg %p135
        $region22: #{tpu_custom_call.1} parent=11 // pred_check_branch
          %289 = sbr.rel (%p287) target = $region24
        $region23: #{tpu_custom_call.1} parent=11 // pred_region
          _
        $region24: #{tpu_custom_call.1} parent=11 // pred_fallthru
          _
        // Predicated region
        $region25: #{tpu_custom_call.1} parent=11 // pred_check
          %p290 = pneg %p156
        $region26: #{tpu_custom_call.1} parent=11 // pred_check_branch
          %292 = sbr.rel (%p290) target = $region28
        $region27: #{tpu_custom_call.1} parent=11 // pred_region
          _
        $region28: #{tpu_custom_call.1} parent=11 // pred_fallthru
          _
        // Predicated region
        $region29: #{tpu_custom_call.1} parent=11 // pred_check
          %p293 = pneg %p177
        $region30: #{tpu_custom_call.1} parent=11 // pred_check_branch
          %295 = sbr.rel (%p293) target = $region32
        $region31: #{tpu_custom_call.1} parent=11 // pred_region
          _
        $region32: #{tpu_custom_call.1} parent=11 // pred_fallthru
          _
        // Predicated region
        $region33: #{tpu_custom_call.1} parent=11 // pred_check
          %p296 = pneg %p198
        $region34: #{tpu_custom_call.1} parent=11 // pred_check_branch
          %298 = sbr.rel (%p296) target = $region36
        $region35: #{tpu_custom_call.1} parent=11 // pred_region
          _
        $region36: #{tpu_custom_call.1} parent=11 // pred_fallthru
          _
        // Predicated region
        $region37: #{tpu_custom_call.1} parent=11 // pred_check
          %p299 = pneg %p219
        $region38: #{tpu_custom_call.1} parent=11 // pred_check_branch
          %301 = sbr.rel (%p299) target = $region40
        $region39: #{tpu_custom_call.1} parent=11 // pred_region
          _
        $region40: #{tpu_custom_call.1} parent=11 // pred_fallthru
          _
        // Predicated region
        $region41: #{tpu_custom_call.1} parent=11 // pred_check
          %p302 = pneg %p240
        $region42: #{tpu_custom_call.1} parent=11 // pred_check_branch
          %304 = sbr.rel (%p302) target = $region44
        $region43: #{tpu_custom_call.1} parent=11 // pred_region
          _
        $region44: #{tpu_custom_call.1} parent=11 // pred_fallthru
          _
      $region12: #{tpu_custom_call.1} parent=5 // pred_fallthru
        _
      %p305 = scmp.lt.s32.totalorder %s20, 2
      // Predicated region
      $region45: #{tpu_custom_call.1} parent=5 // pred_check
        %p306 = pneg %p305
      $region46: #{tpu_custom_call.1} parent=5 // pred_check_branch
        %308 = sbr.rel (%p306) target = $region48
      $region47: #{tpu_custom_call.1} parent=5 // pred_region
        // Predicated region
        $region49: #{tpu_custom_call.1} parent=47 // pred_check
          %p309 = pneg %p40
        $region50: #{tpu_custom_call.1} parent=47 // pred_check_branch
          %311 = sbr.rel (%p309) target = $region52
        $region51: #{tpu_custom_call.1} parent=47 // pred_region
          %s312 = smul.u32 64, %s20
          %p313 = scmp.lt.s32.totalorder %s312, 127
          %s314 = scalar_select %p313, %s312, 127
          %s315 = smul.addr %s314, 8
          %s316 = scalar_lea.vmem %s0, %s315
          %s317 = smul.u32 64, %s20
        $region52: #{tpu_custom_call.1} parent=47 // pred_fallthru
          _
        // Predicated region
        $region53: #{tpu_custom_call.1} parent=47 // pred_check
          %p318 = pneg %p66
        $region54: #{tpu_custom_call.1} parent=47 // pred_check_branch
          %320 = sbr.rel (%p318) target = $region56
        $region55: #{tpu_custom_call.1} parent=47 // pred_region
          %s321 = smul.u32 64, %s20
          %p322 = scmp.lt.s32.totalorder %s321, 127
          %s323 = scalar_select %p322, %s321, 127
          %s324 = smul.addr %s323, 8
          %s325 = scalar_lea.vmem %s1, %s324
          %s326 = smul.u32 64, %s20
        $region56: #{tpu_custom_call.1} parent=47 // pred_fallthru
          _
      $region48: #{tpu_custom_call.1} parent=5 // pred_fallthru
        _
      %p327 = scmp.le.s32.totalorder 1, %s20
      %p328 = scmp.lt.s32.totalorder %s20, 3
      %p329 = pnand %p327, %p328
      %p330 = pneg %p329
      // Predicated region
      $region57: #{tpu_custom_call.1} parent=5 // pred_check
        _
      $region58: #{tpu_custom_call.1} parent=5 // pred_check_branch
        %332 = sbr.rel (%p329) target = $region60
      $region59: #{tpu_custom_call.1} parent=5 // pred_region
        %s333 = ssub.s32 %s20, 1
        %s334 = smul.u32 64, %s25
        %p335 = scmp.lt.s32.totalorder %s334, 127
        %s336 = scalar_select %p335, %s334, 127
        %s337 = smul.addr %s336, 8
        %s338 = scalar_lea.vmem %s0, %s337
        %p339 = pneg %p46
        %p340 = pneg %p43
        %s341 = smul.u32 64, %s25
        %p342 = scmp.lt.s32.totalorder %s341, 127
        %s343 = scalar_select %p342, %s341, 127
        %s344 = smul.addr %s343, 8
        %s345 = scalar_lea.vmem %s1, %s344
        %p346 = pneg %p72
        %p347 = pneg %p69
        %p348 = pneg %p93
        %p349 = pneg %p90
        %p350 = pneg %p114
        %p351 = pneg %p111
        %p352 = pneg %p135
        %p353 = pneg %p132
        %p354 = pneg %p156
        %p355 = pneg %p153
        %p356 = pneg %p177
        %p357 = pneg %p174
        %p358 = pneg %p198
        %p359 = pneg %p195
        %p360 = pneg %p219
        %p361 = pneg %p216
        %p362 = pneg %p240
        %p363 = pneg %p237
        %p364 = pneg %p266
        %p365 = pneg %p263
        %s366 = sand.u32 %s253, 1
        %s367 = scalar_lea.sflag [#allocation4], %s366
        %s368 = sand.u32 %s253, 1
        %s369 = smul.addr %s368, 4
        %s370 = scalar_lea.vmem [#allocation3], %s369
        %s371 = smul.u32 64, %s25
        %p372 = scmp.lt.s32.totalorder %s371, 127
        %s373 = scalar_select %p372, %s371, 127
        %s374 = smul.addr %s373, 8
        %s375 = scalar_lea.vmem %s0, %s374
        %s376 = smul.u32 64, %s25
        %s377 = smul.u32 64, %s25
        %p378 = scmp.lt.s32.totalorder %s377, 127
        %s379 = scalar_select %p378, %s377, 127
        %s380 = smul.addr %s379, 8
        %s381 = scalar_lea.vmem %s1, %s380
        %s382 = smul.u32 64, %s25
        %v384 = vld [vmem:[%s375] sm:$0xff]
        %v385 = vld [vmem:[%s375 + $0x8] sm:$0xff]
        %v386 = vld [vmem:[%s375 + $0x10] sm:$0xff]
        %v387 = vld [vmem:[%s375 + $0x18] sm:$0xff]
        %v388 = vld [vmem:[%s375 + $0x20] sm:$0xff]
        %v389 = vld [vmem:[%s375 + $0x28] sm:$0xff]
        %v390 = vld [vmem:[%s375 + $0x30] sm:$0xff]
        %v391 = vld [vmem:[%s375 + $0x38] sm:$0xff]
        %v392 = vld [vmem:[%s375 + $0x40] sm:$0xff]
        %v393 = vld [vmem:[%s375 + $0x48] sm:$0xff]
        %v394 = vld [vmem:[%s375 + $0x50] sm:$0xff]
        %v395 = vld [vmem:[%s375 + $0x58] sm:$0xff]
        %v396 = vld [vmem:[%s375 + $0x60] sm:$0xff]
        %v397 = vld [vmem:[%s375 + $0x68] sm:$0xff]
        %v398 = vld [vmem:[%s375 + $0x70] sm:$0xff]
        %v399 = vld [vmem:[%s375 + $0x78] sm:$0xff]
        %v400 = vld [vmem:[%s375 + $0x80] sm:$0xff]
        %v401 = vld [vmem:[%s375 + $0x88] sm:$0xff]
        %v402 = vld [vmem:[%s375 + $0x90] sm:$0xff]
        %v403 = vld [vmem:[%s375 + $0x98] sm:$0xff]
        %v404 = vld [vmem:[%s375 + $0xa0] sm:$0xff]
        %v405 = vld [vmem:[%s375 + $0xa8] sm:$0xff]
        %v406 = vld [vmem:[%s375 + $0xb0] sm:$0xff]
        %v407 = vld [vmem:[%s375 + $0xb8] sm:$0xff]
        %v408 = vld [vmem:[%s375 + $0xc0] sm:$0xff]
        %v409 = vld [vmem:[%s375 + $0xc8] sm:$0xff]
        %v410 = vld [vmem:[%s375 + $0xd0] sm:$0xff]
        %v411 = vld [vmem:[%s375 + $0xd8] sm:$0xff]
        %v412 = vld [vmem:[%s375 + $0xe0] sm:$0xff]
        %v413 = vld [vmem:[%s375 + $0xe8] sm:$0xff]
        %v414 = vld [vmem:[%s375 + $0xf0] sm:$0xff]
        %v415 = vld [vmem:[%s375 + $0xf8] sm:$0xff]
        %v416 = vld [vmem:[%s375 + $0x100] sm:$0xff]
        %v417 = vld [vmem:[%s375 + $0x108] sm:$0xff]
        %v418 = vld [vmem:[%s375 + $0x110] sm:$0xff]
        %v419 = vld [vmem:[%s375 + $0x118] sm:$0xff]
        %v420 = vld [vmem:[%s375 + $0x120] sm:$0xff]
        %v421 = vld [vmem:[%s375 + $0x128] sm:$0xff]
        %v422 = vld [vmem:[%s375 + $0x130] sm:$0xff]
        %v423 = vld [vmem:[%s375 + $0x138] sm:$0xff]
        %v424 = vld [vmem:[%s375 + $0x140] sm:$0xff]
        %v425 = vld [vmem:[%s375 + $0x148] sm:$0xff]
        %v426 = vld [vmem:[%s375 + $0x150] sm:$0xff]
        %v427 = vld [vmem:[%s375 + $0x158] sm:$0xff]
        %v428 = vld [vmem:[%s375 + $0x160] sm:$0xff]
        %v429 = vld [vmem:[%s375 + $0x168] sm:$0xff]
        %v430 = vld [vmem:[%s375 + $0x170] sm:$0xff]
        %v431 = vld [vmem:[%s375 + $0x178] sm:$0xff]
        %v432 = vld [vmem:[%s375 + $0x180] sm:$0xff]
        %v433 = vld [vmem:[%s375 + $0x188] sm:$0xff]
        %v434 = vld [vmem:[%s375 + $0x190] sm:$0xff]
        %v435 = vld [vmem:[%s375 + $0x198] sm:$0xff]
        %v436 = vld [vmem:[%s375 + $0x1a0] sm:$0xff]
        %v437 = vld [vmem:[%s375 + $0x1a8] sm:$0xff]
        %v438 = vld [vmem:[%s375 + $0x1b0] sm:$0xff]
        %v439 = vld [vmem:[%s375 + $0x1b8] sm:$0xff]
        %v440 = vld [vmem:[%s375 + $0x1c0] sm:$0xff]
        %v441 = vld [vmem:[%s375 + $0x1c8] sm:$0xff]
        %v442 = vld [vmem:[%s375 + $0x1d0] sm:$0xff]
        %v443 = vld [vmem:[%s375 + $0x1d8] sm:$0xff]
        %v444 = vld [vmem:[%s375 + $0x1e0] sm:$0xff]
        %v445 = vld [vmem:[%s375 + $0x1e8] sm:$0xff]
        %v446 = vld [vmem:[%s375 + $0x1f0] sm:$0xff]
        %v447 = vld [vmem:[%s375 + $0x1f8] sm:$0xff]
        %vm448 = vcmask 261120
        %v449 = vsel %vm448, %v384, 0.0
        %v450 = vrot.slane %v449, 4
        %v451 = vadd.f32 %v449, %v450
        %v452 = vrot.slane %v451, 2
        %v453 = vadd.f32 %v451, %v452
        %v454 = vrot.slane %v453, 1
        %v455 = vadd.f32 %v453, %v454
        %v456 = vsel %vm448, %v385, 0.0
        %v457 = vrot.slane %v456, 4
        %v458 = vadd.f32 %v456, %v457
        %v459 = vrot.slane %v458, 2
        %v460 = vadd.f32 %v458, %v459
        %v461 = vrot.slane %v460, 1
        %v462 = vadd.f32 %v460, %v461
        %v463 = vsel %vm448, %v386, 0.0
        %v464 = vrot.slane %v463, 4
        %v465 = vadd.f32 %v463, %v464
        %v466 = vrot.slane %v465, 2
        %v467 = vadd.f32 %v465, %v466
        %v468 = vrot.slane %v467, 1
        %v469 = vadd.f32 %v467, %v468
        %v470 = vsel %vm448, %v387, 0.0
        %v471 = vrot.slane %v470, 4
        %v472 = vadd.f32 %v470, %v471
        %v473 = vrot.slane %v472, 2
        %v474 = vadd.f32 %v472, %v473
        %v475 = vrot.slane %v474, 1
        %v476 = vadd.f32 %v474, %v475
        %v477 = vsel %vm448, %v388, 0.0
        %v478 = vrot.slane %v477, 4
        %v479 = vadd.f32 %v477, %v478
        %v480 = vrot.slane %v479, 2
        %v481 = vadd.f32 %v479, %v480
        %v482 = vrot.slane %v481, 1
        %v483 = vadd.f32 %v481, %v482
        %v484 = vsel %vm448, %v389, 0.0
        %v485 = vrot.slane %v484, 4
        %v486 = vadd.f32 %v484, %v485
        %v487 = vrot.slane %v486, 2
        %v488 = vadd.f32 %v486, %v487
        %v489 = vrot.slane %v488, 1
        %v490 = vadd.f32 %v488, %v489
        %v491 = vsel %vm448, %v390, 0.0
        %v492 = vrot.slane %v491, 4
        %v493 = vadd.f32 %v491, %v492
        %v494 = vrot.slane %v493, 2
        %v495 = vadd.f32 %v493, %v494
        %v496 = vrot.slane %v495, 1
        %v497 = vadd.f32 %v495, %v496
        %v498 = vsel %vm448, %v391, 0.0
        %v499 = vrot.slane %v498, 4
        %v500 = vadd.f32 %v498, %v499
        %v501 = vrot.slane %v500, 2
        %v502 = vadd.f32 %v500, %v501
        %v503 = vrot.slane %v502, 1
        %v504 = vadd.f32 %v502, %v503
        %v505 = vsel %vm448, %v392, 0.0
        %v506 = vrot.slane %v505, 4
        %v507 = vadd.f32 %v505, %v506
        %v508 = vrot.slane %v507, 2
        %v509 = vadd.f32 %v507, %v508
        %v510 = vrot.slane %v509, 1
        %v511 = vadd.f32 %v509, %v510
        %v512 = vsel %vm448, %v393, 0.0
        %v513 = vrot.slane %v512, 4
        %v514 = vadd.f32 %v512, %v513
        %v515 = vrot.slane %v514, 2
        %v516 = vadd.f32 %v514, %v515
        %v517 = vrot.slane %v516, 1
        %v518 = vadd.f32 %v516, %v517
        %v519 = vsel %vm448, %v394, 0.0
        %v520 = vrot.slane %v519, 4
        %v521 = vadd.f32 %v519, %v520
        %v522 = vrot.slane %v521, 2
        %v523 = vadd.f32 %v521, %v522
        %v524 = vrot.slane %v523, 1
        %v525 = vadd.f32 %v523, %v524
        %v526 = vsel %vm448, %v395, 0.0
        %v527 = vrot.slane %v526, 4
        %v528 = vadd.f32 %v526, %v527
        %v529 = vrot.slane %v528, 2
        %v530 = vadd.f32 %v528, %v529
        %v531 = vrot.slane %v530, 1
        %v532 = vadd.f32 %v530, %v531
        %v533 = vsel %vm448, %v396, 0.0
        %v534 = vrot.slane %v533, 4
        %v535 = vadd.f32 %v533, %v534
        %v536 = vrot.slane %v535, 2
        %v537 = vadd.f32 %v535, %v536
        %v538 = vrot.slane %v537, 1
        %v539 = vadd.f32 %v537, %v538
        %v540 = vsel %vm448, %v397, 0.0
        %v541 = vrot.slane %v540, 4
        %v542 = vadd.f32 %v540, %v541
        %v543 = vrot.slane %v542, 2
        %v544 = vadd.f32 %v542, %v543
        %v545 = vrot.slane %v544, 1
        %v546 = vadd.f32 %v544, %v545
        %v547 = vsel %vm448, %v398, 0.0
        %v548 = vrot.slane %v547, 4
        %v549 = vadd.f32 %v547, %v548
        %v550 = vrot.slane %v549, 2
        %v551 = vadd.f32 %v549, %v550
        %v552 = vrot.slane %v551, 1
        %v553 = vadd.f32 %v551, %v552
        %v554 = vsel %vm448, %v399, 0.0
        %v555 = vrot.slane %v554, 4
        %v556 = vadd.f32 %v554, %v555
        %v557 = vrot.slane %v556, 2
        %v558 = vadd.f32 %v556, %v557
        %v559 = vrot.slane %v558, 1
        %v560 = vadd.f32 %v558, %v559
        %v561 = vsel %vm448, %v400, 0.0
        %v562 = vrot.slane %v561, 4
        %v563 = vadd.f32 %v561, %v562
        %v564 = vrot.slane %v563, 2
        %v565 = vadd.f32 %v563, %v564
        %v566 = vrot.slane %v565, 1
        %v567 = vadd.f32 %v565, %v566
        %v568 = vsel %vm448, %v401, 0.0
        %v569 = vrot.slane %v568, 4
        %v570 = vadd.f32 %v568, %v569
        %v571 = vrot.slane %v570, 2
        %v572 = vadd.f32 %v570, %v571
        %v573 = vrot.slane %v572, 1
        %v574 = vadd.f32 %v572, %v573
        %v575 = vsel %vm448, %v402, 0.0
        %v576 = vrot.slane %v575, 4
        %v577 = vadd.f32 %v575, %v576
        %v578 = vrot.slane %v577, 2
        %v579 = vadd.f32 %v577, %v578
        %v580 = vrot.slane %v579, 1
        %v581 = vadd.f32 %v579, %v580
        %v582 = vsel %vm448, %v403, 0.0
        %v583 = vrot.slane %v582, 4
        %v584 = vadd.f32 %v582, %v583
        %v585 = vrot.slane %v584, 2
        %v586 = vadd.f32 %v584, %v585
        %v587 = vrot.slane %v586, 1
        %v588 = vadd.f32 %v586, %v587
        %v589 = vsel %vm448, %v404, 0.0
        %v590 = vrot.slane %v589, 4
        %v591 = vadd.f32 %v589, %v590
        %v592 = vrot.slane %v591, 2
        %v593 = vadd.f32 %v591, %v592
        %v594 = vrot.slane %v593, 1
        %v595 = vadd.f32 %v593, %v594
        %v596 = vsel %vm448, %v405, 0.0
        %v597 = vrot.slane %v596, 4
        %v598 = vadd.f32 %v596, %v597
        %v599 = vrot.slane %v598, 2
        %v600 = vadd.f32 %v598, %v599
        %v601 = vrot.slane %v600, 1
        %v602 = vadd.f32 %v600, %v601
        %v603 = vsel %vm448, %v406, 0.0
        %v604 = vrot.slane %v603, 4
        %v605 = vadd.f32 %v603, %v604
        %v606 = vrot.slane %v605, 2
        %v607 = vadd.f32 %v605, %v606
        %v608 = vrot.slane %v607, 1
        %v609 = vadd.f32 %v607, %v608
        %v610 = vsel %vm448, %v407, 0.0
        %v611 = vrot.slane %v610, 4
        %v612 = vadd.f32 %v610, %v611
        %v613 = vrot.slane %v612, 2
        %v614 = vadd.f32 %v612, %v613
        %v615 = vrot.slane %v614, 1
        %v616 = vadd.f32 %v614, %v615
        %v617 = vsel %vm448, %v408, 0.0
        %v618 = vrot.slane %v617, 4
        %v619 = vadd.f32 %v617, %v618
        %v620 = vrot.slane %v619, 2
        %v621 = vadd.f32 %v619, %v620
        %v622 = vrot.slane %v621, 1
        %v623 = vadd.f32 %v621, %v622
        %v624 = vsel %vm448, %v409, 0.0
        %v625 = vrot.slane %v624, 4
        %v626 = vadd.f32 %v624, %v625
        %v627 = vrot.slane %v626, 2
        %v628 = vadd.f32 %v626, %v627
        %v629 = vrot.slane %v628, 1
        %v630 = vadd.f32 %v628, %v629
        %v631 = vsel %vm448, %v410, 0.0
        %v632 = vrot.slane %v631, 4
        %v633 = vadd.f32 %v631, %v632
        %v634 = vrot.slane %v633, 2
        %v635 = vadd.f32 %v633, %v634
        %v636 = vrot.slane %v635, 1
        %v637 = vadd.f32 %v635, %v636
        %v638 = vsel %vm448, %v411, 0.0
        %v639 = vrot.slane %v638, 4
        %v640 = vadd.f32 %v638, %v639
        %v641 = vrot.slane %v640, 2
        %v642 = vadd.f32 %v640, %v641
        %v643 = vrot.slane %v642, 1
        %v644 = vadd.f32 %v642, %v643
        %v645 = vsel %vm448, %v412, 0.0
        %v646 = vrot.slane %v645, 4
        %v647 = vadd.f32 %v645, %v646
        %v648 = vrot.slane %v647, 2
        %v649 = vadd.f32 %v647, %v648
        %v650 = vrot.slane %v649, 1
        %v651 = vadd.f32 %v649, %v650
        %v652 = vsel %vm448, %v413, 0.0
        %v653 = vrot.slane %v652, 4
        %v654 = vadd.f32 %v652, %v653
        %v655 = vrot.slane %v654, 2
        %v656 = vadd.f32 %v654, %v655
        %v657 = vrot.slane %v656, 1
        %v658 = vadd.f32 %v656, %v657
        %v659 = vsel %vm448, %v414, 0.0
        %v660 = vrot.slane %v659, 4
        %v661 = vadd.f32 %v659, %v660
        %v662 = vrot.slane %v661, 2
        %v663 = vadd.f32 %v661, %v662
        %v664 = vrot.slane %v663, 1
        %v665 = vadd.f32 %v663, %v664
        %v666 = vsel %vm448, %v415, 0.0
        %v667 = vrot.slane %v666, 4
        %v668 = vadd.f32 %v666, %v667
        %v669 = vrot.slane %v668, 2
        %v670 = vadd.f32 %v668, %v669
        %v671 = vrot.slane %v670, 1
        %v672 = vadd.f32 %v670, %v671
        %v673 = vsel %vm448, %v416, 0.0
        %v674 = vrot.slane %v673, 4
        %v675 = vadd.f32 %v673, %v674
        %v676 = vrot.slane %v675, 2
        %v677 = vadd.f32 %v675, %v676
        %v678 = vrot.slane %v677, 1
        %v679 = vadd.f32 %v677, %v678
        %v680 = vsel %vm448, %v417, 0.0
        %v681 = vrot.slane %v680, 4
        %v682 = vadd.f32 %v680, %v681
        %v683 = vrot.slane %v682, 2
        %v684 = vadd.f32 %v682, %v683
        %v685 = vrot.slane %v684, 1
        %v686 = vadd.f32 %v684, %v685
        %v687 = vsel %vm448, %v418, 0.0
        %v688 = vrot.slane %v687, 4
        %v689 = vadd.f32 %v687, %v688
        %v690 = vrot.slane %v689, 2
        %v691 = vadd.f32 %v689, %v690
        %v692 = vrot.slane %v691, 1
        %v693 = vadd.f32 %v691, %v692
        %v694 = vsel %vm448, %v419, 0.0
        %v695 = vrot.slane %v694, 4
        %v696 = vadd.f32 %v694, %v695
        %v697 = vrot.slane %v696, 2
        %v698 = vadd.f32 %v696, %v697
        %v699 = vrot.slane %v698, 1
        %v700 = vadd.f32 %v698, %v699
        %v701 = vsel %vm448, %v420, 0.0
        %v702 = vrot.slane %v701, 4
        %v703 = vadd.f32 %v701, %v702
        %v704 = vrot.slane %v703, 2
        %v705 = vadd.f32 %v703, %v704
        %v706 = vrot.slane %v705, 1
        %v707 = vadd.f32 %v705, %v706
        %v708 = vsel %vm448, %v421, 0.0
        %v709 = vrot.slane %v708, 4
        %v710 = vadd.f32 %v708, %v709
        %v711 = vrot.slane %v710, 2
        %v712 = vadd.f32 %v710, %v711
        %v713 = vrot.slane %v712, 1
        %v714 = vadd.f32 %v712, %v713
        %v715 = vsel %vm448, %v422, 0.0
        %v716 = vrot.slane %v715, 4
        %v717 = vadd.f32 %v715, %v716
        %v718 = vrot.slane %v717, 2
        %v719 = vadd.f32 %v717, %v718
        %v720 = vrot.slane %v719, 1
        %v721 = vadd.f32 %v719, %v720
        %v722 = vsel %vm448, %v423, 0.0
        %v723 = vrot.slane %v722, 4
        %v724 = vadd.f32 %v722, %v723
        %v725 = vrot.slane %v724, 2
        %v726 = vadd.f32 %v724, %v725
        %v727 = vrot.slane %v726, 1
        %v728 = vadd.f32 %v726, %v727
        %v729 = vsel %vm448, %v424, 0.0
        %v730 = vrot.slane %v729, 4
        %v731 = vadd.f32 %v729, %v730
        %v732 = vrot.slane %v731, 2
        %v733 = vadd.f32 %v731, %v732
        %v734 = vrot.slane %v733, 1
        %v735 = vadd.f32 %v733, %v734
        %v736 = vsel %vm448, %v425, 0.0
        %v737 = vrot.slane %v736, 4
        %v738 = vadd.f32 %v736, %v737
        %v739 = vrot.slane %v738, 2
        %v740 = vadd.f32 %v738, %v739
        %v741 = vrot.slane %v740, 1
        %v742 = vadd.f32 %v740, %v741
        %v743 = vsel %vm448, %v426, 0.0
        %v744 = vrot.slane %v743, 4
        %v745 = vadd.f32 %v743, %v744
        %v746 = vrot.slane %v745, 2
        %v747 = vadd.f32 %v745, %v746
        %v748 = vrot.slane %v747, 1
        %v749 = vadd.f32 %v747, %v748
        %v750 = vsel %vm448, %v427, 0.0
        %v751 = vrot.slane %v750, 4
        %v752 = vadd.f32 %v750, %v751
        %v753 = vrot.slane %v752, 2
        %v754 = vadd.f32 %v752, %v753
        %v755 = vrot.slane %v754, 1
        %v756 = vadd.f32 %v754, %v755
        %v757 = vsel %vm448, %v428, 0.0
        %v758 = vrot.slane %v757, 4
        %v759 = vadd.f32 %v757, %v758
        %v760 = vrot.slane %v759, 2
        %v761 = vadd.f32 %v759, %v760
        %v762 = vrot.slane %v761, 1
        %v763 = vadd.f32 %v761, %v762
        %v764 = vsel %vm448, %v429, 0.0
        %v765 = vrot.slane %v764, 4
        %v766 = vadd.f32 %v764, %v765
        %v767 = vrot.slane %v766, 2
        %v768 = vadd.f32 %v766, %v767
        %v769 = vrot.slane %v768, 1
        %v770 = vadd.f32 %v768, %v769
        %v771 = vsel %vm448, %v430, 0.0
        %v772 = vrot.slane %v771, 4
        %v773 = vadd.f32 %v771, %v772
        %v774 = vrot.slane %v773, 2
        %v775 = vadd.f32 %v773, %v774
        %v776 = vrot.slane %v775, 1
        %v777 = vadd.f32 %v775, %v776
        %v778 = vsel %vm448, %v431, 0.0
        %v779 = vrot.slane %v778, 4
        %v780 = vadd.f32 %v778, %v779
        %v781 = vrot.slane %v780, 2
        %v782 = vadd.f32 %v780, %v781
        %v783 = vrot.slane %v782, 1
        %v784 = vadd.f32 %v782, %v783
        %v785 = vsel %vm448, %v432, 0.0
        %v786 = vrot.slane %v785, 4
        %v787 = vadd.f32 %v785, %v786
        %v788 = vrot.slane %v787, 2
        %v789 = vadd.f32 %v787, %v788
        %v790 = vrot.slane %v789, 1
        %v791 = vadd.f32 %v789, %v790
        %v792 = vsel %vm448, %v433, 0.0
        %v793 = vrot.slane %v792, 4
        %v794 = vadd.f32 %v792, %v793
        %v795 = vrot.slane %v794, 2
        %v796 = vadd.f32 %v794, %v795
        %v797 = vrot.slane %v796, 1
        %v798 = vadd.f32 %v796, %v797
        %v799 = vsel %vm448, %v434, 0.0
        %v800 = vrot.slane %v799, 4
        %v801 = vadd.f32 %v799, %v800
        %v802 = vrot.slane %v801, 2
        %v803 = vadd.f32 %v801, %v802
        %v804 = vrot.slane %v803, 1
        %v805 = vadd.f32 %v803, %v804
        %v806 = vsel %vm448, %v435, 0.0
        %v807 = vrot.slane %v806, 4
        %v808 = vadd.f32 %v806, %v807
        %v809 = vrot.slane %v808, 2
        %v810 = vadd.f32 %v808, %v809
        %v811 = vrot.slane %v810, 1
        %v812 = vadd.f32 %v810, %v811
        %v813 = vsel %vm448, %v436, 0.0
        %v814 = vrot.slane %v813, 4
        %v815 = vadd.f32 %v813, %v814
        %v816 = vrot.slane %v815, 2
        %v817 = vadd.f32 %v815, %v816
        %v818 = vrot.slane %v817, 1
        %v819 = vadd.f32 %v817, %v818
        %v820 = vsel %vm448, %v437, 0.0
        %v821 = vrot.slane %v820, 4
        %v822 = vadd.f32 %v820, %v821
        %v823 = vrot.slane %v822, 2
        %v824 = vadd.f32 %v822, %v823
        %v825 = vrot.slane %v824, 1
        %v826 = vadd.f32 %v824, %v825
        %v827 = vsel %vm448, %v438, 0.0
        %v828 = vrot.slane %v827, 4
        %v829 = vadd.f32 %v827, %v828
        %v830 = vrot.slane %v829, 2
        %v831 = vadd.f32 %v829, %v830
        %v832 = vrot.slane %v831, 1
        %v833 = vadd.f32 %v831, %v832
        %v834 = vsel %vm448, %v439, 0.0
        %v835 = vrot.slane %v834, 4
        %v836 = vadd.f32 %v834, %v835
        %v837 = vrot.slane %v836, 2
        %v838 = vadd.f32 %v836, %v837
        %v839 = vrot.slane %v838, 1
        %v840 = vadd.f32 %v838, %v839
        %v841 = vsel %vm448, %v440, 0.0
        %v842 = vrot.slane %v841, 4
        %v843 = vadd.f32 %v841, %v842
        %v844 = vrot.slane %v843, 2
        %v845 = vadd.f32 %v843, %v844
        %v846 = vrot.slane %v845, 1
        %v847 = vadd.f32 %v845, %v846
        %v848 = vsel %vm448, %v441, 0.0
        %v849 = vrot.slane %v848, 4
        %v850 = vadd.f32 %v848, %v849
        %v851 = vrot.slane %v850, 2
        %v852 = vadd.f32 %v850, %v851
        %v853 = vrot.slane %v852, 1
        %v854 = vadd.f32 %v852, %v853
        %v855 = vsel %vm448, %v442, 0.0
        %v856 = vrot.slane %v855, 4
        %v857 = vadd.f32 %v855, %v856
        %v858 = vrot.slane %v857, 2
        %v859 = vadd.f32 %v857, %v858
        %v860 = vrot.slane %v859, 1
        %v861 = vadd.f32 %v859, %v860
        %v862 = vsel %vm448, %v443, 0.0
        %v863 = vrot.slane %v862, 4
        %v864 = vadd.f32 %v862, %v863
        %v865 = vrot.slane %v864, 2
        %v866 = vadd.f32 %v864, %v865
        %v867 = vrot.slane %v866, 1
        %v868 = vadd.f32 %v866, %v867
        %v869 = vsel %vm448, %v444, 0.0
        %v870 = vrot.slane %v869, 4
        %v871 = vadd.f32 %v869, %v870
        %v872 = vrot.slane %v871, 2
        %v873 = vadd.f32 %v871, %v872
        %v874 = vrot.slane %v873, 1
        %v875 = vadd.f32 %v873, %v874
        %v876 = vsel %vm448, %v445, 0.0
        %v877 = vrot.slane %v876, 4
        %v878 = vadd.f32 %v876, %v877
        %v879 = vrot.slane %v878, 2
        %v880 = vadd.f32 %v878, %v879
        %v881 = vrot.slane %v880, 1
        %v882 = vadd.f32 %v880, %v881
        %v883 = vsel %vm448, %v446, 0.0
        %v884 = vrot.slane %v883, 4
        %v885 = vadd.f32 %v883, %v884
        %v886 = vrot.slane %v885, 2
        %v887 = vadd.f32 %v885, %v886
        %v888 = vrot.slane %v887, 1
        %v889 = vadd.f32 %v887, %v888
        %v890 = vsel %vm448, %v447, 0.0
        %v891 = vrot.slane %v890, 4
        %v892 = vadd.f32 %v890, %v891
        %v893 = vrot.slane %v892, 2
        %v894 = vadd.f32 %v892, %v893
        %v895 = vrot.slane %v894, 1
        %v896 = vadd.f32 %v894, %v895
        %v897 = vrcp.pop 8.0
        %v898 = vmul.f32 %v455, %v897
        %v899 = vmul.f32 %v462, %v897
        %v900 = vmul.f32 %v469, %v897
        %v901 = vmul.f32 %v476, %v897
        %v902 = vmul.f32 %v483, %v897
        %v903 = vmul.f32 %v490, %v897
        %v904 = vmul.f32 %v497, %v897
        %v905 = vmul.f32 %v504, %v897
        %v906 = vmul.f32 %v511, %v897
        %v907 = vmul.f32 %v518, %v897
        %v908 = vmul.f32 %v525, %v897
        %v909 = vmul.f32 %v532, %v897
        %v910 = vmul.f32 %v539, %v897
        %v911 = vmul.f32 %v546, %v897
        %v912 = vmul.f32 %v553, %v897
        %v913 = vmul.f32 %v560, %v897
        %v914 = vmul.f32 %v567, %v897
        %v915 = vmul.f32 %v574, %v897
        %v916 = vmul.f32 %v581, %v897
        %v917 = vmul.f32 %v588, %v897
        %v918 = vmul.f32 %v595, %v897
        %v919 = vmul.f32 %v602, %v897
        %v920 = vmul.f32 %v609, %v897
        %v921 = vmul.f32 %v616, %v897
        %v922 = vmul.f32 %v623, %v897
        %v923 = vmul.f32 %v630, %v897
        %v924 = vmul.f32 %v637, %v897
        %v925 = vmul.f32 %v644, %v897
        %v926 = vmul.f32 %v651, %v897
        %v927 = vmul.f32 %v658, %v897
        %v928 = vmul.f32 %v665, %v897
        %v929 = vmul.f32 %v672, %v897
        %v930 = vmul.f32 %v679, %v897
        %v931 = vmul.f32 %v686, %v897
        %v932 = vmul.f32 %v693, %v897
        %v933 = vmul.f32 %v700, %v897
        %v934 = vmul.f32 %v707, %v897
        %v935 = vmul.f32 %v714, %v897
        %v936 = vmul.f32 %v721, %v897
        %v937 = vmul.f32 %v728, %v897
        %v938 = vmul.f32 %v735, %v897
        %v939 = vmul.f32 %v742, %v897
        %v940 = vmul.f32 %v749, %v897
        %v941 = vmul.f32 %v756, %v897
        %v942 = vmul.f32 %v763, %v897
        %v943 = vmul.f32 %v770, %v897
        %v944 = vmul.f32 %v777, %v897
        %v945 = vmul.f32 %v784, %v897
        %v946 = vmul.f32 %v791, %v897
        %v947 = vmul.f32 %v798, %v897
        %v948 = vmul.f32 %v805, %v897
        %v949 = vmul.f32 %v812, %v897
        %v950 = vmul.f32 %v819, %v897
        %v951 = vmul.f32 %v826, %v897
        %v952 = vmul.f32 %v833, %v897
        %v953 = vmul.f32 %v840, %v897
        %v954 = vmul.f32 %v847, %v897
        %v955 = vmul.f32 %v854, %v897
        %v956 = vmul.f32 %v861, %v897
        %v957 = vmul.f32 %v868, %v897
        %v958 = vmul.f32 %v875, %v897
        %v959 = vmul.f32 %v882, %v897
        %v960 = vmul.f32 %v889, %v897
        %v961 = vmul.f32 %v896, %v897
        %v962 = vpack.c.bf16 %v898, %v898
        %v963 = vpack.c.bf16 %v899, %v899
        %v964 = vpack.c.bf16 %v900, %v900
        %v965 = vpack.c.bf16 %v901, %v901
        %v966 = vpack.c.bf16 %v902, %v902
        %v967 = vpack.c.bf16 %v903, %v903
        %v968 = vpack.c.bf16 %v904, %v904
        %v969 = vpack.c.bf16 %v905, %v905
        %v970 = vpack.c.bf16 %v906, %v906
        %v971 = vpack.c.bf16 %v907, %v907
        %v972 = vpack.c.bf16 %v908, %v908
        %v973 = vpack.c.bf16 %v909, %v909
        %v974 = vpack.c.bf16 %v910, %v910
        %v975 = vpack.c.bf16 %v911, %v911
        %v976 = vpack.c.bf16 %v912, %v912
        %v977 = vpack.c.bf16 %v913, %v913
        %v978 = vpack.c.bf16 %v914, %v914
        %v979 = vpack.c.bf16 %v915, %v915
        %v980 = vpack.c.bf16 %v916, %v916
        %v981 = vpack.c.bf16 %v917, %v917
        %v982 = vpack.c.bf16 %v918, %v918
        %v983 = vpack.c.bf16 %v919, %v919
        %v984 = vpack.c.bf16 %v920, %v920
        %v985 = vpack.c.bf16 %v921, %v921
        %v986 = vpack.c.bf16 %v922, %v922
        %v987 = vpack.c.bf16 %v923, %v923
        %v988 = vpack.c.bf16 %v924, %v924
        %v989 = vpack.c.bf16 %v925, %v925
        %v990 = vpack.c.bf16 %v926, %v926
        %v991 = vpack.c.bf16 %v927, %v927
        %v992 = vpack.c.bf16 %v928, %v928
        %v993 = vpack.c.bf16 %v929, %v929
        %v994 = vpack.c.bf16 %v930, %v930
        %v995 = vpack.c.bf16 %v931, %v931
        %v996 = vpack.c.bf16 %v932, %v932
        %v997 = vpack.c.bf16 %v933, %v933
        %v998 = vpack.c.bf16 %v934, %v934
        %v999 = vpack.c.bf16 %v935, %v935
        %v1000 = vpack.c.bf16 %v936, %v936
        %v1001 = vpack.c.bf16 %v937, %v937
        %v1002 = vpack.c.bf16 %v938, %v938
        %v1003 = vpack.c.bf16 %v939, %v939
        %v1004 = vpack.c.bf16 %v940, %v940
        %v1005 = vpack.c.bf16 %v941, %v941
        %v1006 = vpack.c.bf16 %v942, %v942
        %v1007 = vpack.c.bf16 %v943, %v943
        %v1008 = vpack.c.bf16 %v944, %v944
        %v1009 = vpack.c.bf16 %v945, %v945
        %v1010 = vpack.c.bf16 %v946, %v946
        %v1011 = vpack.c.bf16 %v947, %v947
        %v1012 = vpack.c.bf16 %v948, %v948
        %v1013 = vpack.c.bf16 %v949, %v949
        %v1014 = vpack.c.bf16 %v950, %v950
        %v1015 = vpack.c.bf16 %v951, %v951
        %v1016 = vpack.c.bf16 %v952, %v952
        %v1017 = vpack.c.bf16 %v953, %v953
        %v1018 = vpack.c.bf16 %v954, %v954
        %v1019 = vpack.c.bf16 %v955, %v955
        %v1020 = vpack.c.bf16 %v956, %v956
        %v1021 = vpack.c.bf16 %v957, %v957
        %v1022 = vpack.c.bf16 %v958, %v958
        %v1023 = vpack.c.bf16 %v959, %v959
        %v1024 = vpack.c.bf16 %v960, %v960
        %v1025 = vpack.c.bf16 %v961, %v961
        %v1026 = vld [vmem:[%s2] sm:$0xf]
        %v1027 = vld [vmem:[%s2 + $0x4] sm:$0xf]
        %v1028 = vld [vmem:[%s2 + $0x8] sm:$0xf]
        %v1029 = vld [vmem:[%s2 + $0xc] sm:$0xf]
        %v1094 = vunpack.c.l.b16 %v962
        %v1095 = vunpack.c.l.b16 %v963
        %v1096 = vunpack.c.l.b16 %v964
        %v1097 = vunpack.c.l.b16 %v965
        %v1098 = vunpack.c.l.b16 %v966
        %v1099 = vunpack.c.l.b16 %v967
        %v1100 = vunpack.c.l.b16 %v968
        %v1101 = vunpack.c.l.b16 %v969
        %v1102 = vunpack.c.l.b16 %v970
        %v1103 = vunpack.c.l.b16 %v971
        %v1104 = vunpack.c.l.b16 %v972
        %v1105 = vunpack.c.l.b16 %v973
        %v1106 = vunpack.c.l.b16 %v974
        %v1107 = vunpack.c.l.b16 %v975
        %v1108 = vunpack.c.l.b16 %v976
        %v1109 = vunpack.c.l.b16 %v977
        %v1110 = vunpack.c.l.b16 %v978
        %v1111 = vunpack.c.l.b16 %v979
        %v1112 = vunpack.c.l.b16 %v980
        %v1113 = vunpack.c.l.b16 %v981
        %v1114 = vunpack.c.l.b16 %v982
        %v1115 = vunpack.c.l.b16 %v983
        %v1116 = vunpack.c.l.b16 %v984
        %v1117 = vunpack.c.l.b16 %v985
        %v1118 = vunpack.c.l.b16 %v986
        %v1119 = vunpack.c.l.b16 %v987
        %v1120 = vunpack.c.l.b16 %v988
        %v1121 = vunpack.c.l.b16 %v989
        %v1122 = vunpack.c.l.b16 %v990
        %v1123 = vunpack.c.l.b16 %v991
        %v1124 = vunpack.c.l.b16 %v992
        %v1125 = vunpack.c.l.b16 %v993
        %v1126 = vunpack.c.l.b16 %v994
        %v1127 = vunpack.c.l.b16 %v995
        %v1128 = vunpack.c.l.b16 %v996
        %v1129 = vunpack.c.l.b16 %v997
        %v1130 = vunpack.c.l.b16 %v998
        %v1131 = vunpack.c.l.b16 %v999
        %v1132 = vunpack.c.l.b16 %v1000
        %v1133 = vunpack.c.l.b16 %v1001
        %v1134 = vunpack.c.l.b16 %v1002
        %v1135 = vunpack.c.l.b16 %v1003
        %v1136 = vunpack.c.l.b16 %v1004
        %v1137 = vunpack.c.l.b16 %v1005
        %v1138 = vunpack.c.l.b16 %v1006
        %v1139 = vunpack.c.l.b16 %v1007
        %v1140 = vunpack.c.l.b16 %v1008
        %v1141 = vunpack.c.l.b16 %v1009
        %v1142 = vunpack.c.l.b16 %v1010
        %v1143 = vunpack.c.l.b16 %v1011
        %v1144 = vunpack.c.l.b16 %v1012
        %v1145 = vunpack.c.l.b16 %v1013
        %v1146 = vunpack.c.l.b16 %v1014
        %v1147 = vunpack.c.l.b16 %v1015
        %v1148 = vunpack.c.l.b16 %v1016
        %v1149 = vunpack.c.l.b16 %v1017
        %v1150 = vunpack.c.l.b16 %v1018
        %v1151 = vunpack.c.l.b16 %v1019
        %v1152 = vunpack.c.l.b16 %v1020
        %v1153 = vunpack.c.l.b16 %v1021
        %v1154 = vunpack.c.l.b16 %v1022
        %v1155 = vunpack.c.l.b16 %v1023
        %v1156 = vunpack.c.l.b16 %v1024
        %v1157 = vunpack.c.l.b16 %v1025
        %vm1158 = vcmask 1041409
        %v1159 = vsel %vm1158, %v1095, %v1094
        %vm1160 = vcmask 1042434
        %v1161 = vsel %vm1160, %v1096, %v1159
        %vm1162 = vcmask 1043459
        %v1163 = vsel %vm1162, %v1097, %v1161
        %vm1164 = vcmask 1044484
        %v1165 = vsel %vm1164, %v1098, %v1163
        %vm1166 = vcmask 1045509
        %v1167 = vsel %vm1166, %v1099, %v1165
        %vm1168 = vcmask 1046534
        %v1169 = vsel %vm1168, %v1100, %v1167
        %vm1170 = vcmask 1047559
        %v1171 = vsel %vm1170, %v1101, %v1169
        %v1172 = vsel %vm1158, %v1103, %v1102
        %v1173 = vsel %vm1160, %v1104, %v1172
        %v1174 = vsel %vm1162, %v1105, %v1173
        %v1175 = vsel %vm1164, %v1106, %v1174
        %v1176 = vsel %vm1166, %v1107, %v1175
        %v1177 = vsel %vm1168, %v1108, %v1176
        %v1178 = vsel %vm1170, %v1109, %v1177
        %v1179 = vsel %vm1158, %v1111, %v1110
        %v1180 = vsel %vm1160, %v1112, %v1179
        %v1181 = vsel %vm1162, %v1113, %v1180
        %v1182 = vsel %vm1164, %v1114, %v1181
        %v1183 = vsel %vm1166, %v1115, %v1182
        %v1184 = vsel %vm1168, %v1116, %v1183
        %v1185 = vsel %vm1170, %v1117, %v1184
        %v1186 = vsel %vm1158, %v1119, %v1118
        %v1187 = vsel %vm1160, %v1120, %v1186
        %v1188 = vsel %vm1162, %v1121, %v1187
        %v1189 = vsel %vm1164, %v1122, %v1188
        %v1190 = vsel %vm1166, %v1123, %v1189
        %v1191 = vsel %vm1168, %v1124, %v1190
        %v1192 = vsel %vm1170, %v1125, %v1191
        %v1193 = vsel %vm1158, %v1127, %v1126
        %v1194 = vsel %vm1160, %v1128, %v1193
        %v1195 = vsel %vm1162, %v1129, %v1194
        %v1196 = vsel %vm1164, %v1130, %v1195
        %v1197 = vsel %vm1166, %v1131, %v1196
        %v1198 = vsel %vm1168, %v1132, %v1197
        %v1199 = vsel %vm1170, %v1133, %v1198
        %v1200 = vsel %vm1158, %v1135, %v1134
        %v1201 = vsel %vm1160, %v1136, %v1200
        %v1202 = vsel %vm1162, %v1137, %v1201
        %v1203 = vsel %vm1164, %v1138, %v1202
        %v1204 = vsel %vm1166, %v1139, %v1203
        %v1205 = vsel %vm1168, %v1140, %v1204
        %v1206 = vsel %vm1170, %v1141, %v1205
        %v1207 = vsel %vm1158, %v1143, %v1142
        %v1208 = vsel %vm1160, %v1144, %v1207
        %v1209 = vsel %vm1162, %v1145, %v1208
        %v1210 = vsel %vm1164, %v1146, %v1209
        %v1211 = vsel %vm1166, %v1147, %v1210
        %v1212 = vsel %vm1168, %v1148, %v1211
        %v1213 = vsel %vm1170, %v1149, %v1212
        %v1214 = vsel %vm1158, %v1151, %v1150
        %v1215 = vsel %vm1160, %v1152, %v1214
        %v1216 = vsel %vm1162, %v1153, %v1215
        %v1217 = vsel %vm1164, %v1154, %v1216
        %v1218 = vsel %vm1166, %v1155, %v1217
        %v1219 = vsel %vm1168, %v1156, %v1218
        %v1220 = vsel %vm1170, %v1157, %v1219
        %v1221 = vpack.c.b16 %v1178, %v1171
        %v1222 = vpack.c.b16 %v1192, %v1185
        %v1223 = vpack.c.b16 %v1206, %v1199
        %v1224 = vpack.c.b16 %v1220, %v1213
        %v1229 = vunpack.c.l.b16 %v1026
        %v1230 = vunpack.c.l.b16 %v1027
        %v1231 = vunpack.c.l.b16 %v1028
        %v1232 = vunpack.c.l.b16 %v1029
        %v1233 = vpack.c.b16 %v1230, %v1229
        %v1234 = vpack.c.b16 %v1232, %v1231
        %v1238 = vsel %vm448, %v1221, 0
        %v1241 = vsel %vm448, %v1222, 0
        %v1244 = vsel %vm448, %v1223, 0
        %v1247 = vsel %vm448, %v1224, 0
        %1249 = vmatprep.subr.bf16.mxu0 0
        %1250 = vmatpush1.bf16.msra.mxu0 %v1233
        %1251 = vmatprep.subr.bf16.mxu0 0
        %1252 = vmatpush1.bf16.msra.mxu0 %v1234
        %1253 = vmatprep.subr.bf16.mxu0 0
        %1254 = vmatpush1.bf16.msra.mxu0 0
        %1255 = vmatprep.subr.bf16.mxu0 0
        %1256 = vmatpush1.bf16.msra.mxu0 0
        %1257 = vmatprep.subr.bf16.mxu0 0
        %1258 = vmatpush1.bf16.msra.mxu0 0
        %1259 = vmatprep.subr.bf16.mxu0 0
        %1260 = vmatpush1.bf16.msra.mxu0 0
        %1261 = vmatprep.subr.bf16.mxu0 0
        %1262 = vmatpush1.bf16.msra.mxu0 0
        %1263 = vmatprep.subr.bf16.mxu0 0
        %1264 = vmatpush1.bf16.msra.mxu0 0
        %1265 = vmatprep.subr.bf16.mxu0 0
        %1266 = vmatpush1.bf16.msra.mxu0 0
        %1267 = vmatprep.subr.bf16.mxu0 0
        %1268 = vmatpush1.bf16.msra.mxu0 0
        %1269 = vmatprep.subr.bf16.mxu0 0
        %1270 = vmatpush1.bf16.msra.mxu0 0
        %1271 = vmatprep.subr.bf16.mxu0 0
        %1272 = vmatpush1.bf16.msra.mxu0 0
        %1273 = vmatprep.subr.bf16.mxu0 0
        %1274 = vmatpush1.bf16.msra.mxu0 0
        %1275 = vmatprep.subr.bf16.mxu0 0
        %1276 = vmatpush1.bf16.msra.mxu0 0
        %1277 = vmatprep.subr.bf16.mxu0 0
        %1278 = vmatpush1.bf16.msra.mxu0 0
        %1279 = vmatprep.subr.bf16.mxu0 0
        %1280 = vmatpush1.bf16.msra.mxu0 0
        %1281 = vmatprep.mubr.bf16.mxu0 0
        %1282 = vmatmul.mubr.bf16.gmra.mrb[0].mxu0 %v1238
        %v1283 = vpop.f32.mrb[0].mxu0
        %v1284 = vadd.f32 0.0, %v1283
        %v1285 = vpop.f32.mrb[0].mxu0
        %v1286 = vpop.f32.mrb[0].mxu0
        %v1287 = vadd.f32 0.0, %v1286
        %v1288 = vpop.f32.mrb[0].mxu0
        %1289 = vmatprep.mubr.bf16.mxu0 0
        %1290 = vmatmul.mubr.bf16.gmra.mrb[0].mxu0 %v1241
        %v1291 = vpop.f32.mrb[0].mxu0
        %v1292 = vadd.f32 0.0, %v1291
        %v1293 = vpop.f32.mrb[0].mxu0
        %v1294 = vpop.f32.mrb[0].mxu0
        %v1295 = vadd.f32 0.0, %v1294
        %v1296 = vpop.f32.mrb[0].mxu0
        %1297 = vmatprep.mubr.bf16.mxu0 0
        %1298 = vmatmul.mubr.bf16.gmra.mrb[0].mxu0 %v1244
        %v1299 = vpop.f32.mrb[0].mxu0
        %v1300 = vadd.f32 0.0, %v1299
        %v1301 = vpop.f32.mrb[0].mxu0
        %v1302 = vpop.f32.mrb[0].mxu0
        %v1303 = vadd.f32 0.0, %v1302
        %v1304 = vpop.f32.mrb[0].mxu0
        %1305 = vmatprep.mubr.bf16.mxu0 0
        %1306 = vmatmul.mubr.bf16.gmra.mrb[0].mxu0 %v1247
        %v1307 = vpop.f32.mrb[0].mxu0
        %v1308 = vadd.f32 0.0, %v1307
        %v1309 = vpop.f32.mrb[0].mxu0
        %v1310 = vpop.f32.mrb[0].mxu0
        %v1311 = vadd.f32 0.0, %v1310
        %v1312 = vpop.f32.mrb[0].mxu0
        %1313 = vdwg.mxu0
        %vm1314 = vcmask 523264
        %v1315 = vsel %vm1314, %v1284, 1.0
        %v1316 = vsel %vm1314, %v1287, 1.0
        %v1317 = vsel %vm1314, %v1292, 1.0
        %v1318 = vsel %vm1314, %v1295, 1.0
        %v1319 = vsel %vm1314, %v1300, 1.0
        %v1320 = vsel %vm1314, %v1303, 1.0
        %v1321 = vsel %vm1314, %v1308, 1.0
        %v1322 = vsel %vm1314, %v1311, 1.0
        %v1323 = vld [vmem:[%s381] sm:$0xff]
        %v1324 = vld [vmem:[%s381 + $0x8] sm:$0xff]
        %v1325 = vld [vmem:[%s381 + $0x10] sm:$0xff]
        %v1326 = vld [vmem:[%s381 + $0x18] sm:$0xff]
        %v1327 = vld [vmem:[%s381 + $0x20] sm:$0xff]
        %v1328 = vld [vmem:[%s381 + $0x28] sm:$0xff]
        %v1329 = vld [vmem:[%s381 + $0x30] sm:$0xff]
        %v1330 = vld [vmem:[%s381 + $0x38] sm:$0xff]
        %v1331 = vld [vmem:[%s381 + $0x40] sm:$0xff]
        %v1332 = vld [vmem:[%s381 + $0x48] sm:$0xff]
        %v1333 = vld [vmem:[%s381 + $0x50] sm:$0xff]
        %v1334 = vld [vmem:[%s381 + $0x58] sm:$0xff]
        %v1335 = vld [vmem:[%s381 + $0x60] sm:$0xff]
        %v1336 = vld [vmem:[%s381 + $0x68] sm:$0xff]
        %v1337 = vld [vmem:[%s381 + $0x70] sm:$0xff]
        %v1338 = vld [vmem:[%s381 + $0x78] sm:$0xff]
        %v1339 = vld [vmem:[%s381 + $0x80] sm:$0xff]
        %v1340 = vld [vmem:[%s381 + $0x88] sm:$0xff]
        %v1341 = vld [vmem:[%s381 + $0x90] sm:$0xff]
        %v1342 = vld [vmem:[%s381 + $0x98] sm:$0xff]
        %v1343 = vld [vmem:[%s381 + $0xa0] sm:$0xff]
        %v1344 = vld [vmem:[%s381 + $0xa8] sm:$0xff]
        %v1345 = vld [vmem:[%s381 + $0xb0] sm:$0xff]
        %v1346 = vld [vmem:[%s381 + $0xb8] sm:$0xff]
        %v1347 = vld [vmem:[%s381 + $0xc0] sm:$0xff]
        %v1348 = vld [vmem:[%s381 + $0xc8] sm:$0xff]
        %v1349 = vld [vmem:[%s381 + $0xd0] sm:$0xff]
        %v1350 = vld [vmem:[%s381 + $0xd8] sm:$0xff]
        %v1351 = vld [vmem:[%s381 + $0xe0] sm:$0xff]
        %v1352 = vld [vmem:[%s381 + $0xe8] sm:$0xff]
        %v1353 = vld [vmem:[%s381 + $0xf0] sm:$0xff]
        %v1354 = vld [vmem:[%s381 + $0xf8] sm:$0xff]
        %v1355 = vld [vmem:[%s381 + $0x100] sm:$0xff]
        %v1356 = vld [vmem:[%s381 + $0x108] sm:$0xff]
        %v1357 = vld [vmem:[%s381 + $0x110] sm:$0xff]
        %v1358 = vld [vmem:[%s381 + $0x118] sm:$0xff]
        %v1359 = vld [vmem:[%s381 + $0x120] sm:$0xff]
        %v1360 = vld [vmem:[%s381 + $0x128] sm:$0xff]
        %v1361 = vld [vmem:[%s381 + $0x130] sm:$0xff]
        %v1362 = vld [vmem:[%s381 + $0x138] sm:$0xff]
        %v1363 = vld [vmem:[%s381 + $0x140] sm:$0xff]
        %v1364 = vld [vmem:[%s381 + $0x148] sm:$0xff]
        %v1365 = vld [vmem:[%s381 + $0x150] sm:$0xff]
        %v1366 = vld [vmem:[%s381 + $0x158] sm:$0xff]
        %v1367 = vld [vmem:[%s381 + $0x160] sm:$0xff]
        %v1368 = vld [vmem:[%s381 + $0x168] sm:$0xff]
        %v1369 = vld [vmem:[%s381 + $0x170] sm:$0xff]
        %v1370 = vld [vmem:[%s381 + $0x178] sm:$0xff]
        %v1371 = vld [vmem:[%s381 + $0x180] sm:$0xff]
        %v1372 = vld [vmem:[%s381 + $0x188] sm:$0xff]
        %v1373 = vld [vmem:[%s381 + $0x190] sm:$0xff]
        %v1374 = vld [vmem:[%s381 + $0x198] sm:$0xff]
        %v1375 = vld [vmem:[%s381 + $0x1a0] sm:$0xff]
        %v1376 = vld [vmem:[%s381 + $0x1a8] sm:$0xff]
        %v1377 = vld [vmem:[%s381 + $0x1b0] sm:$0xff]
        %v1378 = vld [vmem:[%s381 + $0x1b8] sm:$0xff]
        %v1379 = vld [vmem:[%s381 + $0x1c0] sm:$0xff]
        %v1380 = vld [vmem:[%s381 + $0x1c8] sm:$0xff]
        %v1381 = vld [vmem:[%s381 + $0x1d0] sm:$0xff]
        %v1382 = vld [vmem:[%s381 + $0x1d8] sm:$0xff]
        %v1383 = vld [vmem:[%s381 + $0x1e0] sm:$0xff]
        %v1384 = vld [vmem:[%s381 + $0x1e8] sm:$0xff]
        %v1385 = vld [vmem:[%s381 + $0x1f0] sm:$0xff]
        %v1386 = vld [vmem:[%s381 + $0x1f8] sm:$0xff]
        %v1387 = vpack.c.bf16 %v1324, %v1323
        %v1388 = vpack.c.bf16 %v1326, %v1325
        %v1389 = vpack.c.bf16 %v1328, %v1327
        %v1390 = vpack.c.bf16 %v1330, %v1329
        %v1391 = vpack.c.bf16 %v1332, %v1331
        %v1392 = vpack.c.bf16 %v1334, %v1333
        %v1393 = vpack.c.bf16 %v1336, %v1335
        %v1394 = vpack.c.bf16 %v1338, %v1337
        %v1395 = vpack.c.bf16 %v1340, %v1339
        %v1396 = vpack.c.bf16 %v1342, %v1341
        %v1397 = vpack.c.bf16 %v1344, %v1343
        %v1398 = vpack.c.bf16 %v1346, %v1345
        %v1399 = vpack.c.bf16 %v1348, %v1347
        %v1400 = vpack.c.bf16 %v1350, %v1349
        %v1401 = vpack.c.bf16 %v1352, %v1351
        %v1402 = vpack.c.bf16 %v1354, %v1353
        %v1403 = vpack.c.bf16 %v1356, %v1355
        %v1404 = vpack.c.bf16 %v1358, %v1357
        %v1405 = vpack.c.bf16 %v1360, %v1359
        %v1406 = vpack.c.bf16 %v1362, %v1361
        %v1407 = vpack.c.bf16 %v1364, %v1363
        %v1408 = vpack.c.bf16 %v1366, %v1365
        %v1409 = vpack.c.bf16 %v1368, %v1367
        %v1410 = vpack.c.bf16 %v1370, %v1369
        %v1411 = vpack.c.bf16 %v1372, %v1371
        %v1412 = vpack.c.bf16 %v1374, %v1373
        %v1413 = vpack.c.bf16 %v1376, %v1375
        %v1414 = vpack.c.bf16 %v1378, %v1377
        %v1415 = vpack.c.bf16 %v1380, %v1379
        %v1416 = vpack.c.bf16 %v1382, %v1381
        %v1417 = vpack.c.bf16 %v1384, %v1383
        %v1418 = vpack.c.bf16 %v1386, %v1385
        %v1419 = vld [vmem:[%s3] sm:$0xf]
        %v1420 = vld [vmem:[%s3 + $0x4] sm:$0xf]
        %v1421 = vld [vmem:[%s3 + $0x8] sm:$0xf]
        %v1422 = vld [vmem:[%s3 + $0xc] sm:$0xf]
        %v1423 = vld [vmem:[%s3 + $0x10] sm:$0x3]
        %v1429 = vunpack.c.l.b16 %v1419
        %v1430 = vunpack.c.l.b16 %v1420
        %v1431 = vunpack.c.l.b16 %v1421
        %v1432 = vunpack.c.l.b16 %v1422
        %v1433 = vunpack.c.l.b16 %v1423
        %v1434 = vpack.c.b16 %v1430, %v1429
        %v1435 = vpack.c.b16 %v1432, %v1431
        %v1436 = vpack.c.b16 %v1433, %v1433
        %vm1439 = vcmask 293888
        %v1441 = vsel %vm1439, %v1387, 0
        %v1444 = vsel %vm1439, %v1388, 0
        %v1447 = vsel %vm1439, %v1389, 0
        %v1450 = vsel %vm1439, %v1390, 0
        %v1453 = vsel %vm1439, %v1391, 0
        %v1456 = vsel %vm1439, %v1392, 0
        %v1459 = vsel %vm1439, %v1393, 0
        %v1462 = vsel %vm1439, %v1394, 0
        %v1465 = vsel %vm1439, %v1395, 0
        %v1468 = vsel %vm1439, %v1396, 0
        %v1471 = vsel %vm1439, %v1397, 0
        %v1474 = vsel %vm1439, %v1398, 0
        %v1477 = vsel %vm1439, %v1399, 0
        %v1480 = vsel %vm1439, %v1400, 0
        %v1483 = vsel %vm1439, %v1401, 0
        %v1486 = vsel %vm1439, %v1402, 0
        %v1489 = vsel %vm1439, %v1403, 0
        %v1492 = vsel %vm1439, %v1404, 0
        %v1495 = vsel %vm1439, %v1405, 0
        %v1498 = vsel %vm1439, %v1406, 0
        %v1501 = vsel %vm1439, %v1407, 0
        %v1504 = vsel %vm1439, %v1408, 0
        %v1507 = vsel %vm1439, %v1409, 0
        %v1510 = vsel %vm1439, %v1410, 0
        %v1513 = vsel %vm1439, %v1411, 0
        %v1516 = vsel %vm1439, %v1412, 0
        %v1519 = vsel %vm1439, %v1413, 0
        %v1522 = vsel %vm1439, %v1414, 0
        %v1525 = vsel %vm1439, %v1415, 0
        %v1528 = vsel %vm1439, %v1416, 0
        %v1531 = vsel %vm1439, %v1417, 0
        %v1534 = vsel %vm1439, %v1418, 0
        %vm1536 = vcmask 1041408
        %v1538 = vsel %vm1536, %v1436, 0
        %1540 = vmatprep.subr.bf16.mxu0 0
        %1541 = vmatpush1.bf16.msra.mxu0 %v1434
        %1542 = vmatprep.subr.bf16.mxu0 0
        %1543 = vmatpush1.bf16.msra.mxu0 %v1435
        %1544 = vmatprep.subr.bf16.mxu0 0
        %1545 = vmatpush1.bf16.msra.mxu0 %v1538
        %1546 = vmatprep.subr.bf16.mxu0 0
        %1547 = vmatpush1.bf16.msra.mxu0 0
        %1548 = vmatprep.subr.bf16.mxu0 0
        %1549 = vmatpush1.bf16.msra.mxu0 0
        %1550 = vmatprep.subr.bf16.mxu0 0
        %1551 = vmatpush1.bf16.msra.mxu0 0
        %1552 = vmatprep.subr.bf16.mxu0 0
        %1553 = vmatpush1.bf16.msra.mxu0 0
        %1554 = vmatprep.subr.bf16.mxu0 0
        %1555 = vmatpush1.bf16.msra.mxu0 0
        %1556 = vmatprep.subr.bf16.mxu0 0
        %1557 = vmatpush1.bf16.msra.mxu0 0
        %1558 = vmatprep.subr.bf16.mxu0 0
        %1559 = vmatpush1.bf16.msra.mxu0 0
        %1560 = vmatprep.subr.bf16.mxu0 0
        %1561 = vmatpush1.bf16.msra.mxu0 0
        %1562 = vmatprep.subr.bf16.mxu0 0
        %1563 = vmatpush1.bf16.msra.mxu0 0
        %1564 = vmatprep.subr.bf16.mxu0 0
        %1565 = vmatpush1.bf16.msra.mxu0 0
        %1566 = vmatprep.subr.bf16.mxu0 0
        %1567 = vmatpush1.bf16.msra.mxu0 0
        %1568 = vmatprep.subr.bf16.mxu0 0
        %1569 = vmatpush1.bf16.msra.mxu0 0
        %1570 = vmatprep.subr.bf16.mxu0 0
        %1571 = vmatpush1.bf16.msra.mxu0 0
        %1572 = vmatprep.mubr.bf16.mxu0 0
        %1573 = vmatmul.mubr.bf16.gmra.mrb[0].mxu0 %v1441
        %v1574 = vpop.f32.mrb[0].mxu0
        %v1575 = vadd.f32 0.0, %v1574
        %v1576 = vpop.f32.mrb[0].mxu0
        %v1577 = vpop.f32.mrb[0].mxu0
        %v1578 = vadd.f32 0.0, %v1577
        %v1579 = vpop.f32.mrb[0].mxu0
        %1580 = vmatprep.mubr.bf16.mxu0 0
        %1581 = vmatmul.mubr.bf16.gmra.mrb[0].mxu0 %v1444
        %v1582 = vpop.f32.mrb[0].mxu0
        %v1583 = vadd.f32 0.0, %v1582
        %v1584 = vpop.f32.mrb[0].mxu0
        %v1585 = vpop.f32.mrb[0].mxu0
        %v1586 = vadd.f32 0.0, %v1585
        %v1587 = vpop.f32.mrb[0].mxu0
        %1588 = vmatprep.mubr.bf16.mxu0 0
        %1589 = vmatmul.mubr.bf16.gmra.mrb[0].mxu0 %v1447
        %v1590 = vpop.f32.mrb[0].mxu0
        %v1591 = vadd.f32 0.0, %v1590
        %v1592 = vpop.f32.mrb[0].mxu0
        %v1593 = vpop.f32.mrb[0].mxu0
        %v1594 = vadd.f32 0.0, %v1593
        %v1595 = vpop.f32.mrb[0].mxu0
        %1596 = vmatprep.mubr.bf16.mxu0 0
        %1597 = vmatmul.mubr.bf16.gmra.mrb[0].mxu0 %v1450
        %v1598 = vpop.f32.mrb[0].mxu0
        %v1599 = vadd.f32 0.0, %v1598
        %v1600 = vpop.f32.mrb[0].mxu0
        %v1601 = vpop.f32.mrb[0].mxu0
        %v1602 = vadd.f32 0.0, %v1601
        %v1603 = vpop.f32.mrb[0].mxu0
        %1604 = vmatprep.mubr.bf16.mxu0 0
        %1605 = vmatmul.mubr.bf16.gmra.mrb[0].mxu0 %v1453
        %v1606 = vpop.f32.mrb[0].mxu0
        %v1607 = vadd.f32 0.0, %v1606
        %v1608 = vpop.f32.mrb[0].mxu0
        %v1609 = vpop.f32.mrb[0].mxu0
        %v1610 = vadd.f32 0.0, %v1609
        %v1611 = vpop.f32.mrb[0].mxu0
        %1612 = vmatprep.mubr.bf16.mxu0 0
        %1613 = vmatmul.mubr.bf16.gmra.mrb[0].mxu0 %v1456
        %v1614 = vpop.f32.mrb[0].mxu0
        %v1615 = vadd.f32 0.0, %v1614
        %v1616 = vpop.f32.mrb[0].mxu0
        %v1617 = vpop.f32.mrb[0].mxu0
        %v1618 = vadd.f32 0.0, %v1617
        %v1619 = vpop.f32.mrb[0].mxu0
        %1620 = vmatprep.mubr.bf16.mxu0 0
        %1621 = vmatmul.mubr.bf16.gmra.mrb[0].mxu0 %v1459
        %v1622 = vpop.f32.mrb[0].mxu0
        %v1623 = vadd.f32 0.0, %v1622
        %v1624 = vpop.f32.mrb[0].mxu0
        %v1625 = vpop.f32.mrb[0].mxu0
        %v1626 = vadd.f32 0.0, %v1625
        %v1627 = vpop.f32.mrb[0].mxu0
        %1628 = vmatprep.mubr.bf16.mxu0 0
        %1629 = vmatmul.mubr.bf16.gmra.mrb[0].mxu0 %v1462
        %v1630 = vpop.f32.mrb[0].mxu0
        %v1631 = vadd.f32 0.0, %v1630
        %v1632 = vpop.f32.mrb[0].mxu0
        %v1633 = vpop.f32.mrb[0].mxu0
        %v1634 = vadd.f32 0.0, %v1633
        %v1635 = vpop.f32.mrb[0].mxu0
        %1636 = vmatprep.mubr.bf16.mxu0 0
        %1637 = vmatmul.mubr.bf16.gmra.mrb[0].mxu0 %v1465
        %v1638 = vpop.f32.mrb[0].mxu0
        %v1639 = vadd.f32 0.0, %v1638
        %v1640 = vpop.f32.mrb[0].mxu0
        %v1641 = vpop.f32.mrb[0].mxu0
        %v1642 = vadd.f32 0.0, %v1641
        %v1643 = vpop.f32.mrb[0].mxu0
        %1644 = vmatprep.mubr.bf16.mxu0 0
        %1645 = vmatmul.mubr.bf16.gmra.mrb[0].mxu0 %v1468
        %v1646 = vpop.f32.mrb[0].mxu0
        %v1647 = vadd.f32 0.0, %v1646
        %v1648 = vpop.f32.mrb[0].mxu0
        %v1649 = vpop.f32.mrb[0].mxu0
        %v1650 = vadd.f32 0.0, %v1649
        %v1651 = vpop.f32.mrb[0].mxu0
        %1652 = vmatprep.mubr.bf16.mxu0 0
        %1653 = vmatmul.mubr.bf16.gmra.mrb[0].mxu0 %v1471
        %v1654 = vpop.f32.mrb[0].mxu0
        %v1655 = vadd.f32 0.0, %v1654
        %v1656 = vpop.f32.mrb[0].mxu0
        %v1657 = vpop.f32.mrb[0].mxu0
        %v1658 = vadd.f32 0.0, %v1657
        %v1659 = vpop.f32.mrb[0].mxu0
        %1660 = vmatprep.mubr.bf16.mxu0 0
        %1661 = vmatmul.mubr.bf16.gmra.mrb[0].mxu0 %v1474
        %v1662 = vpop.f32.mrb[0].mxu0
        %v1663 = vadd.f32 0.0, %v1662
        %v1664 = vpop.f32.mrb[0].mxu0
        %v1665 = vpop.f32.mrb[0].mxu0
        %v1666 = vadd.f32 0.0, %v1665
        %v1667 = vpop.f32.mrb[0].mxu0
        %1668 = vmatprep.mubr.bf16.mxu0 0
        %1669 = vmatmul.mubr.bf16.gmra.mrb[0].mxu0 %v1477
        %v1670 = vpop.f32.mrb[0].mxu0
        %v1671 = vadd.f32 0.0, %v1670
        %v1672 = vpop.f32.mrb[0].mxu0
        %v1673 = vpop.f32.mrb[0].mxu0
        %v1674 = vadd.f32 0.0, %v1673
        %v1675 = vpop.f32.mrb[0].mxu0
        %1676 = vmatprep.mubr.bf16.mxu0 0
        %1677 = vmatmul.mubr.bf16.gmra.mrb[0].mxu0 %v1480
        %v1678 = vpop.f32.mrb[0].mxu0
        %v1679 = vadd.f32 0.0, %v1678
        %v1680 = vpop.f32.mrb[0].mxu0
        %v1681 = vpop.f32.mrb[0].mxu0
        %v1682 = vadd.f32 0.0, %v1681
        %v1683 = vpop.f32.mrb[0].mxu0
        %1684 = vmatprep.mubr.bf16.mxu0 0
        %1685 = vmatmul.mubr.bf16.gmra.mrb[0].mxu0 %v1483
        %v1686 = vpop.f32.mrb[0].mxu0
        %v1687 = vadd.f32 0.0, %v1686
        %v1688 = vpop.f32.mrb[0].mxu0
        %v1689 = vpop.f32.mrb[0].mxu0
        %v1690 = vadd.f32 0.0, %v1689
        %v1691 = vpop.f32.mrb[0].mxu0
        %1692 = vmatprep.mubr.bf16.mxu0 0
        %1693 = vmatmul.mubr.bf16.gmra.mrb[0].mxu0 %v1486
        %v1694 = vpop.f32.mrb[0].mxu0
        %v1695 = vadd.f32 0.0, %v1694
        %v1696 = vpop.f32.mrb[0].mxu0
        %v1697 = vpop.f32.mrb[0].mxu0
        %v1698 = vadd.f32 0.0, %v1697
        %v1699 = vpop.f32.mrb[0].mxu0
        %1700 = vmatprep.mubr.bf16.mxu0 0
        %1701 = vmatmul.mubr.bf16.gmra.mrb[0].mxu0 %v1489
        %v1702 = vpop.f32.mrb[0].mxu0
        %v1703 = vadd.f32 0.0, %v1702
        %v1704 = vpop.f32.mrb[0].mxu0
        %v1705 = vpop.f32.mrb[0].mxu0
        %v1706 = vadd.f32 0.0, %v1705
        %v1707 = vpop.f32.mrb[0].mxu0
        %1708 = vmatprep.mubr.bf16.mxu0 0
        %1709 = vmatmul.mubr.bf16.gmra.mrb[0].mxu0 %v1492
        %v1710 = vpop.f32.mrb[0].mxu0
        %v1711 = vadd.f32 0.0, %v1710
        %v1712 = vpop.f32.mrb[0].mxu0
        %v1713 = vpop.f32.mrb[0].mxu0
        %v1714 = vadd.f32 0.0, %v1713
        %v1715 = vpop.f32.mrb[0].mxu0
        %1716 = vmatprep.mubr.bf16.mxu0 0
        %1717 = vmatmul.mubr.bf16.gmra.mrb[0].mxu0 %v1495
        %v1718 = vpop.f32.mrb[0].mxu0
        %v1719 = vadd.f32 0.0, %v1718
        %v1720 = vpop.f32.mrb[0].mxu0
        %v1721 = vpop.f32.mrb[0].mxu0
        %v1722 = vadd.f32 0.0, %v1721
        %v1723 = vpop.f32.mrb[0].mxu0
        %1724 = vmatprep.mubr.bf16.mxu0 0
        %1725 = vmatmul.mubr.bf16.gmra.mrb[0].mxu0 %v1498
        %v1726 = vpop.f32.mrb[0].mxu0
        %v1727 = vadd.f32 0.0, %v1726
        %v1728 = vpop.f32.mrb[0].mxu0
        %v1729 = vpop.f32.mrb[0].mxu0
        %v1730 = vadd.f32 0.0, %v1729
        %v1731 = vpop.f32.mrb[0].mxu0
        %1732 = vmatprep.mubr.bf16.mxu0 0
        %1733 = vmatmul.mubr.bf16.gmra.mrb[0].mxu0 %v1501
        %v1734 = vpop.f32.mrb[0].mxu0
        %v1735 = vadd.f32 0.0, %v1734
        %v1736 = vpop.f32.mrb[0].mxu0
        %v1737 = vpop.f32.mrb[0].mxu0
        %v1738 = vadd.f32 0.0, %v1737
        %v1739 = vpop.f32.mrb[0].mxu0
        %1740 = vmatprep.mubr.bf16.mxu0 0
        %1741 = vmatmul.mubr.bf16.gmra.mrb[0].mxu0 %v1504
        %v1742 = vpop.f32.mrb[0].mxu0
        %v1743 = vadd.f32 0.0, %v1742
        %v1744 = vpop.f32.mrb[0].mxu0
        %v1745 = vpop.f32.mrb[0].mxu0
        %v1746 = vadd.f32 0.0, %v1745
        %v1747 = vpop.f32.mrb[0].mxu0
        %1748 = vmatprep.mubr.bf16.mxu0 0
        %1749 = vmatmul.mubr.bf16.gmra.mrb[0].mxu0 %v1507
        %v1750 = vpop.f32.mrb[0].mxu0
        %v1751 = vadd.f32 0.0, %v1750
        %v1752 = vpop.f32.mrb[0].mxu0
        %v1753 = vpop.f32.mrb[0].mxu0
        %v1754 = vadd.f32 0.0, %v1753
        %v1755 = vpop.f32.mrb[0].mxu0
        %1756 = vmatprep.mubr.bf16.mxu0 0
        %1757 = vmatmul.mubr.bf16.gmra.mrb[0].mxu0 %v1510
        %v1758 = vpop.f32.mrb[0].mxu0
        %v1759 = vadd.f32 0.0, %v1758
        %v1760 = vpop.f32.mrb[0].mxu0
        %v1761 = vpop.f32.mrb[0].mxu0
        %v1762 = vadd.f32 0.0, %v1761
        %v1763 = vpop.f32.mrb[0].mxu0
        %1764 = vmatprep.mubr.bf16.mxu0 0
        %1765 = vmatmul.mubr.bf16.gmra.mrb[0].mxu0 %v1513
        %v1766 = vpop.f32.mrb[0].mxu0
        %v1767 = vadd.f32 0.0, %v1766
        %v1768 = vpop.f32.mrb[0].mxu0
        %v1769 = vpop.f32.mrb[0].mxu0
        %v1770 = vadd.f32 0.0, %v1769
        %v1771 = vpop.f32.mrb[0].mxu0
        %1772 = vmatprep.mubr.bf16.mxu0 0
        %1773 = vmatmul.mubr.bf16.gmra.mrb[0].mxu0 %v1516
        %v1774 = vpop.f32.mrb[0].mxu0
        %v1775 = vadd.f32 0.0, %v1774
        %v1776 = vpop.f32.mrb[0].mxu0
        %v1777 = vpop.f32.mrb[0].mxu0
        %v1778 = vadd.f32 0.0, %v1777
        %v1779 = vpop.f32.mrb[0].mxu0
        %1780 = vmatprep.mubr.bf16.mxu0 0
        %1781 = vmatmul.mubr.bf16.gmra.mrb[0].mxu0 %v1519
        %v1782 = vpop.f32.mrb[0].mxu0
        %v1783 = vadd.f32 0.0, %v1782
        %v1784 = vpop.f32.mrb[0].mxu0
        %v1785 = vpop.f32.mrb[0].mxu0
        %v1786 = vadd.f32 0.0, %v1785
        %v1787 = vpop.f32.mrb[0].mxu0
        %1788 = vmatprep.mubr.bf16.mxu0 0
        %1789 = vmatmul.mubr.bf16.gmra.mrb[0].mxu0 %v1522
        %v1790 = vpop.f32.mrb[0].mxu0
        %v1791 = vadd.f32 0.0, %v1790
        %v1792 = vpop.f32.mrb[0].mxu0
        %v1793 = vpop.f32.mrb[0].mxu0
        %v1794 = vadd.f32 0.0, %v1793
        %v1795 = vpop.f32.mrb[0].mxu0
        %1796 = vmatprep.mubr.bf16.mxu0 0
        %1797 = vmatmul.mubr.bf16.gmra.mrb[0].mxu0 %v1525
        %v1798 = vpop.f32.mrb[0].mxu0
        %v1799 = vadd.f32 0.0, %v1798
        %v1800 = vpop.f32.mrb[0].mxu0
        %v1801 = vpop.f32.mrb[0].mxu0
        %v1802 = vadd.f32 0.0, %v1801
        %v1803 = vpop.f32.mrb[0].mxu0
        %1804 = vmatprep.mubr.bf16.mxu0 0
        %1805 = vmatmul.mubr.bf16.gmra.mrb[0].mxu0 %v1528
        %v1806 = vpop.f32.mrb[0].mxu0
        %v1807 = vadd.f32 0.0, %v1806
        %v1808 = vpop.f32.mrb[0].mxu0
        %v1809 = vpop.f32.mrb[0].mxu0
        %v1810 = vadd.f32 0.0, %v1809
        %v1811 = vpop.f32.mrb[0].mxu0
        %1812 = vmatprep.mubr.bf16.mxu0 0
        %1813 = vmatmul.mubr.bf16.gmra.mrb[0].mxu0 %v1531
        %v1814 = vpop.f32.mrb[0].mxu0
        %v1815 = vadd.f32 0.0, %v1814
        %v1816 = vpop.f32.mrb[0].mxu0
        %v1817 = vpop.f32.mrb[0].mxu0
        %v1818 = vadd.f32 0.0, %v1817
        %v1819 = vpop.f32.mrb[0].mxu0
        %1820 = vmatprep.mubr.bf16.mxu0 0
        %1821 = vmatmul.mubr.bf16.gmra.mrb[0].mxu0 %v1534
        %v1822 = vpop.f32.mrb[0].mxu0
        %v1823 = vadd.f32 0.0, %v1822
        %v1824 = vpop.f32.mrb[0].mxu0
        %v1825 = vpop.f32.mrb[0].mxu0
        %v1826 = vadd.f32 0.0, %v1825
        %v1827 = vpop.f32.mrb[0].mxu0
        %1828 = vdwg.mxu0
        %v1837 = vcombine.high %v1315, %v1315
        %v1839 = vunpack.c.l.s4 1966171168
        %v1840 = vunpack.c.0.s8 %v1839
        %v1841 = vlaneseq
        %v1842 = vshrl.u32 %v1841, 7
        %v1843 = vsub.s32 %v1840, %v1842
        %v1844 = vrot.slane %v1315, %v1843
        %v1846 = vunpack.c.l.s4 1966171168
        %v1847 = vunpack.c.0.s8 %v1846
        %v1848 = vlaneseq
        %v1849 = vshrl.u32 %v1848, 7
        %v1850 = vsub.s32 %v1847, %v1849
        %v1851 = vrot.slane %v1837, %v1850
        %v1852 = vcombine.high %v1844, %v1844
        %v1853 = vcombine.high %v1851, %v1851
        %v1855 = vunpack.c.l.s4 1966171168
        %v1856 = vunpack.c.0.s8 %v1855
        %v1857 = vlaneseq
        %v1858 = vshrl.u32 %v1857, 7
        %v1859 = vsub.s32 %v1856, %v1858
        %v1860 = vrot.slane %v1844, %v1859
        %v1862 = vunpack.c.l.s4 1966171168
        %v1863 = vunpack.c.0.s8 %v1862
        %v1864 = vlaneseq
        %v1865 = vshrl.u32 %v1864, 7
        %v1866 = vsub.s32 %v1863, %v1865
        %v1867 = vrot.slane %v1851, %v1866
        %v1869 = vunpack.c.l.s4 1966171168
        %v1870 = vunpack.c.0.s8 %v1869
        %v1871 = vlaneseq
        %v1872 = vshrl.u32 %v1871, 7
        %v1873 = vsub.s32 %v1870, %v1872
        %v1874 = vrot.slane %v1852, %v1873
        %v1876 = vunpack.c.l.s4 1966171168
        %v1877 = vunpack.c.0.s8 %v1876
        %v1878 = vlaneseq
        %v1879 = vshrl.u32 %v1878, 7
        %v1880 = vsub.s32 %v1877, %v1879
        %v1881 = vrot.slane %v1853, %v1880
        %v1882 = vcombine.high %v1860, %v1860
        %v1883 = vcombine.high %v1867, %v1867
        %v1884 = vcombine.high %v1874, %v1874
        %v1885 = vcombine.high %v1881, %v1881
        %v1886 = vcombine.high %v1316, %v1316
        %v1888 = vunpack.c.l.s4 1966171168
        %v1889 = vunpack.c.0.s8 %v1888
        %v1890 = vlaneseq
        %v1891 = vshrl.u32 %v1890, 7
        %v1892 = vsub.s32 %v1889, %v1891
        %v1893 = vrot.slane %v1316, %v1892
        %v1895 = vunpack.c.l.s4 1966171168
        %v1896 = vunpack.c.0.s8 %v1895
        %v1897 = vlaneseq
        %v1898 = vshrl.u32 %v1897, 7
        %v1899 = vsub.s32 %v1896, %v1898
        %v1900 = vrot.slane %v1886, %v1899
        %v1901 = vcombine.high %v1893, %v1893
        %v1902 = vcombine.high %v1900, %v1900
        %v1904 = vunpack.c.l.s4 1966171168
        %v1905 = vunpack.c.0.s8 %v1904
        %v1906 = vlaneseq
        %v1907 = vshrl.u32 %v1906, 7
        %v1908 = vsub.s32 %v1905, %v1907
        %v1909 = vrot.slane %v1893, %v1908
        %v1911 = vunpack.c.l.s4 1966171168
        %v1912 = vunpack.c.0.s8 %v1911
        %v1913 = vlaneseq
        %v1914 = vshrl.u32 %v1913, 7
        %v1915 = vsub.s32 %v1912, %v1914
        %v1916 = vrot.slane %v1900, %v1915
        %v1918 = vunpack.c.l.s4 1966171168
        %v1919 = vunpack.c.0.s8 %v1918
        %v1920 = vlaneseq
        %v1921 = vshrl.u32 %v1920, 7
        %v1922 = vsub.s32 %v1919, %v1921
        %v1923 = vrot.slane %v1901, %v1922
        %v1925 = vunpack.c.l.s4 1966171168
        %v1926 = vunpack.c.0.s8 %v1925
        %v1927 = vlaneseq
        %v1928 = vshrl.u32 %v1927, 7
        %v1929 = vsub.s32 %v1926, %v1928
        %v1930 = vrot.slane %v1902, %v1929
        %v1931 = vcombine.high %v1909, %v1909
        %v1932 = vcombine.high %v1916, %v1916
        %v1933 = vcombine.high %v1923, %v1923
        %v1934 = vcombine.high %v1930, %v1930
        %v1935 = vcombine.high %v1317, %v1317
        %v1937 = vunpack.c.l.s4 1966171168
        %v1938 = vunpack.c.0.s8 %v1937
        %v1939 = vlaneseq
        %v1940 = vshrl.u32 %v1939, 7
        %v1941 = vsub.s32 %v1938, %v1940
        %v1942 = vrot.slane %v1317, %v1941
        %v1944 = vunpack.c.l.s4 1966171168
        %v1945 = vunpack.c.0.s8 %v1944
        %v1946 = vlaneseq
        %v1947 = vshrl.u32 %v1946, 7
        %v1948 = vsub.s32 %v1945, %v1947
        %v1949 = vrot.slane %v1935, %v1948
        %v1950 = vcombine.high %v1942, %v1942
        %v1951 = vcombine.high %v1949, %v1949
        %v1953 = vunpack.c.l.s4 1966171168
        %v1954 = vunpack.c.0.s8 %v1953
        %v1955 = vlaneseq
        %v1956 = vshrl.u32 %v1955, 7
        %v1957 = vsub.s32 %v1954, %v1956
        %v1958 = vrot.slane %v1942, %v1957
        %v1960 = vunpack.c.l.s4 1966171168
        %v1961 = vunpack.c.0.s8 %v1960
        %v1962 = vlaneseq
        %v1963 = vshrl.u32 %v1962, 7
        %v1964 = vsub.s32 %v1961, %v1963
        %v1965 = vrot.slane %v1949, %v1964
        %v1967 = vunpack.c.l.s4 1966171168
        %v1968 = vunpack.c.0.s8 %v1967
        %v1969 = vlaneseq
        %v1970 = vshrl.u32 %v1969, 7
        %v1971 = vsub.s32 %v1968, %v1970
        %v1972 = vrot.slane %v1950, %v1971
        %v1974 = vunpack.c.l.s4 1966171168
        %v1975 = vunpack.c.0.s8 %v1974
        %v1976 = vlaneseq
        %v1977 = vshrl.u32 %v1976, 7
        %v1978 = vsub.s32 %v1975, %v1977
        %v1979 = vrot.slane %v1951, %v1978
        %v1980 = vcombine.high %v1958, %v1958
        %v1981 = vcombine.high %v1965, %v1965
        %v1982 = vcombine.high %v1972, %v1972
        %v1983 = vcombine.high %v1979, %v1979
        %v1984 = vcombine.high %v1318, %v1318
        %v1986 = vunpack.c.l.s4 1966171168
        %v1987 = vunpack.c.0.s8 %v1986
        %v1988 = vlaneseq
        %v1989 = vshrl.u32 %v1988, 7
        %v1990 = vsub.s32 %v1987, %v1989
        %v1991 = vrot.slane %v1318, %v1990
        %v1993 = vunpack.c.l.s4 1966171168
        %v1994 = vunpack.c.0.s8 %v1993
        %v1995 = vlaneseq
        %v1996 = vshrl.u32 %v1995, 7
        %v1997 = vsub.s32 %v1994, %v1996
        %v1998 = vrot.slane %v1984, %v1997
        %v1999 = vcombine.high %v1991, %v1991
        %v2000 = vcombine.high %v1998, %v1998
        %v2002 = vunpack.c.l.s4 1966171168
        %v2003 = vunpack.c.0.s8 %v2002
        %v2004 = vlaneseq
        %v2005 = vshrl.u32 %v2004, 7
        %v2006 = vsub.s32 %v2003, %v2005
        %v2007 = vrot.slane %v1991, %v2006
        %v2009 = vunpack.c.l.s4 1966171168
        %v2010 = vunpack.c.0.s8 %v2009
        %v2011 = vlaneseq
        %v2012 = vshrl.u32 %v2011, 7
        %v2013 = vsub.s32 %v2010, %v2012
        %v2014 = vrot.slane %v1998, %v2013
        %v2016 = vunpack.c.l.s4 1966171168
        %v2017 = vunpack.c.0.s8 %v2016
        %v2018 = vlaneseq
        %v2019 = vshrl.u32 %v2018, 7
        %v2020 = vsub.s32 %v2017, %v2019
        %v2021 = vrot.slane %v1999, %v2020
        %v2023 = vunpack.c.l.s4 1966171168
        %v2024 = vunpack.c.0.s8 %v2023
        %v2025 = vlaneseq
        %v2026 = vshrl.u32 %v2025, 7
        %v2027 = vsub.s32 %v2024, %v2026
        %v2028 = vrot.slane %v2000, %v2027
        %v2029 = vcombine.high %v2007, %v2007
        %v2030 = vcombine.high %v2014, %v2014
        %v2031 = vcombine.high %v2021, %v2021
        %v2032 = vcombine.high %v2028, %v2028
        %v2033 = vcombine.high %v1319, %v1319
        %v2035 = vunpack.c.l.s4 1966171168
        %v2036 = vunpack.c.0.s8 %v2035
        %v2037 = vlaneseq
        %v2038 = vshrl.u32 %v2037, 7
        %v2039 = vsub.s32 %v2036, %v2038
        %v2040 = vrot.slane %v1319, %v2039
        %v2042 = vunpack.c.l.s4 1966171168
        %v2043 = vunpack.c.0.s8 %v2042
        %v2044 = vlaneseq
        %v2045 = vshrl.u32 %v2044, 7
        %v2046 = vsub.s32 %v2043, %v2045
        %v2047 = vrot.slane %v2033, %v2046
        %v2048 = vcombine.high %v2040, %v2040
        %v2049 = vcombine.high %v2047, %v2047
        %v2051 = vunpack.c.l.s4 1966171168
        %v2052 = vunpack.c.0.s8 %v2051
        %v2053 = vlaneseq
        %v2054 = vshrl.u32 %v2053, 7
        %v2055 = vsub.s32 %v2052, %v2054
        %v2056 = vrot.slane %v2040, %v2055
        %v2058 = vunpack.c.l.s4 1966171168
        %v2059 = vunpack.c.0.s8 %v2058
        %v2060 = vlaneseq
        %v2061 = vshrl.u32 %v2060, 7
        %v2062 = vsub.s32 %v2059, %v2061
        %v2063 = vrot.slane %v2047, %v2062
        %v2065 = vunpack.c.l.s4 1966171168
        %v2066 = vunpack.c.0.s8 %v2065
        %v2067 = vlaneseq
        %v2068 = vshrl.u32 %v2067, 7
        %v2069 = vsub.s32 %v2066, %v2068
        %v2070 = vrot.slane %v2048, %v2069
        %v2072 = vunpack.c.l.s4 1966171168
        %v2073 = vunpack.c.0.s8 %v2072
        %v2074 = vlaneseq
        %v2075 = vshrl.u32 %v2074, 7
        %v2076 = vsub.s32 %v2073, %v2075
        %v2077 = vrot.slane %v2049, %v2076
        %v2078 = vcombine.high %v2056, %v2056
        %v2079 = vcombine.high %v2063, %v2063
        %v2080 = vcombine.high %v2070, %v2070
        %v2081 = vcombine.high %v2077, %v2077
        %v2082 = vcombine.high %v1320, %v1320
        %v2084 = vunpack.c.l.s4 1966171168
        %v2085 = vunpack.c.0.s8 %v2084
        %v2086 = vlaneseq
        %v2087 = vshrl.u32 %v2086, 7
        %v2088 = vsub.s32 %v2085, %v2087
        %v2089 = vrot.slane %v1320, %v2088
        %v2091 = vunpack.c.l.s4 1966171168
        %v2092 = vunpack.c.0.s8 %v2091
        %v2093 = vlaneseq
        %v2094 = vshrl.u32 %v2093, 7
        %v2095 = vsub.s32 %v2092, %v2094
        %v2096 = vrot.slane %v2082, %v2095
        %v2097 = vcombine.high %v2089, %v2089
        %v2098 = vcombine.high %v2096, %v2096
        %v2100 = vunpack.c.l.s4 1966171168
        %v2101 = vunpack.c.0.s8 %v2100
        %v2102 = vlaneseq
        %v2103 = vshrl.u32 %v2102, 7
        %v2104 = vsub.s32 %v2101, %v2103
        %v2105 = vrot.slane %v2089, %v2104
        %v2107 = vunpack.c.l.s4 1966171168
        %v2108 = vunpack.c.0.s8 %v2107
        %v2109 = vlaneseq
        %v2110 = vshrl.u32 %v2109, 7
        %v2111 = vsub.s32 %v2108, %v2110
        %v2112 = vrot.slane %v2096, %v2111
        %v2114 = vunpack.c.l.s4 1966171168
        %v2115 = vunpack.c.0.s8 %v2114
        %v2116 = vlaneseq
        %v2117 = vshrl.u32 %v2116, 7
        %v2118 = vsub.s32 %v2115, %v2117
        %v2119 = vrot.slane %v2097, %v2118
        %v2121 = vunpack.c.l.s4 1966171168
        %v2122 = vunpack.c.0.s8 %v2121
        %v2123 = vlaneseq
        %v2124 = vshrl.u32 %v2123, 7
        %v2125 = vsub.s32 %v2122, %v2124
        %v2126 = vrot.slane %v2098, %v2125
        %v2127 = vcombine.high %v2105, %v2105
        %v2128 = vcombine.high %v2112, %v2112
        %v2129 = vcombine.high %v2119, %v2119
        %v2130 = vcombine.high %v2126, %v2126
        %v2131 = vcombine.high %v1321, %v1321
        %v2133 = vunpack.c.l.s4 1966171168
        %v2134 = vunpack.c.0.s8 %v2133
        %v2135 = vlaneseq
        %v2136 = vshrl.u32 %v2135, 7
        %v2137 = vsub.s32 %v2134, %v2136
        %v2138 = vrot.slane %v1321, %v2137
        %v2140 = vunpack.c.l.s4 1966171168
        %v2141 = vunpack.c.0.s8 %v2140
        %v2142 = vlaneseq
        %v2143 = vshrl.u32 %v2142, 7
        %v2144 = vsub.s32 %v2141, %v2143
        %v2145 = vrot.slane %v2131, %v2144
        %v2146 = vcombine.high %v2138, %v2138
        %v2147 = vcombine.high %v2145, %v2145
        %v2149 = vunpack.c.l.s4 1966171168
        %v2150 = vunpack.c.0.s8 %v2149
        %v2151 = vlaneseq
        %v2152 = vshrl.u32 %v2151, 7
        %v2153 = vsub.s32 %v2150, %v2152
        %v2154 = vrot.slane %v2138, %v2153
        %v2156 = vunpack.c.l.s4 1966171168
        %v2157 = vunpack.c.0.s8 %v2156
        %v2158 = vlaneseq
        %v2159 = vshrl.u32 %v2158, 7
        %v2160 = vsub.s32 %v2157, %v2159
        %v2161 = vrot.slane %v2145, %v2160
        %v2163 = vunpack.c.l.s4 1966171168
        %v2164 = vunpack.c.0.s8 %v2163
        %v2165 = vlaneseq
        %v2166 = vshrl.u32 %v2165, 7
        %v2167 = vsub.s32 %v2164, %v2166
        %v2168 = vrot.slane %v2146, %v2167
        %v2170 = vunpack.c.l.s4 1966171168
        %v2171 = vunpack.c.0.s8 %v2170
        %v2172 = vlaneseq
        %v2173 = vshrl.u32 %v2172, 7
        %v2174 = vsub.s32 %v2171, %v2173
        %v2175 = vrot.slane %v2147, %v2174
        %v2176 = vcombine.high %v2154, %v2154
        %v2177 = vcombine.high %v2161, %v2161
        %v2178 = vcombine.high %v2168, %v2168
        %v2179 = vcombine.high %v2175, %v2175
        %v2180 = vcombine.high %v1322, %v1322
        %v2182 = vunpack.c.l.s4 1966171168
        %v2183 = vunpack.c.0.s8 %v2182
        %v2184 = vlaneseq
        %v2185 = vshrl.u32 %v2184, 7
        %v2186 = vsub.s32 %v2183, %v2185
        %v2187 = vrot.slane %v1322, %v2186
        %v2189 = vunpack.c.l.s4 1966171168
        %v2190 = vunpack.c.0.s8 %v2189
        %v2191 = vlaneseq
        %v2192 = vshrl.u32 %v2191, 7
        %v2193 = vsub.s32 %v2190, %v2192
        %v2194 = vrot.slane %v2180, %v2193
        %v2195 = vcombine.high %v2187, %v2187
        %v2196 = vcombine.high %v2194, %v2194
        %v2198 = vunpack.c.l.s4 1966171168
        %v2199 = vunpack.c.0.s8 %v2198
        %v2200 = vlaneseq
        %v2201 = vshrl.u32 %v2200, 7
        %v2202 = vsub.s32 %v2199, %v2201
        %v2203 = vrot.slane %v2187, %v2202
        %v2205 = vunpack.c.l.s4 1966171168
        %v2206 = vunpack.c.0.s8 %v2205
        %v2207 = vlaneseq
        %v2208 = vshrl.u32 %v2207, 7
        %v2209 = vsub.s32 %v2206, %v2208
        %v2210 = vrot.slane %v2194, %v2209
        %v2212 = vunpack.c.l.s4 1966171168
        %v2213 = vunpack.c.0.s8 %v2212
        %v2214 = vlaneseq
        %v2215 = vshrl.u32 %v2214, 7
        %v2216 = vsub.s32 %v2213, %v2215
        %v2217 = vrot.slane %v2195, %v2216
        %v2219 = vunpack.c.l.s4 1966171168
        %v2220 = vunpack.c.0.s8 %v2219
        %v2221 = vlaneseq
        %v2222 = vshrl.u32 %v2221, 7
        %v2223 = vsub.s32 %v2220, %v2222
        %v2224 = vrot.slane %v2196, %v2223
        %v2225 = vcombine.high %v2203, %v2203
        %v2226 = vcombine.high %v2210, %v2210
        %v2227 = vcombine.high %v2217, %v2217
        %v2228 = vcombine.high %v2224, %v2224
        %v2229 = vlaneseq
        %v2230 = vshrl.u32 %v2229, 7
        %v2231 = vsub.s32 0, %v2230
        %v2232 = vrot.slane %v1860, %v2231
        %v2233 = vlaneseq
        %v2234 = vshrl.u32 %v2233, 7
        %v2235 = vsub.s32 0, %v2234
        %v2236 = vrot.slane %v1874, %v2235
        %v2237 = vlaneseq
        %v2238 = vshrl.u32 %v2237, 7
        %v2239 = vsub.s32 0, %v2238
        %v2240 = vrot.slane %v1882, %v2239
        %v2241 = vlaneseq
        %v2242 = vshrl.u32 %v2241, 7
        %v2243 = vsub.s32 0, %v2242
        %v2244 = vrot.slane %v1884, %v2243
        %v2245 = vlaneseq
        %v2246 = vshrl.u32 %v2245, 7
        %v2247 = vsub.s32 0, %v2246
        %v2248 = vrot.slane %v1867, %v2247
        %v2249 = vlaneseq
        %v2250 = vshrl.u32 %v2249, 7
        %v2251 = vsub.s32 0, %v2250
        %v2252 = vrot.slane %v1881, %v2251
        %v2253 = vlaneseq
        %v2254 = vshrl.u32 %v2253, 7
        %v2255 = vsub.s32 0, %v2254
        %v2256 = vrot.slane %v1883, %v2255
        %v2257 = vlaneseq
        %v2258 = vshrl.u32 %v2257, 7
        %v2259 = vsub.s32 0, %v2258
        %v2260 = vrot.slane %v1885, %v2259
        %v2261 = vlaneseq
        %v2262 = vshrl.u32 %v2261, 7
        %v2263 = vsub.s32 0, %v2262
        %v2264 = vrot.slane %v1909, %v2263
        %v2265 = vlaneseq
        %v2266 = vshrl.u32 %v2265, 7
        %v2267 = vsub.s32 0, %v2266
        %v2268 = vrot.slane %v1923, %v2267
        %v2269 = vlaneseq
        %v2270 = vshrl.u32 %v2269, 7
        %v2271 = vsub.s32 0, %v2270
        %v2272 = vrot.slane %v1931, %v2271
        %v2273 = vlaneseq
        %v2274 = vshrl.u32 %v2273, 7
        %v2275 = vsub.s32 0, %v2274
        %v2276 = vrot.slane %v1933, %v2275
        %v2277 = vlaneseq
        %v2278 = vshrl.u32 %v2277, 7
        %v2279 = vsub.s32 0, %v2278
        %v2280 = vrot.slane %v1916, %v2279
        %v2281 = vlaneseq
        %v2282 = vshrl.u32 %v2281, 7
        %v2283 = vsub.s32 0, %v2282
        %v2284 = vrot.slane %v1930, %v2283
        %v2285 = vlaneseq
        %v2286 = vshrl.u32 %v2285, 7
        %v2287 = vsub.s32 0, %v2286
        %v2288 = vrot.slane %v1932, %v2287
        %v2289 = vlaneseq
        %v2290 = vshrl.u32 %v2289, 7
        %v2291 = vsub.s32 0, %v2290
        %v2292 = vrot.slane %v1934, %v2291
        %v2293 = vlaneseq
        %v2294 = vshrl.u32 %v2293, 7
        %v2295 = vsub.s32 0, %v2294
        %v2296 = vrot.slane %v1958, %v2295
        %v2297 = vlaneseq
        %v2298 = vshrl.u32 %v2297, 7
        %v2299 = vsub.s32 0, %v2298
        %v2300 = vrot.slane %v1972, %v2299
        %v2301 = vlaneseq
        %v2302 = vshrl.u32 %v2301, 7
        %v2303 = vsub.s32 0, %v2302
        %v2304 = vrot.slane %v1980, %v2303
        %v2305 = vlaneseq
        %v2306 = vshrl.u32 %v2305, 7
        %v2307 = vsub.s32 0, %v2306
        %v2308 = vrot.slane %v1982, %v2307
        %v2309 = vlaneseq
        %v2310 = vshrl.u32 %v2309, 7
        %v2311 = vsub.s32 0, %v2310
        %v2312 = vrot.slane %v1965, %v2311
        %v2313 = vlaneseq
        %v2314 = vshrl.u32 %v2313, 7
        %v2315 = vsub.s32 0, %v2314
        %v2316 = vrot.slane %v1979, %v2315
        %v2317 = vlaneseq
        %v2318 = vshrl.u32 %v2317, 7
        %v2319 = vsub.s32 0, %v2318
        %v2320 = vrot.slane %v1981, %v2319
        %v2321 = vlaneseq
        %v2322 = vshrl.u32 %v2321, 7
        %v2323 = vsub.s32 0, %v2322
        %v2324 = vrot.slane %v1983, %v2323
        %v2325 = vlaneseq
        %v2326 = vshrl.u32 %v2325, 7
        %v2327 = vsub.s32 0, %v2326
        %v2328 = vrot.slane %v2007, %v2327
        %v2329 = vlaneseq
        %v2330 = vshrl.u32 %v2329, 7
        %v2331 = vsub.s32 0, %v2330
        %v2332 = vrot.slane %v2021, %v2331
        %v2333 = vlaneseq
        %v2334 = vshrl.u32 %v2333, 7
        %v2335 = vsub.s32 0, %v2334
        %v2336 = vrot.slane %v2029, %v2335
        %v2337 = vlaneseq
        %v2338 = vshrl.u32 %v2337, 7
        %v2339 = vsub.s32 0, %v2338
        %v2340 = vrot.slane %v2031, %v2339
        %v2341 = vlaneseq
        %v2342 = vshrl.u32 %v2341, 7
        %v2343 = vsub.s32 0, %v2342
        %v2344 = vrot.slane %v2014, %v2343
        %v2345 = vlaneseq
        %v2346 = vshrl.u32 %v2345, 7
        %v2347 = vsub.s32 0, %v2346
        %v2348 = vrot.slane %v2028, %v2347
        %v2349 = vlaneseq
        %v2350 = vshrl.u32 %v2349, 7
        %v2351 = vsub.s32 0, %v2350
        %v2352 = vrot.slane %v2030, %v2351
        %v2353 = vlaneseq
        %v2354 = vshrl.u32 %v2353, 7
        %v2355 = vsub.s32 0, %v2354
        %v2356 = vrot.slane %v2032, %v2355
        %v2357 = vlaneseq
        %v2358 = vshrl.u32 %v2357, 7
        %v2359 = vsub.s32 0, %v2358
        %v2360 = vrot.slane %v2056, %v2359
        %v2361 = vlaneseq
        %v2362 = vshrl.u32 %v2361, 7
        %v2363 = vsub.s32 0, %v2362
        %v2364 = vrot.slane %v2070, %v2363
        %v2365 = vlaneseq
        %v2366 = vshrl.u32 %v2365, 7
        %v2367 = vsub.s32 0, %v2366
        %v2368 = vrot.slane %v2078, %v2367
        %v2369 = vlaneseq
        %v2370 = vshrl.u32 %v2369, 7
        %v2371 = vsub.s32 0, %v2370
        %v2372 = vrot.slane %v2080, %v2371
        %v2373 = vlaneseq
        %v2374 = vshrl.u32 %v2373, 7
        %v2375 = vsub.s32 0, %v2374
        %v2376 = vrot.slane %v2063, %v2375
        %v2377 = vlaneseq
        %v2378 = vshrl.u32 %v2377, 7
        %v2379 = vsub.s32 0, %v2378
        %v2380 = vrot.slane %v2077, %v2379
        %v2381 = vlaneseq
        %v2382 = vshrl.u32 %v2381, 7
        %v2383 = vsub.s32 0, %v2382
        %v2384 = vrot.slane %v2079, %v2383
        %v2385 = vlaneseq
        %v2386 = vshrl.u32 %v2385, 7
        %v2387 = vsub.s32 0, %v2386
        %v2388 = vrot.slane %v2081, %v2387
        %v2389 = vlaneseq
        %v2390 = vshrl.u32 %v2389, 7
        %v2391 = vsub.s32 0, %v2390
        %v2392 = vrot.slane %v2105, %v2391
        %v2393 = vlaneseq
        %v2394 = vshrl.u32 %v2393, 7
        %v2395 = vsub.s32 0, %v2394
        %v2396 = vrot.slane %v2119, %v2395
        %v2397 = vlaneseq
        %v2398 = vshrl.u32 %v2397, 7
        %v2399 = vsub.s32 0, %v2398
        %v2400 = vrot.slane %v2127, %v2399
        %v2401 = vlaneseq
        %v2402 = vshrl.u32 %v2401, 7
        %v2403 = vsub.s32 0, %v2402
        %v2404 = vrot.slane %v2129, %v2403
        %v2405 = vlaneseq
        %v2406 = vshrl.u32 %v2405, 7
        %v2407 = vsub.s32 0, %v2406
        %v2408 = vrot.slane %v2112, %v2407
        %v2409 = vlaneseq
        %v2410 = vshrl.u32 %v2409, 7
        %v2411 = vsub.s32 0, %v2410
        %v2412 = vrot.slane %v2126, %v2411
        %v2413 = vlaneseq
        %v2414 = vshrl.u32 %v2413, 7
        %v2415 = vsub.s32 0, %v2414
        %v2416 = vrot.slane %v2128, %v2415
        %v2417 = vlaneseq
        %v2418 = vshrl.u32 %v2417, 7
        %v2419 = vsub.s32 0, %v2418
        %v2420 = vrot.slane %v2130, %v2419
        %v2421 = vlaneseq
        %v2422 = vshrl.u32 %v2421, 7
        %v2423 = vsub.s32 0, %v2422
        %v2424 = vrot.slane %v2154, %v2423
        %v2425 = vlaneseq
        %v2426 = vshrl.u32 %v2425, 7
        %v2427 = vsub.s32 0, %v2426
        %v2428 = vrot.slane %v2168, %v2427
        %v2429 = vlaneseq
        %v2430 = vshrl.u32 %v2429, 7
        %v2431 = vsub.s32 0, %v2430
        %v2432 = vrot.slane %v2176, %v2431
        %v2433 = vlaneseq
        %v2434 = vshrl.u32 %v2433, 7
        %v2435 = vsub.s32 0, %v2434
        %v2436 = vrot.slane %v2178, %v2435
        %v2437 = vlaneseq
        %v2438 = vshrl.u32 %v2437, 7
        %v2439 = vsub.s32 0, %v2438
        %v2440 = vrot.slane %v2161, %v2439
        %v2441 = vlaneseq
        %v2442 = vshrl.u32 %v2441, 7
        %v2443 = vsub.s32 0, %v2442
        %v2444 = vrot.slane %v2175, %v2443
        %v2445 = vlaneseq
        %v2446 = vshrl.u32 %v2445, 7
        %v2447 = vsub.s32 0, %v2446
        %v2448 = vrot.slane %v2177, %v2447
        %v2449 = vlaneseq
        %v2450 = vshrl.u32 %v2449, 7
        %v2451 = vsub.s32 0, %v2450
        %v2452 = vrot.slane %v2179, %v2451
        %v2453 = vlaneseq
        %v2454 = vshrl.u32 %v2453, 7
        %v2455 = vsub.s32 0, %v2454
        %v2456 = vrot.slane %v2203, %v2455
        %v2457 = vlaneseq
        %v2458 = vshrl.u32 %v2457, 7
        %v2459 = vsub.s32 0, %v2458
        %v2460 = vrot.slane %v2217, %v2459
        %v2461 = vlaneseq
        %v2462 = vshrl.u32 %v2461, 7
        %v2463 = vsub.s32 0, %v2462
        %v2464 = vrot.slane %v2225, %v2463
        %v2465 = vlaneseq
        %v2466 = vshrl.u32 %v2465, 7
        %v2467 = vsub.s32 0, %v2466
        %v2468 = vrot.slane %v2227, %v2467
        %v2469 = vlaneseq
        %v2470 = vshrl.u32 %v2469, 7
        %v2471 = vsub.s32 0, %v2470
        %v2472 = vrot.slane %v2210, %v2471
        %v2473 = vlaneseq
        %v2474 = vshrl.u32 %v2473, 7
        %v2475 = vsub.s32 0, %v2474
        %v2476 = vrot.slane %v2224, %v2475
        %v2477 = vlaneseq
        %v2478 = vshrl.u32 %v2477, 7
        %v2479 = vsub.s32 0, %v2478
        %v2480 = vrot.slane %v2226, %v2479
        %v2481 = vlaneseq
        %v2482 = vshrl.u32 %v2481, 7
        %v2483 = vsub.s32 0, %v2482
        %v2484 = vrot.slane %v2228, %v2483
        %v2549 = vmul.f32 %v1575, %v2232
        %v2550 = vmul.f32 %v1578, %v2236
        %v2551 = vmul.f32 %v1583, %v2240
        %v2552 = vmul.f32 %v1586, %v2244
        %v2553 = vmul.f32 %v1591, %v2248
        %v2554 = vmul.f32 %v1594, %v2252
        %v2555 = vmul.f32 %v1599, %v2256
        %v2556 = vmul.f32 %v1602, %v2260
        %v2557 = vmul.f32 %v1607, %v2264
        %v2558 = vmul.f32 %v1610, %v2268
        %v2559 = vmul.f32 %v1615, %v2272
        %v2560 = vmul.f32 %v1618, %v2276
        %v2561 = vmul.f32 %v1623, %v2280
        %v2562 = vmul.f32 %v1626, %v2284
        %v2563 = vmul.f32 %v1631, %v2288
        %v2564 = vmul.f32 %v1634, %v2292
        %v2565 = vmul.f32 %v1639, %v2296
        %v2566 = vmul.f32 %v1642, %v2300
        %v2567 = vmul.f32 %v1647, %v2304
        %v2568 = vmul.f32 %v1650, %v2308
        %v2569 = vmul.f32 %v1655, %v2312
        %v2570 = vmul.f32 %v1658, %v2316
        %v2571 = vmul.f32 %v1663, %v2320
        %v2572 = vmul.f32 %v1666, %v2324
        %v2573 = vmul.f32 %v1671, %v2328
        %v2574 = vmul.f32 %v1674, %v2332
        %v2575 = vmul.f32 %v1679, %v2336
        %v2576 = vmul.f32 %v1682, %v2340
        %v2577 = vmul.f32 %v1687, %v2344
        %v2578 = vmul.f32 %v1690, %v2348
        %v2579 = vmul.f32 %v1695, %v2352
        %v2580 = vmul.f32 %v1698, %v2356
        %v2581 = vmul.f32 %v1703, %v2360
        %v2582 = vmul.f32 %v1706, %v2364
        %v2583 = vmul.f32 %v1711, %v2368
        %v2584 = vmul.f32 %v1714, %v2372
        %v2585 = vmul.f32 %v1719, %v2376
        %v2586 = vmul.f32 %v1722, %v2380
        %v2587 = vmul.f32 %v1727, %v2384
        %v2588 = vmul.f32 %v1730, %v2388
        %v2589 = vmul.f32 %v1735, %v2392
        %v2590 = vmul.f32 %v1738, %v2396
        %v2591 = vmul.f32 %v1743, %v2400
        %v2592 = vmul.f32 %v1746, %v2404
        %v2593 = vmul.f32 %v1751, %v2408
        %v2594 = vmul.f32 %v1754, %v2412
        %v2595 = vmul.f32 %v1759, %v2416
        %v2596 = vmul.f32 %v1762, %v2420
        %v2597 = vmul.f32 %v1767, %v2424
        %v2598 = vmul.f32 %v1770, %v2428
        %v2599 = vmul.f32 %v1775, %v2432
        %v2600 = vmul.f32 %v1778, %v2436
        %v2601 = vmul.f32 %v1783, %v2440
        %v2602 = vmul.f32 %v1786, %v2444
        %v2603 = vmul.f32 %v1791, %v2448
        %v2604 = vmul.f32 %v1794, %v2452
        %v2605 = vmul.f32 %v1799, %v2456
        %v2606 = vmul.f32 %v1802, %v2460
        %v2607 = vmul.f32 %v1807, %v2464
        %v2608 = vmul.f32 %v1810, %v2468
        %v2609 = vmul.f32 %v1815, %v2472
        %v2610 = vmul.f32 %v1818, %v2476
        %v2611 = vmul.f32 %v1823, %v2480
        %v2612 = vmul.f32 %v1826, %v2484
        %v2613 = vpack.c.bf16 %v2550, %v2549
        %v2614 = vpack.c.bf16 %v2552, %v2551
        %v2615 = vpack.c.bf16 %v2554, %v2553
        %v2616 = vpack.c.bf16 %v2556, %v2555
        %v2617 = vpack.c.bf16 %v2558, %v2557
        %v2618 = vpack.c.bf16 %v2560, %v2559
        %v2619 = vpack.c.bf16 %v2562, %v2561
        %v2620 = vpack.c.bf16 %v2564, %v2563
        %v2621 = vpack.c.bf16 %v2566, %v2565
        %v2622 = vpack.c.bf16 %v2568, %v2567
        %v2623 = vpack.c.bf16 %v2570, %v2569
        %v2624 = vpack.c.bf16 %v2572, %v2571
        %v2625 = vpack.c.bf16 %v2574, %v2573
        %v2626 = vpack.c.bf16 %v2576, %v2575
        %v2627 = vpack.c.bf16 %v2578, %v2577
        %v2628 = vpack.c.bf16 %v2580, %v2579
        %v2629 = vpack.c.bf16 %v2582, %v2581
        %v2630 = vpack.c.bf16 %v2584, %v2583
        %v2631 = vpack.c.bf16 %v2586, %v2585
        %v2632 = vpack.c.bf16 %v2588, %v2587
        %v2633 = vpack.c.bf16 %v2590, %v2589
        %v2634 = vpack.c.bf16 %v2592, %v2591
        %v2635 = vpack.c.bf16 %v2594, %v2593
        %v2636 = vpack.c.bf16 %v2596, %v2595
        %v2637 = vpack.c.bf16 %v2598, %v2597
        %v2638 = vpack.c.bf16 %v2600, %v2599
        %v2639 = vpack.c.bf16 %v2602, %v2601
        %v2640 = vpack.c.bf16 %v2604, %v2603
        %v2641 = vpack.c.bf16 %v2606, %v2605
        %v2642 = vpack.c.bf16 %v2608, %v2607
        %v2643 = vpack.c.bf16 %v2610, %v2609
        %v2644 = vpack.c.bf16 %v2612, %v2611
        %v2645 = vld [vmem:[%s4] sm:$0xf]
        %v2646 = vld [vmem:[%s4 + $0x4] sm:$0xf]
        %v2647 = vld [vmem:[%s4 + $0x8] sm:$0xf]
        %v2648 = vld [vmem:[%s4 + $0xc] sm:$0xf]
        %v2649 = vld [vmem:[%s4 + $0x10] sm:$0xf]
        %v2650 = vld [vmem:[%s4 + $0x14] sm:$0xf]
        %v2651 = vld [vmem:[%s4 + $0x18] sm:$0xf]
        %v2652 = vld [vmem:[%s4 + $0x1c] sm:$0xf]
        %v2653 = vld [vmem:[%s4 + $0x20] sm:$0x3]
        %v2654 = vld [vmem:[%s5] sm:$0x1]
        %v2656 = vlaneseq
        %v2657 = vshrl.u32 %v2656, 7
        %v2658 = vsub.s32 0, %v2657
        %v2659 = vrot.slane %v2654, %v2658
        %v2670 = vunpack.c.l.b16 %v2645
        %v2671 = vunpack.c.l.b16 %v2646
        %v2672 = vunpack.c.l.b16 %v2647
        %v2673 = vunpack.c.l.b16 %v2648
        %v2674 = vunpack.c.l.b16 %v2649
        %v2675 = vunpack.c.l.b16 %v2650
        %v2676 = vunpack.c.l.b16 %v2651
        %v2677 = vunpack.c.l.b16 %v2652
        %v2678 = vunpack.c.l.b16 %v2653
        %v2679 = vpack.c.b16 %v2671, %v2670
        %v2680 = vpack.c.b16 %v2673, %v2672
        %v2681 = vpack.c.b16 %v2675, %v2674
        %v2682 = vpack.c.b16 %v2677, %v2676
        %v2683 = vpack.c.b16 %v2678, %v2678
        %vm2688 = vcmask 556032
        %v2690 = vsel %vm2688, %v2613, 0
        %v2693 = vsel %vm2688, %v2614, 0
        %v2696 = vsel %vm2688, %v2615, 0
        %v2699 = vsel %vm2688, %v2616, 0
        %v2702 = vsel %vm2688, %v2617, 0
        %v2705 = vsel %vm2688, %v2618, 0
        %v2708 = vsel %vm2688, %v2619, 0
        %v2711 = vsel %vm2688, %v2620, 0
        %v2714 = vsel %vm2688, %v2621, 0
        %v2717 = vsel %vm2688, %v2622, 0
        %v2720 = vsel %vm2688, %v2623, 0
        %v2723 = vsel %vm2688, %v2624, 0
        %v2726 = vsel %vm2688, %v2625, 0
        %v2729 = vsel %vm2688, %v2626, 0
        %v2732 = vsel %vm2688, %v2627, 0
        %v2735 = vsel %vm2688, %v2628, 0
        %v2738 = vsel %vm2688, %v2629, 0
        %v2741 = vsel %vm2688, %v2630, 0
        %v2744 = vsel %vm2688, %v2631, 0
        %v2747 = vsel %vm2688, %v2632, 0
        %v2750 = vsel %vm2688, %v2633, 0
        %v2753 = vsel %vm2688, %v2634, 0
        %v2756 = vsel %vm2688, %v2635, 0
        %v2759 = vsel %vm2688, %v2636, 0
        %v2762 = vsel %vm2688, %v2637, 0
        %v2765 = vsel %vm2688, %v2638, 0
        %v2768 = vsel %vm2688, %v2639, 0
        %v2771 = vsel %vm2688, %v2640, 0
        %v2774 = vsel %vm2688, %v2641, 0
        %v2777 = vsel %vm2688, %v2642, 0
        %v2780 = vsel %vm2688, %v2643, 0
        %v2783 = vsel %vm2688, %v2644, 0
        %v2786 = vsel %vm1536, %v2683, 0
        %2788 = vmatprep.subr.bf16.mxu0 0
        %2789 = vmatpush1.bf16.msra.mxu0 %v2679
        %2790 = vmatprep.subr.bf16.mxu0 0
        %2791 = vmatpush1.bf16.msra.mxu0 %v2680
        %2792 = vmatprep.subr.bf16.mxu0 0
        %2793 = vmatpush1.bf16.msra.mxu0 %v2681
        %2794 = vmatprep.subr.bf16.mxu0 0
        %2795 = vmatpush1.bf16.msra.mxu0 %v2682
        %2796 = vmatprep.subr.bf16.mxu0 0
        %2797 = vmatpush1.bf16.msra.mxu0 %v2786
        %2798 = vmatprep.subr.bf16.mxu0 0
        %2799 = vmatpush1.bf16.msra.mxu0 0
        %2800 = vmatprep.subr.bf16.mxu0 0
        %2801 = vmatpush1.bf16.msra.mxu0 0
        %2802 = vmatprep.subr.bf16.mxu0 0
        %2803 = vmatpush1.bf16.msra.mxu0 0
        %2804 = vmatprep.subr.bf16.mxu0 0
        %2805 = vmatpush1.bf16.msra.mxu0 0
        %2806 = vmatprep.subr.bf16.mxu0 0
        %2807 = vmatpush1.bf16.msra.mxu0 0
        %2808 = vmatprep.subr.bf16.mxu0 0
        %2809 = vmatpush1.bf16.msra.mxu0 0
        %2810 = vmatprep.subr.bf16.mxu0 0
        %2811 = vmatpush1.bf16.msra.mxu0 0
        %2812 = vmatprep.subr.bf16.mxu0 0
        %2813 = vmatpush1.bf16.msra.mxu0 0
        %2814 = vmatprep.subr.bf16.mxu0 0
        %2815 = vmatpush1.bf16.msra.mxu0 0
        %2816 = vmatprep.subr.bf16.mxu0 0
        %2817 = vmatpush1.bf16.msra.mxu0 0
        %2818 = vmatprep.subr.bf16.mxu0 0
        %2819 = vmatpush1.bf16.msra.mxu0 0
        %2820 = vmatprep.mubr.bf16.mxu0 0
        %2821 = vmatmul.mubr.bf16.gmra.mrb[0].mxu0 %v2690
        %v2822 = vpop.f32.mrb[0].mxu0
        %v2823 = vadd.f32 %v2659, %v2822
        %v2824 = vpop.f32.mrb[0].mxu0
        %v2825 = vpop.f32.mrb[0].mxu0
        %v2826 = vadd.f32 %v2659, %v2825
        %v2827 = vpop.f32.mrb[0].mxu0
        %2828 = vmatprep.mubr.bf16.mxu0 0
        %2829 = vmatmul.mubr.bf16.gmra.mrb[0].mxu0 %v2693
        %v2830 = vpop.f32.mrb[0].mxu0
        %v2831 = vadd.f32 %v2659, %v2830
        %v2832 = vpop.f32.mrb[0].mxu0
        %v2833 = vpop.f32.mrb[0].mxu0
        %v2834 = vadd.f32 %v2659, %v2833
        %v2835 = vpop.f32.mrb[0].mxu0
        %2836 = vmatprep.mubr.bf16.mxu0 0
        %2837 = vmatmul.mubr.bf16.gmra.mrb[0].mxu0 %v2696
        %v2838 = vpop.f32.mrb[0].mxu0
        %v2839 = vadd.f32 %v2659, %v2838
        %v2840 = vpop.f32.mrb[0].mxu0
        %v2841 = vpop.f32.mrb[0].mxu0
        %v2842 = vadd.f32 %v2659, %v2841
        %v2843 = vpop.f32.mrb[0].mxu0
        %2844 = vmatprep.mubr.bf16.mxu0 0
        %2845 = vmatmul.mubr.bf16.gmra.mrb[0].mxu0 %v2699
        %v2846 = vpop.f32.mrb[0].mxu0
        %v2847 = vadd.f32 %v2659, %v2846
        %v2848 = vpop.f32.mrb[0].mxu0
        %v2849 = vpop.f32.mrb[0].mxu0
        %v2850 = vadd.f32 %v2659, %v2849
        %v2851 = vpop.f32.mrb[0].mxu0
        %2852 = vmatprep.mubr.bf16.mxu0 0
        %2853 = vmatmul.mubr.bf16.gmra.mrb[0].mxu0 %v2702
        %v2854 = vpop.f32.mrb[0].mxu0
        %v2855 = vadd.f32 %v2659, %v2854
        %v2856 = vpop.f32.mrb[0].mxu0
        %v2857 = vpop.f32.mrb[0].mxu0
        %v2858 = vadd.f32 %v2659, %v2857
        %v2859 = vpop.f32.mrb[0].mxu0
        %2860 = vmatprep.mubr.bf16.mxu0 0
        %2861 = vmatmul.mubr.bf16.gmra.mrb[0].mxu0 %v2705
        %v2862 = vpop.f32.mrb[0].mxu0
        %v2863 = vadd.f32 %v2659, %v2862
        %v2864 = vpop.f32.mrb[0].mxu0
        %v2865 = vpop.f32.mrb[0].mxu0
        %v2866 = vadd.f32 %v2659, %v2865
        %v2867 = vpop.f32.mrb[0].mxu0
        %2868 = vmatprep.mubr.bf16.mxu0 0
        %2869 = vmatmul.mubr.bf16.gmra.mrb[0].mxu0 %v2708
        %v2870 = vpop.f32.mrb[0].mxu0
        %v2871 = vadd.f32 %v2659, %v2870
        %v2872 = vpop.f32.mrb[0].mxu0
        %v2873 = vpop.f32.mrb[0].mxu0
        %v2874 = vadd.f32 %v2659, %v2873
        %v2875 = vpop.f32.mrb[0].mxu0
        %2876 = vmatprep.mubr.bf16.mxu0 0
        %2877 = vmatmul.mubr.bf16.gmra.mrb[0].mxu0 %v2711
        %v2878 = vpop.f32.mrb[0].mxu0
        %v2879 = vadd.f32 %v2659, %v2878
        %v2880 = vpop.f32.mrb[0].mxu0
        %v2881 = vpop.f32.mrb[0].mxu0
        %v2882 = vadd.f32 %v2659, %v2881
        %v2883 = vpop.f32.mrb[0].mxu0
        %2884 = vmatprep.mubr.bf16.mxu0 0
        %2885 = vmatmul.mubr.bf16.gmra.mrb[0].mxu0 %v2714
        %v2886 = vpop.f32.mrb[0].mxu0
        %v2887 = vadd.f32 %v2659, %v2886
        %v2888 = vpop.f32.mrb[0].mxu0
        %v2889 = vpop.f32.mrb[0].mxu0
        %v2890 = vadd.f32 %v2659, %v2889
        %v2891 = vpop.f32.mrb[0].mxu0
        %2892 = vmatprep.mubr.bf16.mxu0 0
        %2893 = vmatmul.mubr.bf16.gmra.mrb[0].mxu0 %v2717
        %v2894 = vpop.f32.mrb[0].mxu0
        %v2895 = vadd.f32 %v2659, %v2894
        %v2896 = vpop.f32.mrb[0].mxu0
        %v2897 = vpop.f32.mrb[0].mxu0
        %v2898 = vadd.f32 %v2659, %v2897
        %v2899 = vpop.f32.mrb[0].mxu0
        %2900 = vmatprep.mubr.bf16.mxu0 0
        %2901 = vmatmul.mubr.bf16.gmra.mrb[0].mxu0 %v2720
        %v2902 = vpop.f32.mrb[0].mxu0
        %v2903 = vadd.f32 %v2659, %v2902
        %v2904 = vpop.f32.mrb[0].mxu0
        %v2905 = vpop.f32.mrb[0].mxu0
        %v2906 = vadd.f32 %v2659, %v2905
        %v2907 = vpop.f32.mrb[0].mxu0
        %2908 = vmatprep.mubr.bf16.mxu0 0
        %2909 = vmatmul.mubr.bf16.gmra.mrb[0].mxu0 %v2723
        %v2910 = vpop.f32.mrb[0].mxu0
        %v2911 = vadd.f32 %v2659, %v2910
        %v2912 = vpop.f32.mrb[0].mxu0
        %v2913 = vpop.f32.mrb[0].mxu0
        %v2914 = vadd.f32 %v2659, %v2913
        %v2915 = vpop.f32.mrb[0].mxu0
        %2916 = vmatprep.mubr.bf16.mxu0 0
        %2917 = vmatmul.mubr.bf16.gmra.mrb[0].mxu0 %v2726
        %v2918 = vpop.f32.mrb[0].mxu0
        %v2919 = vadd.f32 %v2659, %v2918
        %v2920 = vpop.f32.mrb[0].mxu0
        %v2921 = vpop.f32.mrb[0].mxu0
        %v2922 = vadd.f32 %v2659, %v2921
        %v2923 = vpop.f32.mrb[0].mxu0
        %2924 = vmatprep.mubr.bf16.mxu0 0
        %2925 = vmatmul.mubr.bf16.gmra.mrb[0].mxu0 %v2729
        %v2926 = vpop.f32.mrb[0].mxu0
        %v2927 = vadd.f32 %v2659, %v2926
        %v2928 = vpop.f32.mrb[0].mxu0
        %v2929 = vpop.f32.mrb[0].mxu0
        %v2930 = vadd.f32 %v2659, %v2929
        %v2931 = vpop.f32.mrb[0].mxu0
        %2932 = vmatprep.mubr.bf16.mxu0 0
        %2933 = vmatmul.mubr.bf16.gmra.mrb[0].mxu0 %v2732
        %v2934 = vpop.f32.mrb[0].mxu0
        %v2935 = vadd.f32 %v2659, %v2934
        %v2936 = vpop.f32.mrb[0].mxu0
        %v2937 = vpop.f32.mrb[0].mxu0
        %v2938 = vadd.f32 %v2659, %v2937
        %v2939 = vpop.f32.mrb[0].mxu0
        %2940 = vmatprep.mubr.bf16.mxu0 0
        %2941 = vmatmul.mubr.bf16.gmra.mrb[0].mxu0 %v2735
        %v2942 = vpop.f32.mrb[0].mxu0
        %v2943 = vadd.f32 %v2659, %v2942
        %v2944 = vpop.f32.mrb[0].mxu0
        %v2945 = vpop.f32.mrb[0].mxu0
        %v2946 = vadd.f32 %v2659, %v2945
        %v2947 = vpop.f32.mrb[0].mxu0
        %2948 = vmatprep.mubr.bf16.mxu0 0
        %2949 = vmatmul.mubr.bf16.gmra.mrb[0].mxu0 %v2738
        %v2950 = vpop.f32.mrb[0].mxu0
        %v2951 = vadd.f32 %v2659, %v2950
        %v2952 = vpop.f32.mrb[0].mxu0
        %v2953 = vpop.f32.mrb[0].mxu0
        %v2954 = vadd.f32 %v2659, %v2953
        %v2955 = vpop.f32.mrb[0].mxu0
        %2956 = vmatprep.mubr.bf16.mxu0 0
        %2957 = vmatmul.mubr.bf16.gmra.mrb[0].mxu0 %v2741
        %v2958 = vpop.f32.mrb[0].mxu0
        %v2959 = vadd.f32 %v2659, %v2958
        %v2960 = vpop.f32.mrb[0].mxu0
        %v2961 = vpop.f32.mrb[0].mxu0
        %v2962 = vadd.f32 %v2659, %v2961
        %v2963 = vpop.f32.mrb[0].mxu0
        %2964 = vmatprep.mubr.bf16.mxu0 0
        %2965 = vmatmul.mubr.bf16.gmra.mrb[0].mxu0 %v2744
        %v2966 = vpop.f32.mrb[0].mxu0
        %v2967 = vadd.f32 %v2659, %v2966
        %v2968 = vpop.f32.mrb[0].mxu0
        %v2969 = vpop.f32.mrb[0].mxu0
        %v2970 = vadd.f32 %v2659, %v2969
        %v2971 = vpop.f32.mrb[0].mxu0
        %2972 = vmatprep.mubr.bf16.mxu0 0
        %2973 = vmatmul.mubr.bf16.gmra.mrb[0].mxu0 %v2747
        %v2974 = vpop.f32.mrb[0].mxu0
        %v2975 = vadd.f32 %v2659, %v2974
        %v2976 = vpop.f32.mrb[0].mxu0
        %v2977 = vpop.f32.mrb[0].mxu0
        %v2978 = vadd.f32 %v2659, %v2977
        %v2979 = vpop.f32.mrb[0].mxu0
        %2980 = vmatprep.mubr.bf16.mxu0 0
        %2981 = vmatmul.mubr.bf16.gmra.mrb[0].mxu0 %v2750
        %v2982 = vpop.f32.mrb[0].mxu0
        %v2983 = vadd.f32 %v2659, %v2982
        %v2984 = vpop.f32.mrb[0].mxu0
        %v2985 = vpop.f32.mrb[0].mxu0
        %v2986 = vadd.f32 %v2659, %v2985
        %v2987 = vpop.f32.mrb[0].mxu0
        %2988 = vmatprep.mubr.bf16.mxu0 0
        %2989 = vmatmul.mubr.bf16.gmra.mrb[0].mxu0 %v2753
        %v2990 = vpop.f32.mrb[0].mxu0
        %v2991 = vadd.f32 %v2659, %v2990
        %v2992 = vpop.f32.mrb[0].mxu0
        %v2993 = vpop.f32.mrb[0].mxu0
        %v2994 = vadd.f32 %v2659, %v2993
        %v2995 = vpop.f32.mrb[0].mxu0
        %2996 = vmatprep.mubr.bf16.mxu0 0
        %2997 = vmatmul.mubr.bf16.gmra.mrb[0].mxu0 %v2756
        %v2998 = vpop.f32.mrb[0].mxu0
        %v2999 = vadd.f32 %v2659, %v2998
        %v3000 = vpop.f32.mrb[0].mxu0
        %v3001 = vpop.f32.mrb[0].mxu0
        %v3002 = vadd.f32 %v2659, %v3001
        %v3003 = vpop.f32.mrb[0].mxu0
        %3004 = vmatprep.mubr.bf16.mxu0 0
        %3005 = vmatmul.mubr.bf16.gmra.mrb[0].mxu0 %v2759
        %v3006 = vpop.f32.mrb[0].mxu0
        %v3007 = vadd.f32 %v2659, %v3006
        %v3008 = vpop.f32.mrb[0].mxu0
        %v3009 = vpop.f32.mrb[0].mxu0
        %v3010 = vadd.f32 %v2659, %v3009
        %v3011 = vpop.f32.mrb[0].mxu0
        %3012 = vmatprep.mubr.bf16.mxu0 0
        %3013 = vmatmul.mubr.bf16.gmra.mrb[0].mxu0 %v2762
        %v3014 = vpop.f32.mrb[0].mxu0
        %v3015 = vadd.f32 %v2659, %v3014
        %v3016 = vpop.f32.mrb[0].mxu0
        %v3017 = vpop.f32.mrb[0].mxu0
        %v3018 = vadd.f32 %v2659, %v3017
        %v3019 = vpop.f32.mrb[0].mxu0
        %3020 = vmatprep.mubr.bf16.mxu0 0
        %3021 = vmatmul.mubr.bf16.gmra.mrb[0].mxu0 %v2765
        %v3022 = vpop.f32.mrb[0].mxu0
        %v3023 = vadd.f32 %v2659, %v3022
        %v3024 = vpop.f32.mrb[0].mxu0
        %v3025 = vpop.f32.mrb[0].mxu0
        %v3026 = vadd.f32 %v2659, %v3025
        %v3027 = vpop.f32.mrb[0].mxu0
        %3028 = vmatprep.mubr.bf16.mxu0 0
        %3029 = vmatmul.mubr.bf16.gmra.mrb[0].mxu0 %v2768
        %v3030 = vpop.f32.mrb[0].mxu0
        %v3031 = vadd.f32 %v2659, %v3030
        %v3032 = vpop.f32.mrb[0].mxu0
        %v3033 = vpop.f32.mrb[0].mxu0
        %v3034 = vadd.f32 %v2659, %v3033
        %v3035 = vpop.f32.mrb[0].mxu0
        %3036 = vmatprep.mubr.bf16.mxu0 0
        %3037 = vmatmul.mubr.bf16.gmra.mrb[0].mxu0 %v2771
        %v3038 = vpop.f32.mrb[0].mxu0
        %v3039 = vadd.f32 %v2659, %v3038
        %v3040 = vpop.f32.mrb[0].mxu0
        %v3041 = vpop.f32.mrb[0].mxu0
        %v3042 = vadd.f32 %v2659, %v3041
        %v3043 = vpop.f32.mrb[0].mxu0
        %3044 = vmatprep.mubr.bf16.mxu0 0
        %3045 = vmatmul.mubr.bf16.gmra.mrb[0].mxu0 %v2774
        %v3046 = vpop.f32.mrb[0].mxu0
        %v3047 = vadd.f32 %v2659, %v3046
        %v3048 = vpop.f32.mrb[0].mxu0
        %v3049 = vpop.f32.mrb[0].mxu0
        %v3050 = vadd.f32 %v2659, %v3049
        %v3051 = vpop.f32.mrb[0].mxu0
        %3052 = vmatprep.mubr.bf16.mxu0 0
        %3053 = vmatmul.mubr.bf16.gmra.mrb[0].mxu0 %v2777
        %v3054 = vpop.f32.mrb[0].mxu0
        %v3055 = vadd.f32 %v2659, %v3054
        %v3056 = vpop.f32.mrb[0].mxu0
        %v3057 = vpop.f32.mrb[0].mxu0
        %v3058 = vadd.f32 %v2659, %v3057
        %v3059 = vpop.f32.mrb[0].mxu0
        %3060 = vmatprep.mubr.bf16.mxu0 0
        %3061 = vmatmul.mubr.bf16.gmra.mrb[0].mxu0 %v2780
        %v3062 = vpop.f32.mrb[0].mxu0
        %v3063 = vadd.f32 %v2659, %v3062
        %v3064 = vpop.f32.mrb[0].mxu0
        %v3065 = vpop.f32.mrb[0].mxu0
        %v3066 = vadd.f32 %v2659, %v3065
        %v3067 = vpop.f32.mrb[0].mxu0
        %3068 = vmatprep.mubr.bf16.mxu0 0
        %3069 = vmatmul.mubr.bf16.gmra.mrb[0].mxu0 %v2783
        %v3070 = vpop.f32.mrb[0].mxu0
        %v3071 = vadd.f32 %v2659, %v3070
        %v3072 = vpop.f32.mrb[0].mxu0
        %v3073 = vpop.f32.mrb[0].mxu0
        %v3074 = vadd.f32 %v2659, %v3073
        %v3075 = vpop.f32.mrb[0].mxu0
        %3076 = vdwg.mxu0
        %v3077 = vmax.f32 %v2823, 0.0
        %v3078 = vmax.f32 %v2826, 0.0
        %v3079 = vmax.f32 %v2831, 0.0
        %v3080 = vmax.f32 %v2834, 0.0
        %v3081 = vmax.f32 %v2839, 0.0
        %v3082 = vmax.f32 %v2842, 0.0
        %v3083 = vmax.f32 %v2847, 0.0
        %v3084 = vmax.f32 %v2850, 0.0
        %v3085 = vmax.f32 %v2855, 0.0
        %v3086 = vmax.f32 %v2858, 0.0
        %v3087 = vmax.f32 %v2863, 0.0
        %v3088 = vmax.f32 %v2866, 0.0
        %v3089 = vmax.f32 %v2871, 0.0
        %v3090 = vmax.f32 %v2874, 0.0
        %v3091 = vmax.f32 %v2879, 0.0
        %v3092 = vmax.f32 %v2882, 0.0
        %v3093 = vmax.f32 %v2887, 0.0
        %v3094 = vmax.f32 %v2890, 0.0
        %v3095 = vmax.f32 %v2895, 0.0
        %v3096 = vmax.f32 %v2898, 0.0
        %v3097 = vmax.f32 %v2903, 0.0
        %v3098 = vmax.f32 %v2906, 0.0
        %v3099 = vmax.f32 %v2911, 0.0
        %v3100 = vmax.f32 %v2914, 0.0
        %v3101 = vmax.f32 %v2919, 0.0
        %v3102 = vmax.f32 %v2922, 0.0
        %v3103 = vmax.f32 %v2927, 0.0
        %v3104 = vmax.f32 %v2930, 0.0
        %v3105 = vmax.f32 %v2935, 0.0
        %v3106 = vmax.f32 %v2938, 0.0
        %v3107 = vmax.f32 %v2943, 0.0
        %v3108 = vmax.f32 %v2946, 0.0
        %v3109 = vmax.f32 %v2951, 0.0
        %v3110 = vmax.f32 %v2954, 0.0
        %v3111 = vmax.f32 %v2959, 0.0
        %v3112 = vmax.f32 %v2962, 0.0
        %v3113 = vmax.f32 %v2967, 0.0
        %v3114 = vmax.f32 %v2970, 0.0
        %v3115 = vmax.f32 %v2975, 0.0
        %v3116 = vmax.f32 %v2978, 0.0
        %v3117 = vmax.f32 %v2983, 0.0
        %v3118 = vmax.f32 %v2986, 0.0
        %v3119 = vmax.f32 %v2991, 0.0
        %v3120 = vmax.f32 %v2994, 0.0
        %v3121 = vmax.f32 %v2999, 0.0
        %v3122 = vmax.f32 %v3002, 0.0
        %v3123 = vmax.f32 %v3007, 0.0
        %v3124 = vmax.f32 %v3010, 0.0
        %v3125 = vmax.f32 %v3015, 0.0
        %v3126 = vmax.f32 %v3018, 0.0
        %v3127 = vmax.f32 %v3023, 0.0
        %v3128 = vmax.f32 %v3026, 0.0
        %v3129 = vmax.f32 %v3031, 0.0
        %v3130 = vmax.f32 %v3034, 0.0
        %v3131 = vmax.f32 %v3039, 0.0
        %v3132 = vmax.f32 %v3042, 0.0
        %v3133 = vmax.f32 %v3047, 0.0
        %v3134 = vmax.f32 %v3050, 0.0
        %v3135 = vmax.f32 %v3055, 0.0
        %v3136 = vmax.f32 %v3058, 0.0
        %v3137 = vmax.f32 %v3063, 0.0
        %v3138 = vmax.f32 %v3066, 0.0
        %v3139 = vmax.f32 %v3071, 0.0
        %v3140 = vmax.f32 %v3074, 0.0
        %v3141 = vpack.c.bf16 %v3078, %v3077
        %v3142 = vpack.c.bf16 %v3080, %v3079
        %v3143 = vpack.c.bf16 %v3082, %v3081
        %v3144 = vpack.c.bf16 %v3084, %v3083
        %v3145 = vpack.c.bf16 %v3086, %v3085
        %v3146 = vpack.c.bf16 %v3088, %v3087
        %v3147 = vpack.c.bf16 %v3090, %v3089
        %v3148 = vpack.c.bf16 %v3092, %v3091
        %v3149 = vpack.c.bf16 %v3094, %v3093
        %v3150 = vpack.c.bf16 %v3096, %v3095
        %v3151 = vpack.c.bf16 %v3098, %v3097
        %v3152 = vpack.c.bf16 %v3100, %v3099
        %v3153 = vpack.c.bf16 %v3102, %v3101
        %v3154 = vpack.c.bf16 %v3104, %v3103
        %v3155 = vpack.c.bf16 %v3106, %v3105
        %v3156 = vpack.c.bf16 %v3108, %v3107
        %v3157 = vpack.c.bf16 %v3110, %v3109
        %v3158 = vpack.c.bf16 %v3112, %v3111
        %v3159 = vpack.c.bf16 %v3114, %v3113
        %v3160 = vpack.c.bf16 %v3116, %v3115
        %v3161 = vpack.c.bf16 %v3118, %v3117
        %v3162 = vpack.c.bf16 %v3120, %v3119
        %v3163 = vpack.c.bf16 %v3122, %v3121
        %v3164 = vpack.c.bf16 %v3124, %v3123
        %v3165 = vpack.c.bf16 %v3126, %v3125
        %v3166 = vpack.c.bf16 %v3128, %v3127
        %v3167 = vpack.c.bf16 %v3130, %v3129
        %v3168 = vpack.c.bf16 %v3132, %v3131
        %v3169 = vpack.c.bf16 %v3134, %v3133
        %v3170 = vpack.c.bf16 %v3136, %v3135
        %v3171 = vpack.c.bf16 %v3138, %v3137
        %v3172 = vpack.c.bf16 %v3140, %v3139
        %v3173 = vld [vmem:[%s6] sm:$0xf]
        %v3174 = vld [vmem:[%s6 + $0x4] sm:$0xf]
        %v3175 = vld [vmem:[%s6 + $0x8] sm:$0xf]
        %v3176 = vld [vmem:[%s6 + $0xc] sm:$0xf]
        %v3177 = vld [vmem:[%s7] sm:$0x1]
        %v3179 = vlaneseq
        %v3180 = vshrl.u32 %v3179, 7
        %v3181 = vsub.s32 0, %v3180
        %v3182 = vrot.slane %v3177, %v3181
        %v3188 = vunpack.c.l.b16 %v3173
        %v3189 = vunpack.c.l.b16 %v3174
        %v3190 = vunpack.c.l.b16 %v3175
        %v3191 = vunpack.c.l.b16 %v3176
        %v3192 = vpack.c.b16 %v3189, %v3188
        %v3193 = vpack.c.b16 %v3191, %v3190
        %v3197 = vsel %vm448, %v3141, 0
        %v3200 = vsel %vm448, %v3142, 0
        %v3203 = vsel %vm448, %v3143, 0
        %v3206 = vsel %vm448, %v3144, 0
        %v3209 = vsel %vm448, %v3145, 0
        %v3212 = vsel %vm448, %v3146, 0
        %v3215 = vsel %vm448, %v3147, 0
        %v3218 = vsel %vm448, %v3148, 0
        %v3221 = vsel %vm448, %v3149, 0
        %v3224 = vsel %vm448, %v3150, 0
        %v3227 = vsel %vm448, %v3151, 0
        %v3230 = vsel %vm448, %v3152, 0
        %v3233 = vsel %vm448, %v3153, 0
        %v3236 = vsel %vm448, %v3154, 0
        %v3239 = vsel %vm448, %v3155, 0
        %v3242 = vsel %vm448, %v3156, 0
        %v3245 = vsel %vm448, %v3157, 0
        %v3248 = vsel %vm448, %v3158, 0
        %v3251 = vsel %vm448, %v3159, 0
        %v3254 = vsel %vm448, %v3160, 0
        %v3257 = vsel %vm448, %v3161, 0
        %v3260 = vsel %vm448, %v3162, 0
        %v3263 = vsel %vm448, %v3163, 0
        %v3266 = vsel %vm448, %v3164, 0
        %v3269 = vsel %vm448, %v3165, 0
        %v3272 = vsel %vm448, %v3166, 0
        %v3275 = vsel %vm448, %v3167, 0
        %v3278 = vsel %vm448, %v3168, 0
        %v3281 = vsel %vm448, %v3169, 0
        %v3284 = vsel %vm448, %v3170, 0
        %v3287 = vsel %vm448, %v3171, 0
        %v3290 = vsel %vm448, %v3172, 0
        %3292 = vmatprep.subr.bf16.mxu0 0
        %3293 = vmatpush1.bf16.msra.mxu0 %v3192
        %3294 = vmatprep.subr.bf16.mxu0 0
        %3295 = vmatpush1.bf16.msra.mxu0 %v3193
        %3296 = vmatprep.subr.bf16.mxu0 0
        %3297 = vmatpush1.bf16.msra.mxu0 0
        %3298 = vmatprep.subr.bf16.mxu0 0
        %3299 = vmatpush1.bf16.msra.mxu0 0
        %3300 = vmatprep.subr.bf16.mxu0 0
        %3301 = vmatpush1.bf16.msra.mxu0 0
        %3302 = vmatprep.subr.bf16.mxu0 0
        %3303 = vmatpush1.bf16.msra.mxu0 0
        %3304 = vmatprep.subr.bf16.mxu0 0
        %3305 = vmatpush1.bf16.msra.mxu0 0
        %3306 = vmatprep.subr.bf16.mxu0 0
        %3307 = vmatpush1.bf16.msra.mxu0 0
        %3308 = vmatprep.subr.bf16.mxu0 0
        %3309 = vmatpush1.bf16.msra.mxu0 0
        %3310 = vmatprep.subr.bf16.mxu0 0
        %3311 = vmatpush1.bf16.msra.mxu0 0
        %3312 = vmatprep.subr.bf16.mxu0 0
        %3313 = vmatpush1.bf16.msra.mxu0 0
        %3314 = vmatprep.subr.bf16.mxu0 0
        %3315 = vmatpush1.bf16.msra.mxu0 0
        %3316 = vmatprep.subr.bf16.mxu0 0
        %3317 = vmatpush1.bf16.msra.mxu0 0
        %3318 = vmatprep.subr.bf16.mxu0 0
        %3319 = vmatpush1.bf16.msra.mxu0 0
        %3320 = vmatprep.subr.bf16.mxu0 0
        %3321 = vmatpush1.bf16.msra.mxu0 0
        %3322 = vmatprep.subr.bf16.mxu0 0
        %3323 = vmatpush1.bf16.msra.mxu0 0
        %3324 = vmatprep.mubr.bf16.mxu0 0
        %3325 = vmatmul.mubr.bf16.gmra.mrb[0].mxu0 %v3197
        %v3326 = vpop.f32.mrb[0].mxu0
        %v3327 = vadd.f32 %v3182, %v3326
        %v3328 = vpop.f32.mrb[0].mxu0
        %v3329 = vpop.f32.mrb[0].mxu0
        %v3330 = vadd.f32 %v3182, %v3329
        %v3331 = vpop.f32.mrb[0].mxu0
        %3332 = vmatprep.mubr.bf16.mxu0 0
        %3333 = vmatmul.mubr.bf16.gmra.mrb[0].mxu0 %v3200
        %v3334 = vpop.f32.mrb[0].mxu0
        %v3335 = vadd.f32 %v3182, %v3334
        %v3336 = vpop.f32.mrb[0].mxu0
        %v3337 = vpop.f32.mrb[0].mxu0
        %v3338 = vadd.f32 %v3182, %v3337
        %v3339 = vpop.f32.mrb[0].mxu0
        %3340 = vmatprep.mubr.bf16.mxu0 0
        %3341 = vmatmul.mubr.bf16.gmra.mrb[0].mxu0 %v3203
        %v3342 = vpop.f32.mrb[0].mxu0
        %v3343 = vadd.f32 %v3182, %v3342
        %v3344 = vpop.f32.mrb[0].mxu0
        %v3345 = vpop.f32.mrb[0].mxu0
        %v3346 = vadd.f32 %v3182, %v3345
        %v3347 = vpop.f32.mrb[0].mxu0
        %3348 = vmatprep.mubr.bf16.mxu0 0
        %3349 = vmatmul.mubr.bf16.gmra.mrb[0].mxu0 %v3206
        %v3350 = vpop.f32.mrb[0].mxu0
        %v3351 = vadd.f32 %v3182, %v3350
        %v3352 = vpop.f32.mrb[0].mxu0
        %v3353 = vpop.f32.mrb[0].mxu0
        %v3354 = vadd.f32 %v3182, %v3353
        %v3355 = vpop.f32.mrb[0].mxu0
        %3356 = vmatprep.mubr.bf16.mxu0 0
        %3357 = vmatmul.mubr.bf16.gmra.mrb[0].mxu0 %v3209
        %v3358 = vpop.f32.mrb[0].mxu0
        %v3359 = vadd.f32 %v3182, %v3358
        %v3360 = vpop.f32.mrb[0].mxu0
        %v3361 = vpop.f32.mrb[0].mxu0
        %v3362 = vadd.f32 %v3182, %v3361
        %v3363 = vpop.f32.mrb[0].mxu0
        %3364 = vmatprep.mubr.bf16.mxu0 0
        %3365 = vmatmul.mubr.bf16.gmra.mrb[0].mxu0 %v3212
        %v3366 = vpop.f32.mrb[0].mxu0
        %v3367 = vadd.f32 %v3182, %v3366
        %v3368 = vpop.f32.mrb[0].mxu0
        %v3369 = vpop.f32.mrb[0].mxu0
        %v3370 = vadd.f32 %v3182, %v3369
        %v3371 = vpop.f32.mrb[0].mxu0
        %3372 = vmatprep.mubr.bf16.mxu0 0
        %3373 = vmatmul.mubr.bf16.gmra.mrb[0].mxu0 %v3215
        %v3374 = vpop.f32.mrb[0].mxu0
        %v3375 = vadd.f32 %v3182, %v3374
        %v3376 = vpop.f32.mrb[0].mxu0
        %v3377 = vpop.f32.mrb[0].mxu0
        %v3378 = vadd.f32 %v3182, %v3377
        %v3379 = vpop.f32.mrb[0].mxu0
        %3380 = vmatprep.mubr.bf16.mxu0 0
        %3381 = vmatmul.mubr.bf16.gmra.mrb[0].mxu0 %v3218
        %v3382 = vpop.f32.mrb[0].mxu0
        %v3383 = vadd.f32 %v3182, %v3382
        %v3384 = vpop.f32.mrb[0].mxu0
        %v3385 = vpop.f32.mrb[0].mxu0
        %v3386 = vadd.f32 %v3182, %v3385
        %v3387 = vpop.f32.mrb[0].mxu0
        %3388 = vmatprep.mubr.bf16.mxu0 0
        %3389 = vmatmul.mubr.bf16.gmra.mrb[0].mxu0 %v3221
        %v3390 = vpop.f32.mrb[0].mxu0
        %v3391 = vadd.f32 %v3182, %v3390
        %v3392 = vpop.f32.mrb[0].mxu0
        %v3393 = vpop.f32.mrb[0].mxu0
        %v3394 = vadd.f32 %v3182, %v3393
        %v3395 = vpop.f32.mrb[0].mxu0
        %3396 = vmatprep.mubr.bf16.mxu0 0
        %3397 = vmatmul.mubr.bf16.gmra.mrb[0].mxu0 %v3224
        %v3398 = vpop.f32.mrb[0].mxu0
        %v3399 = vadd.f32 %v3182, %v3398
        %v3400 = vpop.f32.mrb[0].mxu0
        %v3401 = vpop.f32.mrb[0].mxu0
        %v3402 = vadd.f32 %v3182, %v3401
        %v3403 = vpop.f32.mrb[0].mxu0
        %3404 = vmatprep.mubr.bf16.mxu0 0
        %3405 = vmatmul.mubr.bf16.gmra.mrb[0].mxu0 %v3227
        %v3406 = vpop.f32.mrb[0].mxu0
        %v3407 = vadd.f32 %v3182, %v3406
        %v3408 = vpop.f32.mrb[0].mxu0
        %v3409 = vpop.f32.mrb[0].mxu0
        %v3410 = vadd.f32 %v3182, %v3409
        %v3411 = vpop.f32.mrb[0].mxu0
        %3412 = vmatprep.mubr.bf16.mxu0 0
        %3413 = vmatmul.mubr.bf16.gmra.mrb[0].mxu0 %v3230
        %v3414 = vpop.f32.mrb[0].mxu0
        %v3415 = vadd.f32 %v3182, %v3414
        %v3416 = vpop.f32.mrb[0].mxu0
        %v3417 = vpop.f32.mrb[0].mxu0
        %v3418 = vadd.f32 %v3182, %v3417
        %v3419 = vpop.f32.mrb[0].mxu0
        %3420 = vmatprep.mubr.bf16.mxu0 0
        %3421 = vmatmul.mubr.bf16.gmra.mrb[0].mxu0 %v3233
        %v3422 = vpop.f32.mrb[0].mxu0
        %v3423 = vadd.f32 %v3182, %v3422
        %v3424 = vpop.f32.mrb[0].mxu0
        %v3425 = vpop.f32.mrb[0].mxu0
        %v3426 = vadd.f32 %v3182, %v3425
        %v3427 = vpop.f32.mrb[0].mxu0
        %3428 = vmatprep.mubr.bf16.mxu0 0
        %3429 = vmatmul.mubr.bf16.gmra.mrb[0].mxu0 %v3236
        %v3430 = vpop.f32.mrb[0].mxu0
        %v3431 = vadd.f32 %v3182, %v3430
        %v3432 = vpop.f32.mrb[0].mxu0
        %v3433 = vpop.f32.mrb[0].mxu0
        %v3434 = vadd.f32 %v3182, %v3433
        %v3435 = vpop.f32.mrb[0].mxu0
        %3436 = vmatprep.mubr.bf16.mxu0 0
        %3437 = vmatmul.mubr.bf16.gmra.mrb[0].mxu0 %v3239
        %v3438 = vpop.f32.mrb[0].mxu0
        %v3439 = vadd.f32 %v3182, %v3438
        %v3440 = vpop.f32.mrb[0].mxu0
        %v3441 = vpop.f32.mrb[0].mxu0
        %v3442 = vadd.f32 %v3182, %v3441
        %v3443 = vpop.f32.mrb[0].mxu0
        %3444 = vmatprep.mubr.bf16.mxu0 0
        %3445 = vmatmul.mubr.bf16.gmra.mrb[0].mxu0 %v3242
        %v3446 = vpop.f32.mrb[0].mxu0
        %v3447 = vadd.f32 %v3182, %v3446
        %v3448 = vpop.f32.mrb[0].mxu0
        %v3449 = vpop.f32.mrb[0].mxu0
        %v3450 = vadd.f32 %v3182, %v3449
        %v3451 = vpop.f32.mrb[0].mxu0
        %3452 = vmatprep.mubr.bf16.mxu0 0
        %3453 = vmatmul.mubr.bf16.gmra.mrb[0].mxu0 %v3245
        %v3454 = vpop.f32.mrb[0].mxu0
        %v3455 = vadd.f32 %v3182, %v3454
        %v3456 = vpop.f32.mrb[0].mxu0
        %v3457 = vpop.f32.mrb[0].mxu0
        %v3458 = vadd.f32 %v3182, %v3457
        %v3459 = vpop.f32.mrb[0].mxu0
        %3460 = vmatprep.mubr.bf16.mxu0 0
        %3461 = vmatmul.mubr.bf16.gmra.mrb[0].mxu0 %v3248
        %v3462 = vpop.f32.mrb[0].mxu0
        %v3463 = vadd.f32 %v3182, %v3462
        %v3464 = vpop.f32.mrb[0].mxu0
        %v3465 = vpop.f32.mrb[0].mxu0
        %v3466 = vadd.f32 %v3182, %v3465
        %v3467 = vpop.f32.mrb[0].mxu0
        %3468 = vmatprep.mubr.bf16.mxu0 0
        %3469 = vmatmul.mubr.bf16.gmra.mrb[0].mxu0 %v3251
        %v3470 = vpop.f32.mrb[0].mxu0
        %v3471 = vadd.f32 %v3182, %v3470
        %v3472 = vpop.f32.mrb[0].mxu0
        %v3473 = vpop.f32.mrb[0].mxu0
        %v3474 = vadd.f32 %v3182, %v3473
        %v3475 = vpop.f32.mrb[0].mxu0
        %3476 = vmatprep.mubr.bf16.mxu0 0
        %3477 = vmatmul.mubr.bf16.gmra.mrb[0].mxu0 %v3254
        %v3478 = vpop.f32.mrb[0].mxu0
        %v3479 = vadd.f32 %v3182, %v3478
        %v3480 = vpop.f32.mrb[0].mxu0
        %v3481 = vpop.f32.mrb[0].mxu0
        %v3482 = vadd.f32 %v3182, %v3481
        %v3483 = vpop.f32.mrb[0].mxu0
        %3484 = vmatprep.mubr.bf16.mxu0 0
        %3485 = vmatmul.mubr.bf16.gmra.mrb[0].mxu0 %v3257
        %v3486 = vpop.f32.mrb[0].mxu0
        %v3487 = vadd.f32 %v3182, %v3486
        %v3488 = vpop.f32.mrb[0].mxu0
        %v3489 = vpop.f32.mrb[0].mxu0
        %v3490 = vadd.f32 %v3182, %v3489
        %v3491 = vpop.f32.mrb[0].mxu0
        %3492 = vmatprep.mubr.bf16.mxu0 0
        %3493 = vmatmul.mubr.bf16.gmra.mrb[0].mxu0 %v3260
        %v3494 = vpop.f32.mrb[0].mxu0
        %v3495 = vadd.f32 %v3182, %v3494
        %v3496 = vpop.f32.mrb[0].mxu0
        %v3497 = vpop.f32.mrb[0].mxu0
        %v3498 = vadd.f32 %v3182, %v3497
        %v3499 = vpop.f32.mrb[0].mxu0
        %3500 = vmatprep.mubr.bf16.mxu0 0
        %3501 = vmatmul.mubr.bf16.gmra.mrb[0].mxu0 %v3263
        %v3502 = vpop.f32.mrb[0].mxu0
        %v3503 = vadd.f32 %v3182, %v3502
        %v3504 = vpop.f32.mrb[0].mxu0
        %v3505 = vpop.f32.mrb[0].mxu0
        %v3506 = vadd.f32 %v3182, %v3505
        %v3507 = vpop.f32.mrb[0].mxu0
        %3508 = vmatprep.mubr.bf16.mxu0 0
        %3509 = vmatmul.mubr.bf16.gmra.mrb[0].mxu0 %v3266
        %v3510 = vpop.f32.mrb[0].mxu0
        %v3511 = vadd.f32 %v3182, %v3510
        %v3512 = vpop.f32.mrb[0].mxu0
        %v3513 = vpop.f32.mrb[0].mxu0
        %v3514 = vadd.f32 %v3182, %v3513
        %v3515 = vpop.f32.mrb[0].mxu0
        %3516 = vmatprep.mubr.bf16.mxu0 0
        %3517 = vmatmul.mubr.bf16.gmra.mrb[0].mxu0 %v3269
        %v3518 = vpop.f32.mrb[0].mxu0
        %v3519 = vadd.f32 %v3182, %v3518
        %v3520 = vpop.f32.mrb[0].mxu0
        %v3521 = vpop.f32.mrb[0].mxu0
        %v3522 = vadd.f32 %v3182, %v3521
        %v3523 = vpop.f32.mrb[0].mxu0
        %3524 = vmatprep.mubr.bf16.mxu0 0
        %3525 = vmatmul.mubr.bf16.gmra.mrb[0].mxu0 %v3272
        %v3526 = vpop.f32.mrb[0].mxu0
        %v3527 = vadd.f32 %v3182, %v3526
        %v3528 = vpop.f32.mrb[0].mxu0
        %v3529 = vpop.f32.mrb[0].mxu0
        %v3530 = vadd.f32 %v3182, %v3529
        %v3531 = vpop.f32.mrb[0].mxu0
        %3532 = vmatprep.mubr.bf16.mxu0 0
        %3533 = vmatmul.mubr.bf16.gmra.mrb[0].mxu0 %v3275
        %v3534 = vpop.f32.mrb[0].mxu0
        %v3535 = vadd.f32 %v3182, %v3534
        %v3536 = vpop.f32.mrb[0].mxu0
        %v3537 = vpop.f32.mrb[0].mxu0
        %v3538 = vadd.f32 %v3182, %v3537
        %v3539 = vpop.f32.mrb[0].mxu0
        %3540 = vmatprep.mubr.bf16.mxu0 0
        %3541 = vmatmul.mubr.bf16.gmra.mrb[0].mxu0 %v3278
        %v3542 = vpop.f32.mrb[0].mxu0
        %v3543 = vadd.f32 %v3182, %v3542
        %v3544 = vpop.f32.mrb[0].mxu0
        %v3545 = vpop.f32.mrb[0].mxu0
        %v3546 = vadd.f32 %v3182, %v3545
        %v3547 = vpop.f32.mrb[0].mxu0
        %3548 = vmatprep.mubr.bf16.mxu0 0
        %3549 = vmatmul.mubr.bf16.gmra.mrb[0].mxu0 %v3281
        %v3550 = vpop.f32.mrb[0].mxu0
        %v3551 = vadd.f32 %v3182, %v3550
        %v3552 = vpop.f32.mrb[0].mxu0
        %v3553 = vpop.f32.mrb[0].mxu0
        %v3554 = vadd.f32 %v3182, %v3553
        %v3555 = vpop.f32.mrb[0].mxu0
        %3556 = vmatprep.mubr.bf16.mxu0 0
        %3557 = vmatmul.mubr.bf16.gmra.mrb[0].mxu0 %v3284
        %v3558 = vpop.f32.mrb[0].mxu0
        %v3559 = vadd.f32 %v3182, %v3558
        %v3560 = vpop.f32.mrb[0].mxu0
        %v3561 = vpop.f32.mrb[0].mxu0
        %v3562 = vadd.f32 %v3182, %v3561
        %v3563 = vpop.f32.mrb[0].mxu0
        %3564 = vmatprep.mubr.bf16.mxu0 0
        %3565 = vmatmul.mubr.bf16.gmra.mrb[0].mxu0 %v3287
        %v3566 = vpop.f32.mrb[0].mxu0
        %v3567 = vadd.f32 %v3182, %v3566
        %v3568 = vpop.f32.mrb[0].mxu0
        %v3569 = vpop.f32.mrb[0].mxu0
        %v3570 = vadd.f32 %v3182, %v3569
        %v3571 = vpop.f32.mrb[0].mxu0
        %3572 = vmatprep.mubr.bf16.mxu0 0
        %3573 = vmatmul.mubr.bf16.gmra.mrb[0].mxu0 %v3290
        %v3574 = vpop.f32.mrb[0].mxu0
        %v3575 = vadd.f32 %v3182, %v3574
        %v3576 = vpop.f32.mrb[0].mxu0
        %v3577 = vpop.f32.mrb[0].mxu0
        %v3578 = vadd.f32 %v3182, %v3577
        %v3579 = vpop.f32.mrb[0].mxu0
        %3580 = vdwg.mxu0
        %v3581 = vmax.f32 %v3327, 0.0
        %v3582 = vmax.f32 %v3330, 0.0
        %v3583 = vmax.f32 %v3335, 0.0
        %v3584 = vmax.f32 %v3338, 0.0
        %v3585 = vmax.f32 %v3343, 0.0
        %v3586 = vmax.f32 %v3346, 0.0
        %v3587 = vmax.f32 %v3351, 0.0
        %v3588 = vmax.f32 %v3354, 0.0
        %v3589 = vmax.f32 %v3359, 0.0
        %v3590 = vmax.f32 %v3362, 0.0
        %v3591 = vmax.f32 %v3367, 0.0
        %v3592 = vmax.f32 %v3370, 0.0
        %v3593 = vmax.f32 %v3375, 0.0
        %v3594 = vmax.f32 %v3378, 0.0
        %v3595 = vmax.f32 %v3383, 0.0
        %v3596 = vmax.f32 %v3386, 0.0
        %v3597 = vmax.f32 %v3391, 0.0
        %v3598 = vmax.f32 %v3394, 0.0
        %v3599 = vmax.f32 %v3399, 0.0
        %v3600 = vmax.f32 %v3402, 0.0
        %v3601 = vmax.f32 %v3407, 0.0
        %v3602 = vmax.f32 %v3410, 0.0
        %v3603 = vmax.f32 %v3415, 0.0
        %v3604 = vmax.f32 %v3418, 0.0
        %v3605 = vmax.f32 %v3423, 0.0
        %v3606 = vmax.f32 %v3426, 0.0
        %v3607 = vmax.f32 %v3431, 0.0
        %v3608 = vmax.f32 %v3434, 0.0
        %v3609 = vmax.f32 %v3439, 0.0
        %v3610 = vmax.f32 %v3442, 0.0
        %v3611 = vmax.f32 %v3447, 0.0
        %v3612 = vmax.f32 %v3450, 0.0
        %v3613 = vmax.f32 %v3455, 0.0
        %v3614 = vmax.f32 %v3458, 0.0
        %v3615 = vmax.f32 %v3463, 0.0
        %v3616 = vmax.f32 %v3466, 0.0
        %v3617 = vmax.f32 %v3471, 0.0
        %v3618 = vmax.f32 %v3474, 0.0
        %v3619 = vmax.f32 %v3479, 0.0
        %v3620 = vmax.f32 %v3482, 0.0
        %v3621 = vmax.f32 %v3487, 0.0
        %v3622 = vmax.f32 %v3490, 0.0
        %v3623 = vmax.f32 %v3495, 0.0
        %v3624 = vmax.f32 %v3498, 0.0
        %v3625 = vmax.f32 %v3503, 0.0
        %v3626 = vmax.f32 %v3506, 0.0
        %v3627 = vmax.f32 %v3511, 0.0
        %v3628 = vmax.f32 %v3514, 0.0
        %v3629 = vmax.f32 %v3519, 0.0
        %v3630 = vmax.f32 %v3522, 0.0
        %v3631 = vmax.f32 %v3527, 0.0
        %v3632 = vmax.f32 %v3530, 0.0
        %v3633 = vmax.f32 %v3535, 0.0
        %v3634 = vmax.f32 %v3538, 0.0
        %v3635 = vmax.f32 %v3543, 0.0
        %v3636 = vmax.f32 %v3546, 0.0
        %v3637 = vmax.f32 %v3551, 0.0
        %v3638 = vmax.f32 %v3554, 0.0
        %v3639 = vmax.f32 %v3559, 0.0
        %v3640 = vmax.f32 %v3562, 0.0
        %v3641 = vmax.f32 %v3567, 0.0
        %v3642 = vmax.f32 %v3570, 0.0
        %v3643 = vmax.f32 %v3575, 0.0
        %v3644 = vmax.f32 %v3578, 0.0
        %v3645 = vld [vmem:[%s8] sm:$0x1]
        %v3647 = vlaneseq
        %v3648 = vshrl.u32 %v3647, 7
        %v3649 = vsub.s32 0, %v3648
        %v3650 = vrot.slane %v3645, %v3649
        %v3652 = vmul.f32 %v3581, %v3650
        %v3653 = vmul.f32 %v3582, %v3650
        %v3654 = vmul.f32 %v3583, %v3650
        %v3655 = vmul.f32 %v3584, %v3650
        %v3656 = vmul.f32 %v3585, %v3650
        %v3657 = vmul.f32 %v3586, %v3650
        %v3658 = vmul.f32 %v3587, %v3650
        %v3659 = vmul.f32 %v3588, %v3650
        %v3660 = vmul.f32 %v3589, %v3650
        %v3661 = vmul.f32 %v3590, %v3650
        %v3662 = vmul.f32 %v3591, %v3650
        %v3663 = vmul.f32 %v3592, %v3650
        %v3664 = vmul.f32 %v3593, %v3650
        %v3665 = vmul.f32 %v3594, %v3650
        %v3666 = vmul.f32 %v3595, %v3650
        %v3667 = vmul.f32 %v3596, %v3650
        %v3668 = vmul.f32 %v3597, %v3650
        %v3669 = vmul.f32 %v3598, %v3650
        %v3670 = vmul.f32 %v3599, %v3650
        %v3671 = vmul.f32 %v3600, %v3650
        %v3672 = vmul.f32 %v3601, %v3650
        %v3673 = vmul.f32 %v3602, %v3650
        %v3674 = vmul.f32 %v3603, %v3650
        %v3675 = vmul.f32 %v3604, %v3650
        %v3676 = vmul.f32 %v3605, %v3650
        %v3677 = vmul.f32 %v3606, %v3650
        %v3678 = vmul.f32 %v3607, %v3650
        %v3679 = vmul.f32 %v3608, %v3650
        %v3680 = vmul.f32 %v3609, %v3650
        %v3681 = vmul.f32 %v3610, %v3650
        %v3682 = vmul.f32 %v3611, %v3650
        %v3683 = vmul.f32 %v3612, %v3650
        %v3684 = vmul.f32 %v3613, %v3650
        %v3685 = vmul.f32 %v3614, %v3650
        %v3686 = vmul.f32 %v3615, %v3650
        %v3687 = vmul.f32 %v3616, %v3650
        %v3688 = vmul.f32 %v3617, %v3650
        %v3689 = vmul.f32 %v3618, %v3650
        %v3690 = vmul.f32 %v3619, %v3650
        %v3691 = vmul.f32 %v3620, %v3650
        %v3692 = vmul.f32 %v3621, %v3650
        %v3693 = vmul.f32 %v3622, %v3650
        %v3694 = vmul.f32 %v3623, %v3650
        %v3695 = vmul.f32 %v3624, %v3650
        %v3696 = vmul.f32 %v3625, %v3650
        %v3697 = vmul.f32 %v3626, %v3650
        %v3698 = vmul.f32 %v3627, %v3650
        %v3699 = vmul.f32 %v3628, %v3650
        %v3700 = vmul.f32 %v3629, %v3650
        %v3701 = vmul.f32 %v3630, %v3650
        %v3702 = vmul.f32 %v3631, %v3650
        %v3703 = vmul.f32 %v3632, %v3650
        %v3704 = vmul.f32 %v3633, %v3650
        %v3705 = vmul.f32 %v3634, %v3650
        %v3706 = vmul.f32 %v3635, %v3650
        %v3707 = vmul.f32 %v3636, %v3650
        %v3708 = vmul.f32 %v3637, %v3650
        %v3709 = vmul.f32 %v3638, %v3650
        %v3710 = vmul.f32 %v3639, %v3650
        %v3711 = vmul.f32 %v3640, %v3650
        %v3712 = vmul.f32 %v3641, %v3650
        %v3713 = vmul.f32 %v3642, %v3650
        %v3714 = vmul.f32 %v3643, %v3650
        %v3715 = vmul.f32 %v3644, %v3650
        %v3716 = vsel %vm448, %v3652, 0.0
        %3717 = vadd.xlane.f32.xlu0 %v3716
        %v3718 = vpop.xlane.xlu0 %3717
        %v3719 = vsel %vm448, %v3653, 0.0
        %3720 = vadd.xlane.f32.xlu0 %v3719
        %v3721 = vpop.xlane.xlu0 %3720
        %v3722 = vsel %vm448, %v3654, 0.0
        %3723 = vadd.xlane.f32.xlu0 %v3722
        %v3724 = vpop.xlane.xlu0 %3723
        %v3725 = vsel %vm448, %v3655, 0.0
        %3726 = vadd.xlane.f32.xlu0 %v3725
        %v3727 = vpop.xlane.xlu0 %3726
        %v3728 = vsel %vm448, %v3656, 0.0
        %3729 = vadd.xlane.f32.xlu0 %v3728
        %v3730 = vpop.xlane.xlu0 %3729
        %v3731 = vsel %vm448, %v3657, 0.0
        %3732 = vadd.xlane.f32.xlu0 %v3731
        %v3733 = vpop.xlane.xlu0 %3732
        %v3734 = vsel %vm448, %v3658, 0.0
        %3735 = vadd.xlane.f32.xlu0 %v3734
        %v3736 = vpop.xlane.xlu0 %3735
        %v3737 = vsel %vm448, %v3659, 0.0
        %3738 = vadd.xlane.f32.xlu0 %v3737
        %v3739 = vpop.xlane.xlu0 %3738
        %v3740 = vsel %vm448, %v3660, 0.0
        %3741 = vadd.xlane.f32.xlu0 %v3740
        %v3742 = vpop.xlane.xlu0 %3741
        %v3743 = vsel %vm448, %v3661, 0.0
        %3744 = vadd.xlane.f32.xlu0 %v3743
        %v3745 = vpop.xlane.xlu0 %3744
        %v3746 = vsel %vm448, %v3662, 0.0
        %3747 = vadd.xlane.f32.xlu0 %v3746
        %v3748 = vpop.xlane.xlu0 %3747
        %v3749 = vsel %vm448, %v3663, 0.0
        %3750 = vadd.xlane.f32.xlu0 %v3749
        %v3751 = vpop.xlane.xlu0 %3750
        %v3752 = vsel %vm448, %v3664, 0.0
        %3753 = vadd.xlane.f32.xlu0 %v3752
        %v3754 = vpop.xlane.xlu0 %3753
        %v3755 = vsel %vm448, %v3665, 0.0
        %3756 = vadd.xlane.f32.xlu0 %v3755
        %v3757 = vpop.xlane.xlu0 %3756
        %v3758 = vsel %vm448, %v3666, 0.0
        %3759 = vadd.xlane.f32.xlu0 %v3758
        %v3760 = vpop.xlane.xlu0 %3759
        %v3761 = vsel %vm448, %v3667, 0.0
        %3762 = vadd.xlane.f32.xlu0 %v3761
        %v3763 = vpop.xlane.xlu0 %3762
        %v3764 = vsel %vm448, %v3668, 0.0
        %3765 = vadd.xlane.f32.xlu0 %v3764
        %v3766 = vpop.xlane.xlu0 %3765
        %v3767 = vsel %vm448, %v3669, 0.0
        %3768 = vadd.xlane.f32.xlu0 %v3767
        %v3769 = vpop.xlane.xlu0 %3768
        %v3770 = vsel %vm448, %v3670, 0.0
        %3771 = vadd.xlane.f32.xlu0 %v3770
        %v3772 = vpop.xlane.xlu0 %3771
        %v3773 = vsel %vm448, %v3671, 0.0
        %3774 = vadd.xlane.f32.xlu0 %v3773
        %v3775 = vpop.xlane.xlu0 %3774
        %v3776 = vsel %vm448, %v3672, 0.0
        %3777 = vadd.xlane.f32.xlu0 %v3776
        %v3778 = vpop.xlane.xlu0 %3777
        %v3779 = vsel %vm448, %v3673, 0.0
        %3780 = vadd.xlane.f32.xlu0 %v3779
        %v3781 = vpop.xlane.xlu0 %3780
        %v3782 = vsel %vm448, %v3674, 0.0
        %3783 = vadd.xlane.f32.xlu0 %v3782
        %v3784 = vpop.xlane.xlu0 %3783
        %v3785 = vsel %vm448, %v3675, 0.0
        %3786 = vadd.xlane.f32.xlu0 %v3785
        %v3787 = vpop.xlane.xlu0 %3786
        %v3788 = vsel %vm448, %v3676, 0.0
        %3789 = vadd.xlane.f32.xlu0 %v3788
        %v3790 = vpop.xlane.xlu0 %3789
        %v3791 = vsel %vm448, %v3677, 0.0
        %3792 = vadd.xlane.f32.xlu0 %v3791
        %v3793 = vpop.xlane.xlu0 %3792
        %v3794 = vsel %vm448, %v3678, 0.0
        %3795 = vadd.xlane.f32.xlu0 %v3794
        %v3796 = vpop.xlane.xlu0 %3795
        %v3797 = vsel %vm448, %v3679, 0.0
        %3798 = vadd.xlane.f32.xlu0 %v3797
        %v3799 = vpop.xlane.xlu0 %3798
        %v3800 = vsel %vm448, %v3680, 0.0
        %3801 = vadd.xlane.f32.xlu0 %v3800
        %v3802 = vpop.xlane.xlu0 %3801
        %v3803 = vsel %vm448, %v3681, 0.0
        %3804 = vadd.xlane.f32.xlu0 %v3803
        %v3805 = vpop.xlane.xlu0 %3804
        %v3806 = vsel %vm448, %v3682, 0.0
        %3807 = vadd.xlane.f32.xlu0 %v3806
        %v3808 = vpop.xlane.xlu0 %3807
        %v3809 = vsel %vm448, %v3683, 0.0
        %3810 = vadd.xlane.f32.xlu0 %v3809
        %v3811 = vpop.xlane.xlu0 %3810
        %v3812 = vsel %vm448, %v3684, 0.0
        %3813 = vadd.xlane.f32.xlu0 %v3812
        %v3814 = vpop.xlane.xlu0 %3813
        %v3815 = vsel %vm448, %v3685, 0.0
        %3816 = vadd.xlane.f32.xlu0 %v3815
        %v3817 = vpop.xlane.xlu0 %3816
        %v3818 = vsel %vm448, %v3686, 0.0
        %3819 = vadd.xlane.f32.xlu0 %v3818
        %v3820 = vpop.xlane.xlu0 %3819
        %v3821 = vsel %vm448, %v3687, 0.0
        %3822 = vadd.xlane.f32.xlu0 %v3821
        %v3823 = vpop.xlane.xlu0 %3822
        %v3824 = vsel %vm448, %v3688, 0.0
        %3825 = vadd.xlane.f32.xlu0 %v3824
        %v3826 = vpop.xlane.xlu0 %3825
        %v3827 = vsel %vm448, %v3689, 0.0
        %3828 = vadd.xlane.f32.xlu0 %v3827
        %v3829 = vpop.xlane.xlu0 %3828
        %v3830 = vsel %vm448, %v3690, 0.0
        %3831 = vadd.xlane.f32.xlu0 %v3830
        %v3832 = vpop.xlane.xlu0 %3831
        %v3833 = vsel %vm448, %v3691, 0.0
        %3834 = vadd.xlane.f32.xlu0 %v3833
        %v3835 = vpop.xlane.xlu0 %3834
        %v3836 = vsel %vm448, %v3692, 0.0
        %3837 = vadd.xlane.f32.xlu0 %v3836
        %v3838 = vpop.xlane.xlu0 %3837
        %v3839 = vsel %vm448, %v3693, 0.0
        %3840 = vadd.xlane.f32.xlu0 %v3839
        %v3841 = vpop.xlane.xlu0 %3840
        %v3842 = vsel %vm448, %v3694, 0.0
        %3843 = vadd.xlane.f32.xlu0 %v3842
        %v3844 = vpop.xlane.xlu0 %3843
        %v3845 = vsel %vm448, %v3695, 0.0
        %3846 = vadd.xlane.f32.xlu0 %v3845
        %v3847 = vpop.xlane.xlu0 %3846
        %v3848 = vsel %vm448, %v3696, 0.0
        %3849 = vadd.xlane.f32.xlu0 %v3848
        %v3850 = vpop.xlane.xlu0 %3849
        %v3851 = vsel %vm448, %v3697, 0.0
        %3852 = vadd.xlane.f32.xlu0 %v3851
        %v3853 = vpop.xlane.xlu0 %3852
        %v3854 = vsel %vm448, %v3698, 0.0
        %3855 = vadd.xlane.f32.xlu0 %v3854
        %v3856 = vpop.xlane.xlu0 %3855
        %v3857 = vsel %vm448, %v3699, 0.0
        %3858 = vadd.xlane.f32.xlu0 %v3857
        %v3859 = vpop.xlane.xlu0 %3858
        %v3860 = vsel %vm448, %v3700, 0.0
        %3861 = vadd.xlane.f32.xlu0 %v3860
        %v3862 = vpop.xlane.xlu0 %3861
        %v3863 = vsel %vm448, %v3701, 0.0
        %3864 = vadd.xlane.f32.xlu0 %v3863
        %v3865 = vpop.xlane.xlu0 %3864
        %v3866 = vsel %vm448, %v3702, 0.0
        %3867 = vadd.xlane.f32.xlu0 %v3866
        %v3868 = vpop.xlane.xlu0 %3867
        %v3869 = vsel %vm448, %v3703, 0.0
        %3870 = vadd.xlane.f32.xlu0 %v3869
        %v3871 = vpop.xlane.xlu0 %3870
        %v3872 = vsel %vm448, %v3704, 0.0
        %3873 = vadd.xlane.f32.xlu0 %v3872
        %v3874 = vpop.xlane.xlu0 %3873
        %v3875 = vsel %vm448, %v3705, 0.0
        %3876 = vadd.xlane.f32.xlu0 %v3875
        %v3877 = vpop.xlane.xlu0 %3876
        %v3878 = vsel %vm448, %v3706, 0.0
        %3879 = vadd.xlane.f32.xlu0 %v3878
        %v3880 = vpop.xlane.xlu0 %3879
        %v3881 = vsel %vm448, %v3707, 0.0
        %3882 = vadd.xlane.f32.xlu0 %v3881
        %v3883 = vpop.xlane.xlu0 %3882
        %v3884 = vsel %vm448, %v3708, 0.0
        %3885 = vadd.xlane.f32.xlu0 %v3884
        %v3886 = vpop.xlane.xlu0 %3885
        %v3887 = vsel %vm448, %v3709, 0.0
        %3888 = vadd.xlane.f32.xlu0 %v3887
        %v3889 = vpop.xlane.xlu0 %3888
        %v3890 = vsel %vm448, %v3710, 0.0
        %3891 = vadd.xlane.f32.xlu0 %v3890
        %v3892 = vpop.xlane.xlu0 %3891
        %v3893 = vsel %vm448, %v3711, 0.0
        %3894 = vadd.xlane.f32.xlu0 %v3893
        %v3895 = vpop.xlane.xlu0 %3894
        %v3896 = vsel %vm448, %v3712, 0.0
        %3897 = vadd.xlane.f32.xlu0 %v3896
        %v3898 = vpop.xlane.xlu0 %3897
        %v3899 = vsel %vm448, %v3713, 0.0
        %3900 = vadd.xlane.f32.xlu0 %v3899
        %v3901 = vpop.xlane.xlu0 %3900
        %v3902 = vsel %vm448, %v3714, 0.0
        %3903 = vadd.xlane.f32.xlu0 %v3902
        %v3904 = vpop.xlane.xlu0 %3903
        %v3905 = vsel %vm448, %v3715, 0.0
        %3906 = vadd.xlane.f32.xlu0 %v3905
        %v3907 = vpop.xlane.xlu0 %3906
        %s3908 = sld [smem:[#allocation2]]
        %v3909 = vstv %s3908
        %v3910 = vadd.f32 %v3718, %v3909
        %v3911 = vadd.f32 %v3721, %v3909
        %v3912 = vadd.f32 %v3724, %v3909
        %v3913 = vadd.f32 %v3727, %v3909
        %v3914 = vadd.f32 %v3730, %v3909
        %v3915 = vadd.f32 %v3733, %v3909
        %v3916 = vadd.f32 %v3736, %v3909
        %v3917 = vadd.f32 %v3739, %v3909
        %v3918 = vadd.f32 %v3742, %v3909
        %v3919 = vadd.f32 %v3745, %v3909
        %v3920 = vadd.f32 %v3748, %v3909
        %v3921 = vadd.f32 %v3751, %v3909
        %v3922 = vadd.f32 %v3754, %v3909
        %v3923 = vadd.f32 %v3757, %v3909
        %v3924 = vadd.f32 %v3760, %v3909
        %v3925 = vadd.f32 %v3763, %v3909
        %v3926 = vadd.f32 %v3766, %v3909
        %v3927 = vadd.f32 %v3769, %v3909
        %v3928 = vadd.f32 %v3772, %v3909
        %v3929 = vadd.f32 %v3775, %v3909
        %v3930 = vadd.f32 %v3778, %v3909
        %v3931 = vadd.f32 %v3781, %v3909
        %v3932 = vadd.f32 %v3784, %v3909
        %v3933 = vadd.f32 %v3787, %v3909
        %v3934 = vadd.f32 %v3790, %v3909
        %v3935 = vadd.f32 %v3793, %v3909
        %v3936 = vadd.f32 %v3796, %v3909
        %v3937 = vadd.f32 %v3799, %v3909
        %v3938 = vadd.f32 %v3802, %v3909
        %v3939 = vadd.f32 %v3805, %v3909
        %v3940 = vadd.f32 %v3808, %v3909
        %v3941 = vadd.f32 %v3811, %v3909
        %v3942 = vadd.f32 %v3814, %v3909
        %v3943 = vadd.f32 %v3817, %v3909
        %v3944 = vadd.f32 %v3820, %v3909
        %v3945 = vadd.f32 %v3823, %v3909
        %v3946 = vadd.f32 %v3826, %v3909
        %v3947 = vadd.f32 %v3829, %v3909
        %v3948 = vadd.f32 %v3832, %v3909
        %v3949 = vadd.f32 %v3835, %v3909
        %v3950 = vadd.f32 %v3838, %v3909
        %v3951 = vadd.f32 %v3841, %v3909
        %v3952 = vadd.f32 %v3844, %v3909
        %v3953 = vadd.f32 %v3847, %v3909
        %v3954 = vadd.f32 %v3850, %v3909
        %v3955 = vadd.f32 %v3853, %v3909
        %v3956 = vadd.f32 %v3856, %v3909
        %v3957 = vadd.f32 %v3859, %v3909
        %v3958 = vadd.f32 %v3862, %v3909
        %v3959 = vadd.f32 %v3865, %v3909
        %v3960 = vadd.f32 %v3868, %v3909
        %v3961 = vadd.f32 %v3871, %v3909
        %v3962 = vadd.f32 %v3874, %v3909
        %v3963 = vadd.f32 %v3877, %v3909
        %v3964 = vadd.f32 %v3880, %v3909
        %v3965 = vadd.f32 %v3883, %v3909
        %v3966 = vadd.f32 %v3886, %v3909
        %v3967 = vadd.f32 %v3889, %v3909
        %v3968 = vadd.f32 %v3892, %v3909
        %v3969 = vadd.f32 %v3895, %v3909
        %v3970 = vadd.f32 %v3898, %v3909
        %v3971 = vadd.f32 %v3901, %v3909
        %v3972 = vadd.f32 %v3904, %v3909
        %v3973 = vadd.f32 %v3907, %v3909
        %v3990 = vlaneseq
        %v3991 = vand.u32 %v3990, 127
        %v3992 = vlaneseq
        %v3993 = vshrl.u32 %v3992, 7
        %v3994 = vsub.s32 %v3991, %v3993
        %v3995 = vrot.slane %v3910, %v3994
        %v3996 = vadd.s32 %v3991, 4294967288
        %v3997 = vlaneseq
        %v3998 = vshrl.u32 %v3997, 7
        %v3999 = vsub.s32 %v3996, %v3998
        %v4000 = vrot.slane %v3911, %v3999
        %vm4001 = vcmask 130112
        %v4002 = vsel %vm4001, %v4000, %v3995
        %v4003 = vadd.s32 %v3991, 4294967280
        %v4004 = vlaneseq
        %v4005 = vshrl.u32 %v4004, 7
        %v4006 = vsub.s32 %v4003, %v4005
        %v4007 = vrot.slane %v3912, %v4006
        %vm4008 = vcmask 195712
        %v4009 = vsel %vm4008, %v4007, %v4002
        %v4010 = vadd.s32 %v3991, 4294967272
        %v4011 = vlaneseq
        %v4012 = vshrl.u32 %v4011, 7
        %v4013 = vsub.s32 %v4010, %v4012
        %v4014 = vrot.slane %v3913, %v4013
        %vm4015 = vcmask 261312
        %v4016 = vsel %vm4015, %v4014, %v4009
        %v4017 = vadd.s32 %v3991, 4294967264
        %v4018 = vlaneseq
        %v4019 = vshrl.u32 %v4018, 7
        %v4020 = vsub.s32 %v4017, %v4019
        %v4021 = vrot.slane %v3914, %v4020
        %vm4022 = vcmask 326912
        %v4023 = vsel %vm4022, %v4021, %v4016
        %v4024 = vadd.s32 %v3991, 4294967256
        %v4025 = vlaneseq
        %v4026 = vshrl.u32 %v4025, 7
        %v4027 = vsub.s32 %v4024, %v4026
        %v4028 = vrot.slane %v3915, %v4027
        %vm4029 = vcmask 392512
        %v4030 = vsel %vm4029, %v4028, %v4023
        %v4031 = vadd.s32 %v3991, 4294967248
        %v4032 = vlaneseq
        %v4033 = vshrl.u32 %v4032, 7
        %v4034 = vsub.s32 %v4031, %v4033
        %v4035 = vrot.slane %v3916, %v4034
        %vm4036 = vcmask 458112
        %v4037 = vsel %vm4036, %v4035, %v4030
        %v4038 = vadd.s32 %v3991, 4294967240
        %v4039 = vlaneseq
        %v4040 = vshrl.u32 %v4039, 7
        %v4041 = vsub.s32 %v4038, %v4040
        %v4042 = vrot.slane %v3917, %v4041
        %vm4043 = vcmask 523712
        %v4044 = vsel %vm4043, %v4042, %v4037
        %v4045 = vadd.s32 %v3991, 4294967232
        %v4046 = vlaneseq
        %v4047 = vshrl.u32 %v4046, 7
        %v4048 = vsub.s32 %v4045, %v4047
        %v4049 = vrot.slane %v3918, %v4048
        %vm4050 = vcmask 589312
        %v4051 = vsel %vm4050, %v4049, %v4044
        %v4052 = vadd.s32 %v3991, 4294967224
        %v4053 = vlaneseq
        %v4054 = vshrl.u32 %v4053, 7
        %v4055 = vsub.s32 %v4052, %v4054
        %v4056 = vrot.slane %v3919, %v4055
        %vm4057 = vcmask 654912
        %v4058 = vsel %vm4057, %v4056, %v4051
        %v4059 = vadd.s32 %v3991, 4294967216
        %v4060 = vlaneseq
        %v4061 = vshrl.u32 %v4060, 7
        %v4062 = vsub.s32 %v4059, %v4061
        %v4063 = vrot.slane %v3920, %v4062
        %vm4064 = vcmask 720512
        %v4065 = vsel %vm4064, %v4063, %v4058
        %v4066 = vadd.s32 %v3991, 4294967208
        %v4067 = vlaneseq
        %v4068 = vshrl.u32 %v4067, 7
        %v4069 = vsub.s32 %v4066, %v4068
        %v4070 = vrot.slane %v3921, %v4069
        %vm4071 = vcmask 786112
        %v4072 = vsel %vm4071, %v4070, %v4065
        %v4073 = vadd.s32 %v3991, 4294967200
        %v4074 = vlaneseq
        %v4075 = vshrl.u32 %v4074, 7
        %v4076 = vsub.s32 %v4073, %v4075
        %v4077 = vrot.slane %v3922, %v4076
        %vm4078 = vcmask 851712
        %v4079 = vsel %vm4078, %v4077, %v4072
        %v4080 = vadd.s32 %v3991, 4294967192
        %v4081 = vlaneseq
        %v4082 = vshrl.u32 %v4081, 7
        %v4083 = vsub.s32 %v4080, %v4082
        %v4084 = vrot.slane %v3923, %v4083
        %vm4085 = vcmask 917312
        %v4086 = vsel %vm4085, %v4084, %v4079
        %v4087 = vadd.s32 %v3991, 4294967184
        %v4088 = vlaneseq
        %v4089 = vshrl.u32 %v4088, 7
        %v4090 = vsub.s32 %v4087, %v4089
        %v4091 = vrot.slane %v3924, %v4090
        %vm4092 = vcmask 982912
        %v4093 = vsel %vm4092, %v4091, %v4086
        %v4094 = vadd.s32 %v3991, 4294967176
        %v4095 = vlaneseq
        %v4096 = vshrl.u32 %v4095, 7
        %v4097 = vsub.s32 %v4094, %v4096
        %v4098 = vrot.slane %v3925, %v4097
        %vm4099 = vcmask 1048512
        %v4100 = vsel %vm4099, %v4098, %v4093
        %4101 = vst [vmem:[%s370] ss:$4 sm:$0x1] %v4100
        %v4118 = vlaneseq
        %v4119 = vshrl.u32 %v4118, 7
        %v4120 = vsub.s32 %v3991, %v4119
        %v4121 = vrot.slane %v3926, %v4120
        %v4122 = vlaneseq
        %v4123 = vshrl.u32 %v4122, 7
        %v4124 = vsub.s32 %v3996, %v4123
        %v4125 = vrot.slane %v3927, %v4124
        %v4126 = vsel %vm4001, %v4125, %v4121
        %v4127 = vlaneseq
        %v4128 = vshrl.u32 %v4127, 7
        %v4129 = vsub.s32 %v4003, %v4128
        %v4130 = vrot.slane %v3928, %v4129
        %v4131 = vsel %vm4008, %v4130, %v4126
        %v4132 = vlaneseq
        %v4133 = vshrl.u32 %v4132, 7
        %v4134 = vsub.s32 %v4010, %v4133
        %v4135 = vrot.slane %v3929, %v4134
        %v4136 = vsel %vm4015, %v4135, %v4131
        %v4137 = vlaneseq
        %v4138 = vshrl.u32 %v4137, 7
        %v4139 = vsub.s32 %v4017, %v4138
        %v4140 = vrot.slane %v3930, %v4139
        %v4141 = vsel %vm4022, %v4140, %v4136
        %v4142 = vlaneseq
        %v4143 = vshrl.u32 %v4142, 7
        %v4144 = vsub.s32 %v4024, %v4143
        %v4145 = vrot.slane %v3931, %v4144
        %v4146 = vsel %vm4029, %v4145, %v4141
        %v4147 = vlaneseq
        %v4148 = vshrl.u32 %v4147, 7
        %v4149 = vsub.s32 %v4031, %v4148
        %v4150 = vrot.slane %v3932, %v4149
        %v4151 = vsel %vm4036, %v4150, %v4146
        %v4152 = vlaneseq
        %v4153 = vshrl.u32 %v4152, 7
        %v4154 = vsub.s32 %v4038, %v4153
        %v4155 = vrot.slane %v3933, %v4154
        %v4156 = vsel %vm4043, %v4155, %v4151
        %v4157 = vlaneseq
        %v4158 = vshrl.u32 %v4157, 7
        %v4159 = vsub.s32 %v4045, %v4158
        %v4160 = vrot.slane %v3934, %v4159
        %v4161 = vsel %vm4050, %v4160, %v4156
        %v4162 = vlaneseq
        %v4163 = vshrl.u32 %v4162, 7
        %v4164 = vsub.s32 %v4052, %v4163
        %v4165 = vrot.slane %v3935, %v4164
        %v4166 = vsel %vm4057, %v4165, %v4161
        %v4167 = vlaneseq
        %v4168 = vshrl.u32 %v4167, 7
        %v4169 = vsub.s32 %v4059, %v4168
        %v4170 = vrot.slane %v3936, %v4169
        %v4171 = vsel %vm4064, %v4170, %v4166
        %v4172 = vlaneseq
        %v4173 = vshrl.u32 %v4172, 7
        %v4174 = vsub.s32 %v4066, %v4173
        %v4175 = vrot.slane %v3937, %v4174
        %v4176 = vsel %vm4071, %v4175, %v4171
        %v4177 = vlaneseq
        %v4178 = vshrl.u32 %v4177, 7
        %v4179 = vsub.s32 %v4073, %v4178
        %v4180 = vrot.slane %v3938, %v4179
        %v4181 = vsel %vm4078, %v4180, %v4176
        %v4182 = vlaneseq
        %v4183 = vshrl.u32 %v4182, 7
        %v4184 = vsub.s32 %v4080, %v4183
        %v4185 = vrot.slane %v3939, %v4184
        %v4186 = vsel %vm4085, %v4185, %v4181
        %v4187 = vlaneseq
        %v4188 = vshrl.u32 %v4187, 7
        %v4189 = vsub.s32 %v4087, %v4188
        %v4190 = vrot.slane %v3940, %v4189
        %v4191 = vsel %vm4092, %v4190, %v4186
        %v4192 = vlaneseq
        %v4193 = vshrl.u32 %v4192, 7
        %v4194 = vsub.s32 %v4094, %v4193
        %v4195 = vrot.slane %v3941, %v4194
        %v4196 = vsel %vm4099, %v4195, %v4191
        %s4197 = scalar_lea.vmem %s370, 1 [#allocation3]
        %4198 = vst [vmem:[%s4197] ss:$4 sm:$0x1] %v4196
        %v4215 = vlaneseq
        %v4216 = vshrl.u32 %v4215, 7
        %v4217 = vsub.s32 %v3991, %v4216
        %v4218 = vrot.slane %v3942, %v4217
        %v4219 = vlaneseq
        %v4220 = vshrl.u32 %v4219, 7
        %v4221 = vsub.s32 %v3996, %v4220
        %v4222 = vrot.slane %v3943, %v4221
        %v4223 = vsel %vm4001, %v4222, %v4218
        %v4224 = vlaneseq
        %v4225 = vshrl.u32 %v4224, 7
        %v4226 = vsub.s32 %v4003, %v4225
        %v4227 = vrot.slane %v3944, %v4226
        %v4228 = vsel %vm4008, %v4227, %v4223
        %v4229 = vlaneseq
        %v4230 = vshrl.u32 %v4229, 7
        %v4231 = vsub.s32 %v4010, %v4230
        %v4232 = vrot.slane %v3945, %v4231
        %v4233 = vsel %vm4015, %v4232, %v4228
        %v4234 = vlaneseq
        %v4235 = vshrl.u32 %v4234, 7
        %v4236 = vsub.s32 %v4017, %v4235
        %v4237 = vrot.slane %v3946, %v4236
        %v4238 = vsel %vm4022, %v4237, %v4233
        %v4239 = vlaneseq
        %v4240 = vshrl.u32 %v4239, 7
        %v4241 = vsub.s32 %v4024, %v4240
        %v4242 = vrot.slane %v3947, %v4241
        %v4243 = vsel %vm4029, %v4242, %v4238
        %v4244 = vlaneseq
        %v4245 = vshrl.u32 %v4244, 7
        %v4246 = vsub.s32 %v4031, %v4245
        %v4247 = vrot.slane %v3948, %v4246
        %v4248 = vsel %vm4036, %v4247, %v4243
        %v4249 = vlaneseq
        %v4250 = vshrl.u32 %v4249, 7
        %v4251 = vsub.s32 %v4038, %v4250
        %v4252 = vrot.slane %v3949, %v4251
        %v4253 = vsel %vm4043, %v4252, %v4248
        %v4254 = vlaneseq
        %v4255 = vshrl.u32 %v4254, 7
        %v4256 = vsub.s32 %v4045, %v4255
        %v4257 = vrot.slane %v3950, %v4256
        %v4258 = vsel %vm4050, %v4257, %v4253
        %v4259 = vlaneseq
        %v4260 = vshrl.u32 %v4259, 7
        %v4261 = vsub.s32 %v4052, %v4260
        %v4262 = vrot.slane %v3951, %v4261
        %v4263 = vsel %vm4057, %v4262, %v4258
        %v4264 = vlaneseq
        %v4265 = vshrl.u32 %v4264, 7
        %v4266 = vsub.s32 %v4059, %v4265
        %v4267 = vrot.slane %v3952, %v4266
        %v4268 = vsel %vm4064, %v4267, %v4263
        %v4269 = vlaneseq
        %v4270 = vshrl.u32 %v4269, 7
        %v4271 = vsub.s32 %v4066, %v4270
        %v4272 = vrot.slane %v3953, %v4271
        %v4273 = vsel %vm4071, %v4272, %v4268
        %v4274 = vlaneseq
        %v4275 = vshrl.u32 %v4274, 7
        %v4276 = vsub.s32 %v4073, %v4275
        %v4277 = vrot.slane %v3954, %v4276
        %v4278 = vsel %vm4078, %v4277, %v4273
        %v4279 = vlaneseq
        %v4280 = vshrl.u32 %v4279, 7
        %v4281 = vsub.s32 %v4080, %v4280
        %v4282 = vrot.slane %v3955, %v4281
        %v4283 = vsel %vm4085, %v4282, %v4278
        %v4284 = vlaneseq
        %v4285 = vshrl.u32 %v4284, 7
        %v4286 = vsub.s32 %v4087, %v4285
        %v4287 = vrot.slane %v3956, %v4286
        %v4288 = vsel %vm4092, %v4287, %v4283
        %v4289 = vlaneseq
        %v4290 = vshrl.u32 %v4289, 7
        %v4291 = vsub.s32 %v4094, %v4290
        %v4292 = vrot.slane %v3957, %v4291
        %v4293 = vsel %vm4099, %v4292, %v4288
        %s4294 = scalar_lea.vmem %s370, 2 [#allocation3]
        %4295 = vst [vmem:[%s4294] ss:$4 sm:$0x1] %v4293
        %v4312 = vlaneseq
        %v4313 = vshrl.u32 %v4312, 7
        %v4314 = vsub.s32 %v3991, %v4313
        %v4315 = vrot.slane %v3958, %v4314
        %v4316 = vlaneseq
        %v4317 = vshrl.u32 %v4316, 7
        %v4318 = vsub.s32 %v3996, %v4317
        %v4319 = vrot.slane %v3959, %v4318
        %v4320 = vsel %vm4001, %v4319, %v4315
        %v4321 = vlaneseq
        %v4322 = vshrl.u32 %v4321, 7
        %v4323 = vsub.s32 %v4003, %v4322
        %v4324 = vrot.slane %v3960, %v4323
        %v4325 = vsel %vm4008, %v4324, %v4320
        %v4326 = vlaneseq
        %v4327 = vshrl.u32 %v4326, 7
        %v4328 = vsub.s32 %v4010, %v4327
        %v4329 = vrot.slane %v3961, %v4328
        %v4330 = vsel %vm4015, %v4329, %v4325
        %v4331 = vlaneseq
        %v4332 = vshrl.u32 %v4331, 7
        %v4333 = vsub.s32 %v4017, %v4332
        %v4334 = vrot.slane %v3962, %v4333
        %v4335 = vsel %vm4022, %v4334, %v4330
        %v4336 = vlaneseq
        %v4337 = vshrl.u32 %v4336, 7
        %v4338 = vsub.s32 %v4024, %v4337
        %v4339 = vrot.slane %v3963, %v4338
        %v4340 = vsel %vm4029, %v4339, %v4335
        %v4341 = vlaneseq
        %v4342 = vshrl.u32 %v4341, 7
        %v4343 = vsub.s32 %v4031, %v4342
        %v4344 = vrot.slane %v3964, %v4343
        %v4345 = vsel %vm4036, %v4344, %v4340
        %v4346 = vlaneseq
        %v4347 = vshrl.u32 %v4346, 7
        %v4348 = vsub.s32 %v4038, %v4347
        %v4349 = vrot.slane %v3965, %v4348
        %v4350 = vsel %vm4043, %v4349, %v4345
        %v4351 = vlaneseq
        %v4352 = vshrl.u32 %v4351, 7
        %v4353 = vsub.s32 %v4045, %v4352
        %v4354 = vrot.slane %v3966, %v4353
        %v4355 = vsel %vm4050, %v4354, %v4350
        %v4356 = vlaneseq
        %v4357 = vshrl.u32 %v4356, 7
        %v4358 = vsub.s32 %v4052, %v4357
        %v4359 = vrot.slane %v3967, %v4358
        %v4360 = vsel %vm4057, %v4359, %v4355
        %v4361 = vlaneseq
        %v4362 = vshrl.u32 %v4361, 7
        %v4363 = vsub.s32 %v4059, %v4362
        %v4364 = vrot.slane %v3968, %v4363
        %v4365 = vsel %vm4064, %v4364, %v4360
        %v4366 = vlaneseq
        %v4367 = vshrl.u32 %v4366, 7
        %v4368 = vsub.s32 %v4066, %v4367
        %v4369 = vrot.slane %v3969, %v4368
        %v4370 = vsel %vm4071, %v4369, %v4365
        %v4371 = vlaneseq
        %v4372 = vshrl.u32 %v4371, 7
        %v4373 = vsub.s32 %v4073, %v4372
        %v4374 = vrot.slane %v3970, %v4373
        %v4375 = vsel %vm4078, %v4374, %v4370
        %v4376 = vlaneseq
        %v4377 = vshrl.u32 %v4376, 7
        %v4378 = vsub.s32 %v4080, %v4377
        %v4379 = vrot.slane %v3971, %v4378
        %v4380 = vsel %vm4085, %v4379, %v4375
        %v4381 = vlaneseq
        %v4382 = vshrl.u32 %v4381, 7
        %v4383 = vsub.s32 %v4087, %v4382
        %v4384 = vrot.slane %v3972, %v4383
        %v4385 = vsel %vm4092, %v4384, %v4380
        %v4386 = vlaneseq
        %v4387 = vshrl.u32 %v4386, 7
        %v4388 = vsub.s32 %v4094, %v4387
        %v4389 = vrot.slane %v3973, %v4388
        %v4390 = vsel %vm4099, %v4389, %v4385
        %s4391 = scalar_lea.vmem %s370, 3 [#allocation3]
        %4392 = vst [vmem:[%s4391] ss:$4 sm:$0x1] %v4390
        %s4393 = sand.u32 %s253, 1
        %s4394 = scalar_lea.sflag [#allocation4], %s4393
        %s4395 = sand.u32 %s253, 1
        %s4396 = smul.addr %s4395, 4
        %s4397 = scalar_lea.vmem [#allocation3], %s4396
        // Predicated region
        $region61: #{tpu_custom_call.1} parent=59 // pred_check
          %p4398 = pneg %p263
        $region62: #{tpu_custom_call.1} parent=59 // pred_check_branch
          %4400 = sbr.rel (%p4398) target = $region64
        $region63: #{tpu_custom_call.1} parent=59 // pred_region
          %s4402 = ssub.s32 64, 64
          %4403 = vsyncadd %s4394, %s4402
          %s4404 = smul.addr %s25, 64
          %s4405 = scalar_lea.hbm %s10, %s4404
          %s4407 = sshll.u32 %s4397, 4
          %s4408 = int_to_ptr.vmem [resolvable:$true] %s4407
          %4410 = dma.vmem_to_hbm [thread:$0]  %s4408, 64, %s4405, %s4394
        $region64: #{tpu_custom_call.1} parent=59 // pred_fallthru
          _
      $region60: #{tpu_custom_call.1} parent=5 // pred_fallthru
        _
      %p4411 = scmp.le.s32.totalorder 2, %s20
      // Predicated region
      $region65: #{tpu_custom_call.1} parent=5 // pred_check
        %p4412 = pneg %p4411
      $region66: #{tpu_custom_call.1} parent=5 // pred_check_branch
        %4414 = sbr.rel (%p4412) target = $region68
      $region67: #{tpu_custom_call.1} parent=5 // pred_region
        %s4415 = ssub.s32 %s20, 2
        // Predicated region
        $region69: #{tpu_custom_call.1} parent=67 // pred_check
          %p4416 = pneg %p269
        $region70: #{tpu_custom_call.1} parent=67 // pred_check_branch
          %4418 = sbr.rel (%p4416) target = $region72
        $region71: #{tpu_custom_call.1} parent=67 // pred_region
          %s4419 = sand.u32 %s254, 1
          %s4420 = scalar_lea.sflag [#allocation4], %s4419
          %s4421 = sand.u32 %s254, 1
          %s4422 = smul.addr %s4421, 4
          %s4423 = scalar_lea.vmem [#allocation3], %s4422
          %4424 = dma.done %s4420, 64
        $region72: #{tpu_custom_call.1} parent=67 // pred_fallthru
          _
      $region68: #{tpu_custom_call.1} parent=5 // pred_fallthru
        _
    $region6: #{tpu_custom_call.1} parent=1 // loop_footer
      %s24 = sadd.s32 1, %s20
    $region7: #{tpu_custom_call.1} parent=1 // loop_footer_branch
      %19 = sbr.rel target = $region3
    $region8: #{tpu_custom_call.1} parent=1 // loop_exit
      _
    %4425 = vsyncpa [#allocation4], 1
    %s4426 = scalar_lea.sflag [#allocation4], 1
    %4427 = vsyncpa %s4426, 1

</llo_original>
